<compile_context>
chip_gen: v5e
topology: v5e:2x2
jax: 0.10.0
libtpu: 0.0.40
codegen_flags: <defaults>
</compile_context>

<pallas_src>
import math
import functools

import jax
import jax.numpy as jnp
from jax.experimental import pallas as pl
from jax.experimental.pallas import tpu as pltpu


# ----------------------------------------------------------------------------
# Generation-dependent configuration (review: don't cap v5e/v6e to protect v7x)
# ----------------------------------------------------------------------------

def _tpu_vmem_bytes():
    try:
        info = pltpu.get_tpu_info()
        cap = getattr(info, "vmem_capacity_bytes", None)
        if cap:
            return int(cap)
    except Exception:
        pass
    return 64 << 20  # conservative default (v7x-class per-core VMEM)


_VMEM_CAP = _tpu_vmem_bytes()
VMEM_LIMIT_BYTES = min((_VMEM_CAP * 3) // 4, 100 << 20)   # 48 MiB on v7x, ~96-100 MiB on v5e/v6e
TM_MAX = 512 if _VMEM_CAP <= (64 << 20) else 1024


def _cparams():
    return pltpu.CompilerParams(
        dimension_semantics=("parallel",),
        vmem_limit_bytes=VMEM_LIMIT_BYTES,
    )


def _choose_tm(M):
    """Row tile: multiple of 8, divides M, <= TM_MAX, and (when possible) gives >=2 grid
    steps so both v7x TensorCores get work and the pipeline has something to double-buffer."""
    cap = min(TM_MAX, M)
    if M >= 16:
        cap = min(cap, max(8, M // 2))
    cap -= cap % 8
    for tm in range(cap, 7, -8):
        if M % tm == 0:
            return tm
    return M


# ----------------------------------------------------------------------------
# Fused Token_performer stage kernel (one grid step = one batch element)
# ----------------------------------------------------------------------------

def _token_performer_kernel(x_ref, g1_ref, b1_ref, wext_ref, bext_ref,
                            pw_ref, pb_ref, g2_ref, b2_ref,
                            w1_ref, b1m_ref, w2_ref, b2m_ref, o_ref,
                            *, emb, m, ln_eps, attn_eps):
    x = x_ref[0]                                                   # (T, dim) f32

    # LayerNorm1 (f32 statistics)
    mu = jnp.mean(x, axis=-1, keepdims=True)
    var = jnp.mean((x - mu) ** 2, axis=-1, keepdims=True)
    xn = (x - mu) * jax.lax.rsqrt(var + ln_eps)
    xn = xn * g1_ref[...] + b1_ref[...]

    # One lane-dense matmul producing [k | q | v | k@w_t | q@w_t]   (T, 3*emb + 2*m)
    kqvw = jnp.dot(xn, wext_ref[...], preferred_element_type=jnp.float32) + bext_ref[...]
    k = kqvw[:, :emb]
    q = kqvw[:, emb:2 * emb]
    v = kqvw[:, 2 * emb:3 * emb]
    wtk = kqvw[:, 3 * emb:3 * emb + m]
    wtq = kqvw[:, 3 * emb + m:3 * emb + 2 * m]

    # prm_exp: exp(w@x - |x|^2/2) / sqrt(m)   (exponent and exp in f32)
    inv_sqrt_m = 1.0 / math.sqrt(m)
    kp = jnp.exp(wtk - 0.5 * jnp.sum(k * k, axis=-1, keepdims=True)) * inv_sqrt_m
    qp = jnp.exp(wtq - 0.5 * jnp.sum(q * q, axis=-1, keepdims=True)) * inv_sqrt_m

    # Performer linear attention (PyTorch reference forces .float() here -> keep f32)
    kp_sum = jnp.sum(kp, axis=0, keepdims=True)                    # (1, m)
    D = jnp.sum(qp * kp_sum, axis=-1, keepdims=True)               # (T, 1)
    kptv = jax.lax.dot_general(kp, v, (((0,), (0,)), ((), ())),
                               preferred_element_type=jnp.float32)  # (m, emb) = kp^T @ v
    y = jnp.dot(qp, kptv, preferred_element_type=jnp.float32)       # (T, emb)
    y = y * pl.reciprocal(D + attn_eps, approx=False)               # T reciprocals, broadcast

    # proj + residual:  y = v + proj(y)
    y = v + jnp.dot(y, pw_ref[...], preferred_element_type=jnp.float32) + pb_ref[...]

    # LayerNorm2 -> MLP (Linear + exact GELU + Linear) -> residual
    mu2 = jnp.mean(y, axis=-1, keepdims=True)
    var2 = jnp.mean((y - mu2) ** 2, axis=-1, keepdims=True)
    yn = (y - mu2) * jax.lax.rsqrt(var2 + ln_eps)
    yn = yn * g2_ref[...] + b2_ref[...]
    h = jnp.dot(yn, w1_ref[...], preferred_element_type=jnp.float32) + b1m_ref[...]
    h = 0.5 * h * (1.0 + jax.lax.erf(h * 0.7071067811865476))       # nn.GELU (exact)
    h = jnp.dot(h, w2_ref[...], preferred_element_type=jnp.float32) + b2m_ref[...]

    o_ref[0] = y + h


def token_performer_apply(p, x):
    """Fused Token_performer stage.  x: (B, T, dim) -> (B, T, emb)."""
    B, T, dim = x.shape
    emb = p["proj_w"].shape[0]
    m = p["w_t"].shape[1]
    nw = p["w_ext"].shape[1]           # 3*emb + 2*m
    H = p["mlp1_w"].shape[1]

    kernel = functools.partial(_token_performer_kernel, emb=emb, m=m,
                               ln_eps=1e-5, attn_eps=1e-8)
    const = lambda b: (0, 0)
    return pl.pallas_call(
        kernel,
        out_shape=jax.ShapeDtypeStruct((B, T, emb), jnp.float32),
        grid=(B,),
        in_specs=[
            pl.BlockSpec((1, T, dim), lambda b: (b, 0, 0)),
            pl.BlockSpec((1, dim), const),
            pl.BlockSpec((1, dim), const),
            pl.BlockSpec((dim, nw), const),
            pl.BlockSpec((1, nw), const),
            pl.BlockSpec((emb, emb), const),
            pl.BlockSpec((1, emb), const),
            pl.BlockSpec((1, emb), const),
            pl.BlockSpec((1, emb), const),
            pl.BlockSpec((emb, H), const),
            pl.BlockSpec((1, H), const),
            pl.BlockSpec((H, emb), const),
            pl.BlockSpec((1, emb), const),
        ],
        out_specs=pl.BlockSpec((1, T, emb), lambda b: (b, 0, 0)),
        compiler_params=_cparams(),
    )(x, p["ln1_g"], p["ln1_b"], p["w_ext"], p["b_ext"],
      p["proj_w"], p["proj_b"], p["ln2_g"], p["ln2_b"],
      p["mlp1_w"], p["mlp1_b"], p["mlp2_w"], p["mlp2_b"])


# ----------------------------------------------------------------------------
# Row-tiled Linear (final projection)
# ----------------------------------------------------------------------------

def linear(x, w, b):
    M, K = x.shape
    N = w.shape[1]
    tm = _choose_tm(M)

    def kernel(x_ref, w_ref, b_ref, o_ref):
        o_ref[...] = jnp.dot(x_ref[...], w_ref[...],
                             preferred_element_type=jnp.float32) + b_ref[...]

    return pl.pallas_call(
        kernel,
        out_shape=jax.ShapeDtypeStruct((M, N), jnp.float32),
        grid=(M // tm,),
        in_specs=[
            pl.BlockSpec((tm, K), lambda i: (i, 0)),
            pl.BlockSpec((K, N), lambda i: (0, 0)),
            pl.BlockSpec((1, N), lambda i: (0, 0)),
        ],
        out_specs=pl.BlockSpec((tm, N), lambda i: (i, 0)),
        compiler_params=_cparams(),
    )(x, w, b)


# ----------------------------------------------------------------------------
# Glue (pure data movement / parameter setup) in plain JAX
# ----------------------------------------------------------------------------

def unfold_tokens_nhwc(x, k, stride, pad):
    """NHWC image -> (B, L, C*k*k) tokens matching torch.nn.Unfold(...).transpose(1,2).

    Last-dim index = c*k*k + kh*k + kw (channel-major, matching NCHW Unfold);
    locations are row-major over (Ho, Wo)."""
    B, H, W, C = x.shape
    xp = jnp.pad(x, ((0, 0), (pad, pad), (pad, pad), (0, 0)))
    Ho = (H + 2 * pad - k) // stride + 1
    Wo = (W + 2 * pad - k) // stride + 1
    cols = []
    for kh in range(k):
        for kw in range(k):
            cols.append(xp[:, kh:kh + stride * Ho:stride, kw:kw + stride * Wo:stride, :])
    cols = jnp.stack(cols, axis=-1)                               # (B, Ho, Wo, C, k*k)
    return cols.reshape(B, Ho * Wo, C * k * k)


def init_token_performer(key, dim, in_dim, kernel_ratio=0.5, scale=0.02):
    emb = in_dim
    m = int(emb * kernel_ratio)
    ks = jax.random.split(key, 6)

    kqv_w = scale * jax.random.normal(ks[0], (dim, 3 * emb), jnp.float32)
    kqv_b = jnp.zeros((1, 3 * emb), jnp.float32)

    # Performer projection: orthogonal columns scaled by sqrt(m); stored transposed (emb, m).
    a = jax.random.normal(ks[4], (emb, m), jnp.float32)
    qm, _ = jnp.linalg.qr(a)
    w_t = qm * jnp.sqrt(jnp.float32(m))

    # Fold w_t into the kqv weight: one lane-dense matmul emits [k|q|v|k@w_t|q@w_t].
    wk, wq = kqv_w[:, :emb], kqv_w[:, emb:2 * emb]
    bk, bq = kqv_b[:, :emb], kqv_b[:, emb:2 * emb]
    w_ext = jnp.concatenate([kqv_w, wk @ w_t, wq @ w_t], axis=1)   # (dim, 3*emb + 2*m)
    b_ext = jnp.concatenate([kqv_b, bk @ w_t, bq @ w_t], axis=1)   # (1,   3*emb + 2*m)

    return {
        "ln1_g": jnp.ones((1, dim), jnp.float32),
        "ln1_b": jnp.zeros((1, dim), jnp.float32),
        "kqv_w": kqv_w, "kqv_b": kqv_b, "w_t": w_t,                # kept for the reference check
        "w_ext": w_ext, "b_ext": b_ext,                            # used by the fused kernel
        "proj_w": scale * jax.random.normal(ks[1], (emb, emb), jnp.float32),
        "proj_b": jnp.zeros((1, emb), jnp.float32),
        "ln2_g": jnp.ones((1, emb), jnp.float32),
        "ln2_b": jnp.zeros((1, emb), jnp.float32),
        "mlp1_w": scale * jax.random.normal(ks[2], (emb, emb), jnp.float32),
        "mlp1_b": jnp.zeros((1, emb), jnp.float32),
        "mlp2_w": scale * jax.random.normal(ks[3], (emb, emb), jnp.float32),
        "mlp2_b": jnp.zeros((1, emb), jnp.float32),
    }


def init_t2t(key, in_chans=3, token_dim=32, embed_dim=64):
    k1, k2, k3 = jax.random.split(key, 3)
    return {
        "attn1": init_token_performer(k1, dim=in_chans * 3 * 3, in_dim=token_dim),
        "attn2": init_token_performer(k2, dim=token_dim * 3 * 3, in_dim=token_dim),
        "proj_w": 0.02 * jax.random.normal(k3, (token_dim * 3 * 3, embed_dim), jnp.float32),
        "proj_b": jnp.zeros((1, embed_dim), jnp.float32),
    }


def t2t_forward(params, x_nchw, stride=2):
    """T2T_module.forward.  x: (B, C, H, W) NCHW -> (B, L, embed_dim)."""
    x = jnp.transpose(x_nchw, (0, 2, 3, 1))                       # one-time NCHW -> NHWC

    tok = unfold_tokens_nhwc(x, 3, 2, 1)                          # soft_split0
    tok = token_performer_apply(params["attn1"], tok)

    B, L, C = tok.shape
    s = int(math.isqrt(L))
    tok = unfold_tokens_nhwc(tok.reshape(B, s, s, C), 3, stride, 1)   # soft_split1
    tok = token_performer_apply(params["attn2"], tok)

    B, L, C = tok.shape
    s = int(math.isqrt(L))
    tok = unfold_tokens_nhwc(tok.reshape(B, s, s, C), 3, 1, 1)        # soft_split2

    B, L2, Ck = tok.shape
    out = linear(tok.reshape(B * L2, Ck), params["proj_w"], params["proj_b"])
    return out.reshape(B, L2, -1)


# ----------------------------------------------------------------------------
# Pure-JAX reference (uses un-folded kqv_w / w_t — validates the folding too)
# ----------------------------------------------------------------------------

def _token_performer_ref(p, x):
    emb = p["proj_w"].shape[0]
    m = p["w_t"].shape[1]
    mu = x.mean(-1, keepdims=True)
    var = ((x - mu) ** 2).mean(-1, keepdims=True)
    xn = (x - mu) / jnp.sqrt(var + 1e-5) * p["ln1_g"][0] + p["ln1_b"][0]
    kqv = xn @ p["kqv_w"] + p["kqv_b"][0]
    k, q, v = kqv[..., :emb], kqv[..., emb:2 * emb], kqv[..., 2 * emb:]

    def prm(z):
        zd = 0.5 * jnp.sum(z * z, -1, keepdims=True)
        return jnp.exp(z @ p["w_t"] - zd) / math.sqrt(m)

    kp, qp = prm(k), prm(q)
    D = jnp.einsum('btm,bm->bt', qp, kp.sum(1))[..., None]
    kptv = jnp.einsum('bte,btm->bme', v, kp)
    y = jnp.einsum('btm,bme->bte', qp, kptv) / (D + 1e-8)
    y = v + (y @ p["proj_w"] + p["proj_b"][0])

    mu2 = y.mean(-1, keepdims=True)
    var2 = ((y - mu2) ** 2).mean(-1, keepdims=True)
    yn = (y - mu2) / jnp.sqrt(var2 + 1e-5) * p["ln2_g"][0] + p["ln2_b"][0]
    h = yn @ p["mlp1_w"] + p["mlp1_b"][0]
    h = 0.5 * h * (1.0 + jax.lax.erf(h * 0.7071067811865476))
    h = h @ p["mlp2_w"] + p["mlp2_b"][0]
    return y + h


def t2t_forward_ref(params, x_nchw, stride=2):
    x = jnp.transpose(x_nchw, (0, 2, 3, 1))
    tok = unfold_tokens_nhwc(x, 3, 2, 1)
    tok = _token_performer_ref(params["attn1"], tok)
    B, L, C = tok.shape
    s = int(math.isqrt(L))
    tok = unfold_tokens_nhwc(tok.reshape(B, s, s, C), 3, stride, 1)
    tok = _token_performer_ref(params["attn2"], tok)
    B, L, C = tok.shape
    s = int(math.isqrt(L))
    tok = unfold_tokens_nhwc(tok.reshape(B, s, s, C), 3, 1, 1)
    B, L2, Ck = tok.shape
    out = tok.reshape(B * L2, Ck) @ params["proj_w"] + params["proj_b"][0]
    return out.reshape(B, L2, -1)


# ----------------------------------------------------------------------------
# Main
# ----------------------------------------------------------------------------

if __name__ == "__main__":
    B, C, H, W = 2, 3, 16, 16
    token_dim, embed_dim, stride = 32, 64, 2

    key = jax.random.PRNGKey(0)
    pkey, xkey = jax.random.split(key)
    params = init_t2t(pkey, in_chans=C, token_dim=token_dim, embed_dim=embed_dim)
    x = jax.random.normal(xkey, (B, C, H, W), jnp.float32)

    fwd = jax.jit(functools.partial(t2t_forward, stride=stride))
    out = jax.block_until_ready(fwd(params, x))

    ref = jax.block_until_ready(
        jax.jit(functools.partial(t2t_forward_ref, stride=stride))(params, x))

    # num_patches = (img_size // (2*stride))^2 = (16 // 4)^2 = 16
    assert out.shape == (B, 16, embed_dim), out.shape
    assert bool(jnp.all(jnp.isfinite(out)))
    max_err = float(jnp.max(jnp.abs(out - ref)))
    assert max_err < 2e-3, f"kernel/reference mismatch: max |diff| = {max_err}"
    print("KERNEL_OK")
</pallas_src>

<mosaic_0001>
module attributes {stable_mosaic.version = 11 : i64} {
  func.func @_token_performer_kernel(%arg0: i32, %arg1: memref<1x64x27xf32, #tpu.memory_space<vmem>>, %arg2: memref<1x27xf32, #tpu.memory_space<vmem>>, %arg3: memref<1x27xf32, #tpu.memory_space<vmem>>, %arg4: memref<27x128xf32, #tpu.memory_space<vmem>>, %arg5: memref<1x128xf32, #tpu.memory_space<vmem>>, %arg6: memref<32x32xf32, #tpu.memory_space<vmem>>, %arg7: memref<1x32xf32, #tpu.memory_space<vmem>>, %arg8: memref<1x32xf32, #tpu.memory_space<vmem>>, %arg9: memref<1x32xf32, #tpu.memory_space<vmem>>, %arg10: memref<32x32xf32, #tpu.memory_space<vmem>>, %arg11: memref<1x32xf32, #tpu.memory_space<vmem>>, %arg12: memref<32x32xf32, #tpu.memory_space<vmem>>, %arg13: memref<1x32xf32, #tpu.memory_space<vmem>>, %arg14: memref<1x64x32xf32, #tpu.memory_space<vmem>>) attributes {dimension_semantics = [#tpu.dimension_semantics<parallel>], iteration_bounds = array<i64: 2>, scalar_prefetch = 0 : i64, scratch_operands = 0 : i64, tpu.core_type = #tpu.core_type<tc>, window_params = [{transform_indices = @transform_0, window_bounds = array<i64: 1, 64, 27>}, {pipeline_mode = #tpu.pipeline_mode<synchronous>, transform_indices = @transform_1, window_bounds = array<i64: 1, 27>}, {pipeline_mode = #tpu.pipeline_mode<synchronous>, transform_indices = @transform_2, window_bounds = array<i64: 1, 27>}, {pipeline_mode = #tpu.pipeline_mode<synchronous>, transform_indices = @transform_3, window_bounds = array<i64: 27, 128>}, {pipeline_mode = #tpu.pipeline_mode<synchronous>, transform_indices = @transform_4, window_bounds = array<i64: 1, 128>}, {pipeline_mode = #tpu.pipeline_mode<synchronous>, transform_indices = @transform_5, window_bounds = array<i64: 32, 32>}, {pipeline_mode = #tpu.pipeline_mode<synchronous>, transform_indices = @transform_6, window_bounds = array<i64: 1, 32>}, {pipeline_mode = #tpu.pipeline_mode<synchronous>, transform_indices = @transform_7, window_bounds = array<i64: 1, 32>}, {pipeline_mode = #tpu.pipeline_mode<synchronous>, transform_indices = @transform_8, window_bounds = array<i64: 1, 32>}, {pipeline_mode = #tpu.pipeline_mode<synchronous>, transform_indices = @transform_9, window_bounds = array<i64: 32, 32>}, {pipeline_mode = #tpu.pipeline_mode<synchronous>, transform_indices = @transform_10, window_bounds = array<i64: 1, 32>}, {pipeline_mode = #tpu.pipeline_mode<synchronous>, transform_indices = @transform_11, window_bounds = array<i64: 32, 32>}, {pipeline_mode = #tpu.pipeline_mode<synchronous>, transform_indices = @transform_12, window_bounds = array<i64: 1, 32>}, {transform_indices = @transform_13, window_bounds = array<i64: 1, 64, 32>}]} {
    %c0 = arith.constant 0 : index
    %c0_0 = arith.constant 0 : index
    %c0_1 = arith.constant 0 : index
    %0 = vector.load %arg1[%c0, %c0_0, %c0_1] : memref<1x64x27xf32, #tpu.memory_space<vmem>>, vector<1x64x27xf32>
    %1 = vector.shape_cast %0 : vector<1x64x27xf32> to vector<64x27xf32>
    %cst = arith.constant dense<0.000000e+00> : vector<64xf32>
    %2 = vector.multi_reduction <add>, %1, %cst [1] : vector<64x27xf32> to vector<64xf32>
    %3 = vector.shape_cast %2 : vector<64xf32> to vector<64x1xf32>
    %cst_2 = arith.constant 2.700000e+01 : f32
    %4 = vector.broadcast %cst_2 : f32 to vector<64x1xf32>
    %5 = arith.divf %3, %4 : vector<64x1xf32>
    %6 = vector.broadcast %5 : vector<64x1xf32> to vector<64x27xf32>
    %7 = arith.subf %1, %6 : vector<64x27xf32>
    %8 = arith.mulf %7, %7 : vector<64x27xf32>
    %cst_3 = arith.constant dense<0.000000e+00> : vector<64xf32>
    %9 = vector.multi_reduction <add>, %8, %cst_3 [1] : vector<64x27xf32> to vector<64xf32>
    %10 = vector.shape_cast %9 : vector<64xf32> to vector<64x1xf32>
    %cst_4 = arith.constant 2.700000e+01 : f32
    %11 = vector.broadcast %cst_4 : f32 to vector<64x1xf32>
    %12 = arith.divf %10, %11 : vector<64x1xf32>
    %13 = vector.broadcast %5 : vector<64x1xf32> to vector<64x27xf32>
    %14 = arith.subf %1, %13 : vector<64x27xf32>
    %cst_5 = arith.constant 9.99999974E-6 : f32
    %15 = vector.broadcast %cst_5 : f32 to vector<64x1xf32>
    %16 = arith.addf %12, %15 : vector<64x1xf32>
    %17 = math.rsqrt %16 : vector<64x1xf32>
    %18 = vector.broadcast %17 : vector<64x1xf32> to vector<64x27xf32>
    %19 = arith.mulf %14, %18 : vector<64x27xf32>
    %c0_6 = arith.constant 0 : index
    %c0_7 = arith.constant 0 : index
    %20 = vector.load %arg2[%c0_6, %c0_7] : memref<1x27xf32, #tpu.memory_space<vmem>>, vector<1x27xf32>
    %21 = vector.broadcast %20 : vector<1x27xf32> to vector<64x27xf32>
    %22 = arith.mulf %19, %21 : vector<64x27xf32>
    %c0_8 = arith.constant 0 : index
    %c0_9 = arith.constant 0 : index
    %23 = vector.load %arg3[%c0_8, %c0_9] : memref<1x27xf32, #tpu.memory_space<vmem>>, vector<1x27xf32>
    %24 = vector.broadcast %23 : vector<1x27xf32> to vector<64x27xf32>
    %25 = arith.addf %22, %24 : vector<64x27xf32>
    %c0_10 = arith.constant 0 : index
    %c0_11 = arith.constant 0 : index
    %26 = vector.load %arg4[%c0_10, %c0_11] : memref<27x128xf32, #tpu.memory_space<vmem>>, vector<27x128xf32>
    %cst_12 = arith.constant dense<0.000000e+00> : vector<64x128xf32>
    %27 = tpu.matmul %25, %26, %cst_12 {dimension_numbers = #tpu.dot_dimension_numbers<[1], [0], [0], [1], [0, 0, 1, 1], [], []>} : vector<64x27xf32>, vector<27x128xf32>, vector<64x128xf32> -> vector<64x128xf32>
    %c0_13 = arith.constant 0 : index
    %c0_14 = arith.constant 0 : index
    %28 = vector.load %arg5[%c0_13, %c0_14] : memref<1x128xf32, #tpu.memory_space<vmem>>, vector<1x128xf32>
    %29 = vector.broadcast %28 : vector<1x128xf32> to vector<64x128xf32>
    %30 = arith.addf %27, %29 : vector<64x128xf32>
    %31 = vector.extract_strided_slice %30 {offsets = [0, 0], sizes = [64, 32], strides = [1, 1]} : vector<64x128xf32> to vector<64x32xf32>
    %32 = vector.extract_strided_slice %30 {offsets = [0, 32], sizes = [64, 32], strides = [1, 1]} : vector<64x128xf32> to vector<64x32xf32>
    %33 = vector.extract_strided_slice %30 {offsets = [0, 64], sizes = [64, 32], strides = [1, 1]} : vector<64x128xf32> to vector<64x32xf32>
    %34 = vector.extract_strided_slice %30 {offsets = [0, 96], sizes = [64, 16], strides = [1, 1]} : vector<64x128xf32> to vector<64x16xf32>
    %35 = vector.extract_strided_slice %30 {offsets = [0, 112], sizes = [64, 16], strides = [1, 1]} : vector<64x128xf32> to vector<64x16xf32>
    %36 = arith.mulf %31, %31 : vector<64x32xf32>
    %cst_15 = arith.constant dense<0.000000e+00> : vector<64xf32>
    %37 = vector.multi_reduction <add>, %36, %cst_15 [1] : vector<64x32xf32> to vector<64xf32>
    %38 = vector.shape_cast %37 : vector<64xf32> to vector<64x1xf32>
    %cst_16 = arith.constant 5.000000e-01 : f32
    %39 = vector.broadcast %cst_16 : f32 to vector<64x1xf32>
    %40 = arith.mulf %39, %38 : vector<64x1xf32>
    %41 = vector.broadcast %40 : vector<64x1xf32> to vector<64x16xf32>
    %42 = arith.subf %34, %41 : vector<64x16xf32>
    %43 = math.exp %42 : vector<64x16xf32>
    %cst_17 = arith.constant 2.500000e-01 : f32
    %44 = vector.broadcast %cst_17 : f32 to vector<64x16xf32>
    %45 = arith.mulf %43, %44 : vector<64x16xf32>
    %46 = arith.mulf %32, %32 : vector<64x32xf32>
    %cst_18 = arith.constant dense<0.000000e+00> : vector<64xf32>
    %47 = vector.multi_reduction <add>, %46, %cst_18 [1] : vector<64x32xf32> to vector<64xf32>
    %48 = vector.shape_cast %47 : vector<64xf32> to vector<64x1xf32>
    %cst_19 = arith.constant 5.000000e-01 : f32
    %49 = vector.broadcast %cst_19 : f32 to vector<64x1xf32>
    %50 = arith.mulf %49, %48 : vector<64x1xf32>
    %51 = vector.broadcast %50 : vector<64x1xf32> to vector<64x16xf32>
    %52 = arith.subf %35, %51 : vector<64x16xf32>
    %53 = math.exp %52 : vector<64x16xf32>
    %cst_20 = arith.constant 2.500000e-01 : f32
    %54 = vector.broadcast %cst_20 : f32 to vector<64x16xf32>
    %55 = arith.mulf %53, %54 : vector<64x16xf32>
    %cst_21 = arith.constant dense<0.000000e+00> : vector<16xf32>
    %56 = vector.multi_reduction <add>, %45, %cst_21 [0] : vector<64x16xf32> to vector<16xf32>
    %57 = vector.shape_cast %56 : vector<16xf32> to vector<1x16xf32>
    %58 = vector.broadcast %57 : vector<1x16xf32> to vector<64x16xf32>
    %59 = arith.mulf %55, %58 : vector<64x16xf32>
    %cst_22 = arith.constant dense<0.000000e+00> : vector<64xf32>
    %60 = vector.multi_reduction <add>, %59, %cst_22 [1] : vector<64x16xf32> to vector<64xf32>
    %61 = vector.shape_cast %60 : vector<64xf32> to vector<64x1xf32>
    %cst_23 = arith.constant dense<0.000000e+00> : vector<16x32xf32>
    %62 = tpu.matmul %45, %33, %cst_23 {dimension_numbers = #tpu.dot_dimension_numbers<[0], [0], [1], [1], [0, 1, 1, 1], [], []>} : vector<64x16xf32>, vector<64x32xf32>, vector<16x32xf32> -> vector<16x32xf32>
    %cst_24 = arith.constant dense<0.000000e+00> : vector<64x32xf32>
    %63 = tpu.matmul %55, %62, %cst_24 {dimension_numbers = #tpu.dot_dimension_numbers<[1], [0], [0], [1], [0, 0, 1, 1], [], []>} : vector<64x16xf32>, vector<16x32xf32>, vector<64x32xf32> -> vector<64x32xf32>
    %cst_25 = arith.constant 9.99999993E-9 : f32
    %64 = vector.broadcast %cst_25 : f32 to vector<64x1xf32>
    %65 = arith.addf %61, %64 : vector<64x1xf32>
    %66 = tpu.reciprocal %65 : vector<64x1xf32> -> vector<64x1xf32>
    %67 = vector.broadcast %66 : vector<64x1xf32> to vector<64x32xf32>
    %68 = arith.mulf %63, %67 : vector<64x32xf32>
    %c0_26 = arith.constant 0 : index
    %c0_27 = arith.constant 0 : index
    %69 = vector.load %arg6[%c0_26, %c0_27] : memref<32x32xf32, #tpu.memory_space<vmem>>, vector<32x32xf32>
    %cst_28 = arith.constant dense<0.000000e+00> : vector<64x32xf32>
    %70 = tpu.matmul %68, %69, %cst_28 {dimension_numbers = #tpu.dot_dimension_numbers<[1], [0], [0], [1], [0, 0, 1, 1], [], []>} : vector<64x32xf32>, vector<32x32xf32>, vector<64x32xf32> -> vector<64x32xf32>
    %71 = arith.addf %33, %70 : vector<64x32xf32>
    %c0_29 = arith.constant 0 : index
    %c0_30 = arith.constant 0 : index
    %72 = vector.load %arg7[%c0_29, %c0_30] : memref<1x32xf32, #tpu.memory_space<vmem>>, vector<1x32xf32>
    %73 = vector.broadcast %72 : vector<1x32xf32> to vector<64x32xf32>
    %74 = arith.addf %71, %73 : vector<64x32xf32>
    %cst_31 = arith.constant dense<0.000000e+00> : vector<64xf32>
    %75 = vector.multi_reduction <add>, %74, %cst_31 [1] : vector<64x32xf32> to vector<64xf32>
    %76 = vector.shape_cast %75 : vector<64xf32> to vector<64x1xf32>
    %cst_32 = arith.constant 3.200000e+01 : f32
    %77 = vector.broadcast %cst_32 : f32 to vector<64x1xf32>
    %78 = arith.divf %76, %77 : vector<64x1xf32>
    %79 = vector.broadcast %78 : vector<64x1xf32> to vector<64x32xf32>
    %80 = arith.subf %74, %79 : vector<64x32xf32>
    %81 = arith.mulf %80, %80 : vector<64x32xf32>
    %cst_33 = arith.constant dense<0.000000e+00> : vector<64xf32>
    %82 = vector.multi_reduction <add>, %81, %cst_33 [1] : vector<64x32xf32> to vector<64xf32>
    %83 = vector.shape_cast %82 : vector<64xf32> to vector<64x1xf32>
    %cst_34 = arith.constant 3.200000e+01 : f32
    %84 = vector.broadcast %cst_34 : f32 to vector<64x1xf32>
    %85 = arith.divf %83, %84 : vector<64x1xf32>
    %86 = vector.broadcast %78 : vector<64x1xf32> to vector<64x32xf32>
    %87 = arith.subf %74, %86 : vector<64x32xf32>
    %cst_35 = arith.constant 9.99999974E-6 : f32
    %88 = vector.broadcast %cst_35 : f32 to vector<64x1xf32>
    %89 = arith.addf %85, %88 : vector<64x1xf32>
    %90 = math.rsqrt %89 : vector<64x1xf32>
    %91 = vector.broadcast %90 : vector<64x1xf32> to vector<64x32xf32>
    %92 = arith.mulf %87, %91 : vector<64x32xf32>
    %c0_36 = arith.constant 0 : index
    %c0_37 = arith.constant 0 : index
    %93 = vector.load %arg8[%c0_36, %c0_37] : memref<1x32xf32, #tpu.memory_space<vmem>>, vector<1x32xf32>
    %94 = vector.broadcast %93 : vector<1x32xf32> to vector<64x32xf32>
    %95 = arith.mulf %92, %94 : vector<64x32xf32>
    %c0_38 = arith.constant 0 : index
    %c0_39 = arith.constant 0 : index
    %96 = vector.load %arg9[%c0_38, %c0_39] : memref<1x32xf32, #tpu.memory_space<vmem>>, vector<1x32xf32>
    %97 = vector.broadcast %96 : vector<1x32xf32> to vector<64x32xf32>
    %98 = arith.addf %95, %97 : vector<64x32xf32>
    %c0_40 = arith.constant 0 : index
    %c0_41 = arith.constant 0 : index
    %99 = vector.load %arg10[%c0_40, %c0_41] : memref<32x32xf32, #tpu.memory_space<vmem>>, vector<32x32xf32>
    %cst_42 = arith.constant dense<0.000000e+00> : vector<64x32xf32>
    %100 = tpu.matmul %98, %99, %cst_42 {dimension_numbers = #tpu.dot_dimension_numbers<[1], [0], [0], [1], [0, 0, 1, 1], [], []>} : vector<64x32xf32>, vector<32x32xf32>, vector<64x32xf32> -> vector<64x32xf32>
    %c0_43 = arith.constant 0 : index
    %c0_44 = arith.constant 0 : index
    %101 = vector.load %arg11[%c0_43, %c0_44] : memref<1x32xf32, #tpu.memory_space<vmem>>, vector<1x32xf32>
    %102 = vector.broadcast %101 : vector<1x32xf32> to vector<64x32xf32>
    %103 = arith.addf %100, %102 : vector<64x32xf32>
    %cst_45 = arith.constant 5.000000e-01 : f32
    %104 = vector.broadcast %cst_45 : f32 to vector<64x32xf32>
    %105 = arith.mulf %104, %103 : vector<64x32xf32>
    %cst_46 = arith.constant 0.707106769 : f32
    %106 = vector.broadcast %cst_46 : f32 to vector<64x32xf32>
    %107 = arith.mulf %103, %106 : vector<64x32xf32>
    %108 = math.erf %107 : vector<64x32xf32>
    %cst_47 = arith.constant 1.000000e+00 : f32
    %109 = vector.broadcast %cst_47 : f32 to vector<64x32xf32>
    %110 = arith.addf %109, %108 : vector<64x32xf32>
    %111 = arith.mulf %105, %110 : vector<64x32xf32>
    %c0_48 = arith.constant 0 : index
    %c0_49 = arith.constant 0 : index
    %112 = vector.load %arg12[%c0_48, %c0_49] : memref<32x32xf32, #tpu.memory_space<vmem>>, vector<32x32xf32>
    %cst_50 = arith.constant dense<0.000000e+00> : vector<64x32xf32>
    %113 = tpu.matmul %111, %112, %cst_50 {dimension_numbers = #tpu.dot_dimension_numbers<[1], [0], [0], [1], [0, 0, 1, 1], [], []>} : vector<64x32xf32>, vector<32x32xf32>, vector<64x32xf32> -> vector<64x32xf32>
    %c0_51 = arith.constant 0 : index
    %c0_52 = arith.constant 0 : index
    %114 = vector.load %arg13[%c0_51, %c0_52] : memref<1x32xf32, #tpu.memory_space<vmem>>, vector<1x32xf32>
    %115 = vector.broadcast %114 : vector<1x32xf32> to vector<64x32xf32>
    %116 = arith.addf %113, %115 : vector<64x32xf32>
    %117 = arith.addf %74, %116 : vector<64x32xf32>
    %c0_53 = arith.constant 0 : index
    %c0_54 = arith.constant 0 : index
    %c0_55 = arith.constant 0 : index
    %118 = vector.load %arg14[%c0_53, %c0_54, %c0_55] : memref<1x64x32xf32, #tpu.memory_space<vmem>>, vector<1x64x32xf32>
    %119 = vector.shape_cast %118 : vector<1x64x32xf32> to vector<64x32xf32>
    %120 = vector.shape_cast %117 : vector<64x32xf32> to vector<1x64x32xf32>
    tpu.vector_store %arg14[%c0_53, %c0_54, %c0_55], %120 {strides = array<i32>} : memref<1x64x32xf32, #tpu.memory_space<vmem>>, vector<1x64x32xf32>,
    return
  }
  func.func @transform_0(%arg0: i32) -> (i32, i32, i32) {
    %c0_i32 = arith.constant 0 : i32
    %c0_i32_0 = arith.constant 0 : i32
    %c0_i32_1 = arith.constant 0 : i32
    return %arg0, %c0_i32, %c0_i32_0 : i32, i32, i32
  }
  func.func @transform_1(%arg0: i32) -> (i32, i32) {
    %c0_i32 = arith.constant 0 : i32
    %c0_i32_0 = arith.constant 0 : i32
    %c0_i32_1 = arith.constant 0 : i32
    return %c0_i32, %c0_i32_0 : i32, i32
  }
  func.func @transform_2(%arg0: i32) -> (i32, i32) {
    %c0_i32 = arith.constant 0 : i32
    %c0_i32_0 = arith.constant 0 : i32
    %c0_i32_1 = arith.constant 0 : i32
    return %c0_i32, %c0_i32_0 : i32, i32
  }
  func.func @transform_3(%arg0: i32) -> (i32, i32) {
    %c0_i32 = arith.constant 0 : i32
    %c0_i32_0 = arith.constant 0 : i32
    %c0_i32_1 = arith.constant 0 : i32
    return %c0_i32, %c0_i32_0 : i32, i32
  }
  func.func @transform_4(%arg0: i32) -> (i32, i32) {
    %c0_i32 = arith.constant 0 : i32
    %c0_i32_0 = arith.constant 0 : i32
    %c0_i32_1 = arith.constant 0 : i32
    return %c0_i32, %c0_i32_0 : i32, i32
  }
  func.func @transform_5(%arg0: i32) -> (i32, i32) {
    %c0_i32 = arith.constant 0 : i32
    %c0_i32_0 = arith.constant 0 : i32
    %c0_i32_1 = arith.constant 0 : i32
    return %c0_i32, %c0_i32_0 : i32, i32
  }
  func.func @transform_6(%arg0: i32) -> (i32, i32) {
    %c0_i32 = arith.constant 0 : i32
    %c0_i32_0 = arith.constant 0 : i32
    %c0_i32_1 = arith.constant 0 : i32
    return %c0_i32, %c0_i32_0 : i32, i32
  }
  func.func @transform_7(%arg0: i32) -> (i32, i32) {
    %c0_i32 = arith.constant 0 : i32
    %c0_i32_0 = arith.constant 0 : i32
    %c0_i32_1 = arith.constant 0 : i32
    return %c0_i32, %c0_i32_0 : i32, i32
  }
  func.func @transform_8(%arg0: i32) -> (i32, i32) {
    %c0_i32 = arith.constant 0 : i32
    %c0_i32_0 = arith.constant 0 : i32
    %c0_i32_1 = arith.constant 0 : i32
    return %c0_i32, %c0_i32_0 : i32, i32
  }
  func.func @transform_9(%arg0: i32) -> (i32, i32) {
    %c0_i32 = arith.constant 0 : i32
    %c0_i32_0 = arith.constant 0 : i32
    %c0_i32_1 = arith.constant 0 : i32
    return %c0_i32, %c0_i32_0 : i32, i32
  }
  func.func @transform_10(%arg0: i32) -> (i32, i32) {
    %c0_i32 = arith.constant 0 : i32
    %c0_i32_0 = arith.constant 0 : i32
    %c0_i32_1 = arith.constant 0 : i32
    return %c0_i32, %c0_i32_0 : i32, i32
  }
  func.func @transform_11(%arg0: i32) -> (i32, i32) {
    %c0_i32 = arith.constant 0 : i32
    %c0_i32_0 = arith.constant 0 : i32
    %c0_i32_1 = arith.constant 0 : i32
    return %c0_i32, %c0_i32_0 : i32, i32
  }
  func.func @transform_12(%arg0: i32) -> (i32, i32) {
    %c0_i32 = arith.constant 0 : i32
    %c0_i32_0 = arith.constant 0 : i32
    %c0_i32_1 = arith.constant 0 : i32
    return %c0_i32, %c0_i32_0 : i32, i32
  }
  func.func @transform_13(%arg0: i32) -> (i32, i32, i32) {
    %c0_i32 = arith.constant 0 : i32
    %c0_i32_0 = arith.constant 0 : i32
    %c0_i32_1 = arith.constant 0 : i32
    return %arg0, %c0_i32, %c0_i32_0 : i32, i32, i32
  }
}

module attributes {stable_mosaic.version = 11 : i64} {
  func.func @_token_performer_kernel(%arg0: i32, %arg1: memref<1x16x288xf32, #tpu.memory_space<vmem>>, %arg2: memref<1x288xf32, #tpu.memory_space<vmem>>, %arg3: memref<1x288xf32, #tpu.memory_space<vmem>>, %arg4: memref<288x128xf32, #tpu.memory_space<vmem>>, %arg5: memref<1x128xf32, #tpu.memory_space<vmem>>, %arg6: memref<32x32xf32, #tpu.memory_space<vmem>>, %arg7: memref<1x32xf32, #tpu.memory_space<vmem>>, %arg8: memref<1x32xf32, #tpu.memory_space<vmem>>, %arg9: memref<1x32xf32, #tpu.memory_space<vmem>>, %arg10: memref<32x32xf32, #tpu.memory_space<vmem>>, %arg11: memref<1x32xf32, #tpu.memory_space<vmem>>, %arg12: memref<32x32xf32, #tpu.memory_space<vmem>>, %arg13: memref<1x32xf32, #tpu.memory_space<vmem>>, %arg14: memref<1x16x32xf32, #tpu.memory_space<vmem>>) attributes {dimension_semantics = [#tpu.dimension_semantics<parallel>], iteration_bounds = array<i64: 2>, scalar_prefetch = 0 : i64, scratch_operands = 0 : i64, tpu.core_type = #tpu.core_type<tc>, window_params = [{transform_indices = @transform_0, window_bounds = array<i64: 1, 16, 288>}, {pipeline_mode = #tpu.pipeline_mode<synchronous>, transform_indices = @transform_1, window_bounds = array<i64: 1, 288>}, {pipeline_mode = #tpu.pipeline_mode<synchronous>, transform_indices = @transform_2, window_bounds = array<i64: 1, 288>}, {pipeline_mode = #tpu.pipeline_mode<synchronous>, transform_indices = @transform_3, window_bounds = array<i64: 288, 128>}, {pipeline_mode = #tpu.pipeline_mode<synchronous>, transform_indices = @transform_4, window_bounds = array<i64: 1, 128>}, {pipeline_mode = #tpu.pipeline_mode<synchronous>, transform_indices = @transform_5, window_bounds = array<i64: 32, 32>}, {pipeline_mode = #tpu.pipeline_mode<synchronous>, transform_indices = @transform_6, window_bounds = array<i64: 1, 32>}, {pipeline_mode = #tpu.pipeline_mode<synchronous>, transform_indices = @transform_7, window_bounds = array<i64: 1, 32>}, {pipeline_mode = #tpu.pipeline_mode<synchronous>, transform_indices = @transform_8, window_bounds = array<i64: 1, 32>}, {pipeline_mode = #tpu.pipeline_mode<synchronous>, transform_indices = @transform_9, window_bounds = array<i64: 32, 32>}, {pipeline_mode = #tpu.pipeline_mode<synchronous>, transform_indices = @transform_10, window_bounds = array<i64: 1, 32>}, {pipeline_mode = #tpu.pipeline_mode<synchronous>, transform_indices = @transform_11, window_bounds = array<i64: 32, 32>}, {pipeline_mode = #tpu.pipeline_mode<synchronous>, transform_indices = @transform_12, window_bounds = array<i64: 1, 32>}, {transform_indices = @transform_13, window_bounds = array<i64: 1, 16, 32>}]} {
    %c0 = arith.constant 0 : index
    %c0_0 = arith.constant 0 : index
    %c0_1 = arith.constant 0 : index
    %0 = vector.load %arg1[%c0, %c0_0, %c0_1] : memref<1x16x288xf32, #tpu.memory_space<vmem>>, vector<1x16x288xf32>
    %1 = vector.shape_cast %0 : vector<1x16x288xf32> to vector<16x288xf32>
    %cst = arith.constant dense<0.000000e+00> : vector<16xf32>
    %2 = vector.multi_reduction <add>, %1, %cst [1] : vector<16x288xf32> to vector<16xf32>
    %3 = vector.shape_cast %2 : vector<16xf32> to vector<16x1xf32>
    %cst_2 = arith.constant 2.880000e+02 : f32
    %4 = vector.broadcast %cst_2 : f32 to vector<16x1xf32>
    %5 = arith.divf %3, %4 : vector<16x1xf32>
    %6 = vector.broadcast %5 : vector<16x1xf32> to vector<16x288xf32>
    %7 = arith.subf %1, %6 : vector<16x288xf32>
    %8 = arith.mulf %7, %7 : vector<16x288xf32>
    %cst_3 = arith.constant dense<0.000000e+00> : vector<16xf32>
    %9 = vector.multi_reduction <add>, %8, %cst_3 [1] : vector<16x288xf32> to vector<16xf32>
    %10 = vector.shape_cast %9 : vector<16xf32> to vector<16x1xf32>
    %cst_4 = arith.constant 2.880000e+02 : f32
    %11 = vector.broadcast %cst_4 : f32 to vector<16x1xf32>
    %12 = arith.divf %10, %11 : vector<16x1xf32>
    %13 = vector.broadcast %5 : vector<16x1xf32> to vector<16x288xf32>
    %14 = arith.subf %1, %13 : vector<16x288xf32>
    %cst_5 = arith.constant 9.99999974E-6 : f32
    %15 = vector.broadcast %cst_5 : f32 to vector<16x1xf32>
    %16 = arith.addf %12, %15 : vector<16x1xf32>
    %17 = math.rsqrt %16 : vector<16x1xf32>
    %18 = vector.broadcast %17 : vector<16x1xf32> to vector<16x288xf32>
    %19 = arith.mulf %14, %18 : vector<16x288xf32>
    %c0_6 = arith.constant 0 : index
    %c0_7 = arith.constant 0 : index
    %20 = vector.load %arg2[%c0_6, %c0_7] : memref<1x288xf32, #tpu.memory_space<vmem>>, vector<1x288xf32>
    %21 = vector.broadcast %20 : vector<1x288xf32> to vector<16x288xf32>
    %22 = arith.mulf %19, %21 : vector<16x288xf32>
    %c0_8 = arith.constant 0 : index
    %c0_9 = arith.constant 0 : index
    %23 = vector.load %arg3[%c0_8, %c0_9] : memref<1x288xf32, #tpu.memory_space<vmem>>, vector<1x288xf32>
    %24 = vector.broadcast %23 : vector<1x288xf32> to vector<16x288xf32>
    %25 = arith.addf %22, %24 : vector<16x288xf32>
    %c0_10 = arith.constant 0 : index
    %c0_11 = arith.constant 0 : index
    %26 = vector.load %arg4[%c0_10, %c0_11] : memref<288x128xf32, #tpu.memory_space<vmem>>, vector<288x128xf32>
    %cst_12 = arith.constant dense<0.000000e+00> : vector<16x128xf32>
    %27 = tpu.matmul %25, %26, %cst_12 {dimension_numbers = #tpu.dot_dimension_numbers<[1], [0], [0], [1], [0, 0, 1, 1], [], []>} : vector<16x288xf32>, vector<288x128xf32>, vector<16x128xf32> -> vector<16x128xf32>
    %c0_13 = arith.constant 0 : index
    %c0_14 = arith.constant 0 : index
    %28 = vector.load %arg5[%c0_13, %c0_14] : memref<1x128xf32, #tpu.memory_space<vmem>>, vector<1x128xf32>
    %29 = vector.broadcast %28 : vector<1x128xf32> to vector<16x128xf32>
    %30 = arith.addf %27, %29 : vector<16x128xf32>
    %31 = vector.extract_strided_slice %30 {offsets = [0, 0], sizes = [16, 32], strides = [1, 1]} : vector<16x128xf32> to vector<16x32xf32>
    %32 = vector.extract_strided_slice %30 {offsets = [0, 32], sizes = [16, 32], strides = [1, 1]} : vector<16x128xf32> to vector<16x32xf32>
    %33 = vector.extract_strided_slice %30 {offsets = [0, 64], sizes = [16, 32], strides = [1, 1]} : vector<16x128xf32> to vector<16x32xf32>
    %34 = vector.extract_strided_slice %30 {offsets = [0, 96], sizes = [16, 16], strides = [1, 1]} : vector<16x128xf32> to vector<16x16xf32>
    %35 = vector.extract_strided_slice %30 {offsets = [0, 112], sizes = [16, 16], strides = [1, 1]} : vector<16x128xf32> to vector<16x16xf32>
    %36 = arith.mulf %31, %31 : vector<16x32xf32>
    %cst_15 = arith.constant dense<0.000000e+00> : vector<16xf32>
    %37 = vector.multi_reduction <add>, %36, %cst_15 [1] : vector<16x32xf32> to vector<16xf32>
    %38 = vector.shape_cast %37 : vector<16xf32> to vector<16x1xf32>
    %cst_16 = arith.constant 5.000000e-01 : f32
    %39 = vector.broadcast %cst_16 : f32 to vector<16x1xf32>
    %40 = arith.mulf %39, %38 : vector<16x1xf32>
    %41 = vector.broadcast %40 : vector<16x1xf32> to vector<16x16xf32>
    %42 = arith.subf %34, %41 : vector<16x16xf32>
    %43 = math.exp %42 : vector<16x16xf32>
    %cst_17 = arith.constant 2.500000e-01 : f32
    %44 = vector.broadcast %cst_17 : f32 to vector<16x16xf32>
    %45 = arith.mulf %43, %44 : vector<16x16xf32>
    %46 = arith.mulf %32, %32 : vector<16x32xf32>
    %cst_18 = arith.constant dense<0.000000e+00> : vector<16xf32>
    %47 = vector.multi_reduction <add>, %46, %cst_18 [1] : vector<16x32xf32> to vector<16xf32>
    %48 = vector.shape_cast %47 : vector<16xf32> to vector<16x1xf32>
    %cst_19 = arith.constant 5.000000e-01 : f32
    %49 = vector.broadcast %cst_19 : f32 to vector<16x1xf32>
    %50 = arith.mulf %49, %48 : vector<16x1xf32>
    %51 = vector.broadcast %50 : vector<16x1xf32> to vector<16x16xf32>
    %52 = arith.subf %35, %51 : vector<16x16xf32>
    %53 = math.exp %52 : vector<16x16xf32>
    %cst_20 = arith.constant 2.500000e-01 : f32
    %54 = vector.broadcast %cst_20 : f32 to vector<16x16xf32>
    %55 = arith.mulf %53, %54 : vector<16x16xf32>
    %cst_21 = arith.constant dense<0.000000e+00> : vector<16xf32>
    %56 = vector.multi_reduction <add>, %45, %cst_21 [0] : vector<16x16xf32> to vector<16xf32>
    %57 = vector.shape_cast %56 : vector<16xf32> to vector<1x16xf32>
    %58 = vector.broadcast %57 : vector<1x16xf32> to vector<16x16xf32>
    %59 = arith.mulf %55, %58 : vector<16x16xf32>
    %cst_22 = arith.constant dense<0.000000e+00> : vector<16xf32>
    %60 = vector.multi_reduction <add>, %59, %cst_22 [1] : vector<16x16xf32> to vector<16xf32>
    %61 = vector.shape_cast %60 : vector<16xf32> to vector<16x1xf32>
    %cst_23 = arith.constant dense<0.000000e+00> : vector<16x32xf32>
    %62 = tpu.matmul %45, %33, %cst_23 {dimension_numbers = #tpu.dot_dimension_numbers<[0], [0], [1], [1], [0, 1, 1, 1], [], []>} : vector<16x16xf32>, vector<16x32xf32>, vector<16x32xf32> -> vector<16x32xf32>
    %cst_24 = arith.constant dense<0.000000e+00> : vector<16x32xf32>
    %63 = tpu.matmul %55, %62, %cst_24 {dimension_numbers = #tpu.dot_dimension_numbers<[1], [0], [0], [1], [0, 0, 1, 1], [], []>} : vector<16x16xf32>, vector<16x32xf32>, vector<16x32xf32> -> vector<16x32xf32>
    %cst_25 = arith.constant 9.99999993E-9 : f32
    %64 = vector.broadcast %cst_25 : f32 to vector<16x1xf32>
    %65 = arith.addf %61, %64 : vector<16x1xf32>
    %66 = tpu.reciprocal %65 : vector<16x1xf32> -> vector<16x1xf32>
    %67 = vector.broadcast %66 : vector<16x1xf32> to vector<16x32xf32>
    %68 = arith.mulf %63, %67 : vector<16x32xf32>
    %c0_26 = arith.constant 0 : index
    %c0_27 = arith.constant 0 : index
    %69 = vector.load %arg6[%c0_26, %c0_27] : memref<32x32xf32, #tpu.memory_space<vmem>>, vector<32x32xf32>
    %cst_28 = arith.constant dense<0.000000e+00> : vector<16x32xf32>
    %70 = tpu.matmul %68, %69, %cst_28 {dimension_numbers = #tpu.dot_dimension_numbers<[1], [0], [0], [1], [0, 0, 1, 1], [], []>} : vector<16x32xf32>, vector<32x32xf32>, vector<16x32xf32> -> vector<16x32xf32>
    %71 = arith.addf %33, %70 : vector<16x32xf32>
    %c0_29 = arith.constant 0 : index
    %c0_30 = arith.constant 0 : index
    %72 = vector.load %arg7[%c0_29, %c0_30] : memref<1x32xf32, #tpu.memory_space<vmem>>, vector<1x32xf32>
    %73 = vector.broadcast %72 : vector<1x32xf32> to vector<16x32xf32>
    %74 = arith.addf %71, %73 : vector<16x32xf32>
    %cst_31 = arith.constant dense<0.000000e+00> : vector<16xf32>
    %75 = vector.multi_reduction <add>, %74, %cst_31 [1] : vector<16x32xf32> to vector<16xf32>
    %76 = vector.shape_cast %75 : vector<16xf32> to vector<16x1xf32>
    %cst_32 = arith.constant 3.200000e+01 : f32
    %77 = vector.broadcast %cst_32 : f32 to vector<16x1xf32>
    %78 = arith.divf %76, %77 : vector<16x1xf32>
    %79 = vector.broadcast %78 : vector<16x1xf32> to vector<16x32xf32>
    %80 = arith.subf %74, %79 : vector<16x32xf32>
    %81 = arith.mulf %80, %80 : vector<16x32xf32>
    %cst_33 = arith.constant dense<0.000000e+00> : vector<16xf32>
    %82 = vector.multi_reduction <add>, %81, %cst_33 [1] : vector<16x32xf32> to vector<16xf32>
    %83 = vector.shape_cast %82 : vector<16xf32> to vector<16x1xf32>
    %cst_34 = arith.constant 3.200000e+01 : f32
    %84 = vector.broadcast %cst_34 : f32 to vector<16x1xf32>
    %85 = arith.divf %83, %84 : vector<16x1xf32>
    %86 = vector.broadcast %78 : vector<16x1xf32> to vector<16x32xf32>
    %87 = arith.subf %74, %86 : vector<16x32xf32>
    %cst_35 = arith.constant 9.99999974E-6 : f32
    %88 = vector.broadcast %cst_35 : f32 to vector<16x1xf32>
    %89 = arith.addf %85, %88 : vector<16x1xf32>
    %90 = math.rsqrt %89 : vector<16x1xf32>
    %91 = vector.broadcast %90 : vector<16x1xf32> to vector<16x32xf32>
    %92 = arith.mulf %87, %91 : vector<16x32xf32>
    %c0_36 = arith.constant 0 : index
    %c0_37 = arith.constant 0 : index
    %93 = vector.load %arg8[%c0_36, %c0_37] : memref<1x32xf32, #tpu.memory_space<vmem>>, vector<1x32xf32>
    %94 = vector.broadcast %93 : vector<1x32xf32> to vector<16x32xf32>
    %95 = arith.mulf %92, %94 : vector<16x32xf32>
    %c0_38 = arith.constant 0 : index
    %c0_39 = arith.constant 0 : index
    %96 = vector.load %arg9[%c0_38, %c0_39] : memref<1x32xf32, #tpu.memory_space<vmem>>, vector<1x32xf32>
    %97 = vector.broadcast %96 : vector<1x32xf32> to vector<16x32xf32>
    %98 = arith.addf %95, %97 : vector<16x32xf32>
    %c0_40 = arith.constant 0 : index
    %c0_41 = arith.constant 0 : index
    %99 = vector.load %arg10[%c0_40, %c0_41] : memref<32x32xf32, #tpu.memory_space<vmem>>, vector<32x32xf32>
    %cst_42 = arith.constant dense<0.000000e+00> : vector<16x32xf32>
    %100 = tpu.matmul %98, %99, %cst_42 {dimension_numbers = #tpu.dot_dimension_numbers<[1], [0], [0], [1], [0, 0, 1, 1], [], []>} : vector<16x32xf32>, vector<32x32xf32>, vector<16x32xf32> -> vector<16x32xf32>
    %c0_43 = arith.constant 0 : index
    %c0_44 = arith.constant 0 : index
    %101 = vector.load %arg11[%c0_43, %c0_44] : memref<1x32xf32, #tpu.memory_space<vmem>>, vector<1x32xf32>
    %102 = vector.broadcast %101 : vector<1x32xf32> to vector<16x32xf32>
    %103 = arith.addf %100, %102 : vector<16x32xf32>
    %cst_45 = arith.constant 5.000000e-01 : f32
    %104 = vector.broadcast %cst_45 : f32 to vector<16x32xf32>
    %105 = arith.mulf %104, %103 : vector<16x32xf32>
    %cst_46 = arith.constant 0.707106769 : f32
    %106 = vector.broadcast %cst_46 : f32 to vector<16x32xf32>
    %107 = arith.mulf %103, %106 : vector<16x32xf32>
    %108 = math.erf %107 : vector<16x32xf32>
    %cst_47 = arith.constant 1.000000e+00 : f32
    %109 = vector.broadcast %cst_47 : f32 to vector<16x32xf32>
    %110 = arith.addf %109, %108 : vector<16x32xf32>
    %111 = arith.mulf %105, %110 : vector<16x32xf32>
    %c0_48 = arith.constant 0 : index
    %c0_49 = arith.constant 0 : index
    %112 = vector.load %arg12[%c0_48, %c0_49] : memref<32x32xf32, #tpu.memory_space<vmem>>, vector<32x32xf32>
    %cst_50 = arith.constant dense<0.000000e+00> : vector<16x32xf32>
    %113 = tpu.matmul %111, %112, %cst_50 {dimension_numbers = #tpu.dot_dimension_numbers<[1], [0], [0], [1], [0, 0, 1, 1], [], []>} : vector<16x32xf32>, vector<32x32xf32>, vector<16x32xf32> -> vector<16x32xf32>
    %c0_51 = arith.constant 0 : index
    %c0_52 = arith.constant 0 : index
    %114 = vector.load %arg13[%c0_51, %c0_52] : memref<1x32xf32, #tpu.memory_space<vmem>>, vector<1x32xf32>
    %115 = vector.broadcast %114 : vector<1x32xf32> to vector<16x32xf32>
    %116 = arith.addf %113, %115 : vector<16x32xf32>
    %117 = arith.addf %74, %116 : vector<16x32xf32>
    %c0_53 = arith.constant 0 : index
    %c0_54 = arith.constant 0 : index
    %c0_55 = arith.constant 0 : index
    %118 = vector.load %arg14[%c0_53, %c0_54, %c0_55] : memref<1x16x32xf32, #tpu.memory_space<vmem>>, vector<1x16x32xf32>
    %119 = vector.shape_cast %118 : vector<1x16x32xf32> to vector<16x32xf32>
    %120 = vector.shape_cast %117 : vector<16x32xf32> to vector<1x16x32xf32>
    tpu.vector_store %arg14[%c0_53, %c0_54, %c0_55], %120 {strides = array<i32>} : memref<1x16x32xf32, #tpu.memory_space<vmem>>, vector<1x16x32xf32>,
    return
  }
  func.func @transform_0(%arg0: i32) -> (i32, i32, i32) {
    %c0_i32 = arith.constant 0 : i32
    %c0_i32_0 = arith.constant 0 : i32
    %c0_i32_1 = arith.constant 0 : i32
    return %arg0, %c0_i32, %c0_i32_0 : i32, i32, i32
  }
  func.func @transform_1(%arg0: i32) -> (i32, i32) {
    %c0_i32 = arith.constant 0 : i32
    %c0_i32_0 = arith.constant 0 : i32
    %c0_i32_1 = arith.constant 0 : i32
    return %c0_i32, %c0_i32_0 : i32, i32
  }
  func.func @transform_2(%arg0: i32) -> (i32, i32) {
    %c0_i32 = arith.constant 0 : i32
    %c0_i32_0 = arith.constant 0 : i32
    %c0_i32_1 = arith.constant 0 : i32
    return %c0_i32, %c0_i32_0 : i32, i32
  }
  func.func @transform_3(%arg0: i32) -> (i32, i32) {
    %c0_i32 = arith.constant 0 : i32
    %c0_i32_0 = arith.constant 0 : i32
    %c0_i32_1 = arith.constant 0 : i32
    return %c0_i32, %c0_i32_0 : i32, i32
  }
  func.func @transform_4(%arg0: i32) -> (i32, i32) {
    %c0_i32 = arith.constant 0 : i32
    %c0_i32_0 = arith.constant 0 : i32
    %c0_i32_1 = arith.constant 0 : i32
    return %c0_i32, %c0_i32_0 : i32, i32
  }
  func.func @transform_5(%arg0: i32) -> (i32, i32) {
    %c0_i32 = arith.constant 0 : i32
    %c0_i32_0 = arith.constant 0 : i32
    %c0_i32_1 = arith.constant 0 : i32
    return %c0_i32, %c0_i32_0 : i32, i32
  }
  func.func @transform_6(%arg0: i32) -> (i32, i32) {
    %c0_i32 = arith.constant 0 : i32
    %c0_i32_0 = arith.constant 0 : i32
    %c0_i32_1 = arith.constant 0 : i32
    return %c0_i32, %c0_i32_0 : i32, i32
  }
  func.func @transform_7(%arg0: i32) -> (i32, i32) {
    %c0_i32 = arith.constant 0 : i32
    %c0_i32_0 = arith.constant 0 : i32
    %c0_i32_1 = arith.constant 0 : i32
    return %c0_i32, %c0_i32_0 : i32, i32
  }
  func.func @transform_8(%arg0: i32) -> (i32, i32) {
    %c0_i32 = arith.constant 0 : i32
    %c0_i32_0 = arith.constant 0 : i32
    %c0_i32_1 = arith.constant 0 : i32
    return %c0_i32, %c0_i32_0 : i32, i32
  }
  func.func @transform_9(%arg0: i32) -> (i32, i32) {
    %c0_i32 = arith.constant 0 : i32
    %c0_i32_0 = arith.constant 0 : i32
    %c0_i32_1 = arith.constant 0 : i32
    return %c0_i32, %c0_i32_0 : i32, i32
  }
  func.func @transform_10(%arg0: i32) -> (i32, i32) {
    %c0_i32 = arith.constant 0 : i32
    %c0_i32_0 = arith.constant 0 : i32
    %c0_i32_1 = arith.constant 0 : i32
    return %c0_i32, %c0_i32_0 : i32, i32
  }
  func.func @transform_11(%arg0: i32) -> (i32, i32) {
    %c0_i32 = arith.constant 0 : i32
    %c0_i32_0 = arith.constant 0 : i32
    %c0_i32_1 = arith.constant 0 : i32
    return %c0_i32, %c0_i32_0 : i32, i32
  }
  func.func @transform_12(%arg0: i32) -> (i32, i32) {
    %c0_i32 = arith.constant 0 : i32
    %c0_i32_0 = arith.constant 0 : i32
    %c0_i32_1 = arith.constant 0 : i32
    return %c0_i32, %c0_i32_0 : i32, i32
  }
  func.func @transform_13(%arg0: i32) -> (i32, i32, i32) {
    %c0_i32 = arith.constant 0 : i32
    %c0_i32_0 = arith.constant 0 : i32
    %c0_i32_1 = arith.constant 0 : i32
    return %arg0, %c0_i32, %c0_i32_0 : i32, i32, i32
  }
}

module attributes {stable_mosaic.version = 11 : i64} {
  func.func @kernel(%arg0: i32, %arg1: memref<16x288xf32, #tpu.memory_space<vmem>>, %arg2: memref<288x64xf32, #tpu.memory_space<vmem>>, %arg3: memref<1x64xf32, #tpu.memory_space<vmem>>, %arg4: memref<16x64xf32, #tpu.memory_space<vmem>>) attributes {dimension_semantics = [#tpu.dimension_semantics<parallel>], iteration_bounds = array<i64: 2>, scalar_prefetch = 0 : i64, scratch_operands = 0 : i64, tpu.core_type = #tpu.core_type<tc>, window_params = [{transform_indices = @transform_0, window_bounds = array<i64: 16, 288>}, {pipeline_mode = #tpu.pipeline_mode<synchronous>, transform_indices = @transform_1, window_bounds = array<i64: 288, 64>}, {pipeline_mode = #tpu.pipeline_mode<synchronous>, transform_indices = @transform_2, window_bounds = array<i64: 1, 64>}, {transform_indices = @transform_3, window_bounds = array<i64: 16, 64>}]} {
    %c0 = arith.constant 0 : index
    %c0_0 = arith.constant 0 : index
    %0 = vector.load %arg1[%c0, %c0_0] : memref<16x288xf32, #tpu.memory_space<vmem>>, vector<16x288xf32>
    %c0_1 = arith.constant 0 : index
    %c0_2 = arith.constant 0 : index
    %1 = vector.load %arg2[%c0_1, %c0_2] : memref<288x64xf32, #tpu.memory_space<vmem>>, vector<288x64xf32>
    %cst = arith.constant dense<0.000000e+00> : vector<16x64xf32>
    %2 = tpu.matmul %0, %1, %cst {dimension_numbers = #tpu.dot_dimension_numbers<[1], [0], [0], [1], [0, 0, 1, 1], [], []>} : vector<16x288xf32>, vector<288x64xf32>, vector<16x64xf32> -> vector<16x64xf32>
    %c0_3 = arith.constant 0 : index
    %c0_4 = arith.constant 0 : index
    %3 = vector.load %arg3[%c0_3, %c0_4] : memref<1x64xf32, #tpu.memory_space<vmem>>, vector<1x64xf32>
    %4 = vector.broadcast %3 : vector<1x64xf32> to vector<16x64xf32>
    %5 = arith.addf %2, %4 : vector<16x64xf32>
    %c0_5 = arith.constant 0 : index
    %c0_6 = arith.constant 0 : index
    %6 = vector.load %arg4[%c0_5, %c0_6] : memref<16x64xf32, #tpu.memory_space<vmem>>, vector<16x64xf32>
    tpu.vector_store %arg4[%c0_5, %c0_6], %5 {strides = array<i32>} : memref<16x64xf32, #tpu.memory_space<vmem>>, vector<16x64xf32>,
    return
  }
  func.func @transform_0(%arg0: i32) -> (i32, i32) {
    %c0_i32 = arith.constant 0 : i32
    %c0_i32_0 = arith.constant 0 : i32
    return %arg0, %c0_i32 : i32, i32
  }
  func.func @transform_1(%arg0: i32) -> (i32, i32) {
    %c0_i32 = arith.constant 0 : i32
    %c0_i32_0 = arith.constant 0 : i32
    %c0_i32_1 = arith.constant 0 : i32
    return %c0_i32, %c0_i32_0 : i32, i32
  }
  func.func @transform_2(%arg0: i32) -> (i32, i32) {
    %c0_i32 = arith.constant 0 : i32
    %c0_i32_0 = arith.constant 0 : i32
    %c0_i32_1 = arith.constant 0 : i32
    return %c0_i32, %c0_i32_0 : i32, i32
  }
  func.func @transform_3(%arg0: i32) -> (i32, i32) {
    %c0_i32 = arith.constant 0 : i32
    %c0_i32_0 = arith.constant 0 : i32
    return %arg0, %c0_i32 : i32, i32
  }
}

</mosaic_0001>

<llo_original>
// kernel: t2t_forward.3
$region0: #{t2t_forward.3}
  #allocation0 [shape = 'u32[]', space=smem, size = 0x4, offset = 0x4, fixed_abs, tag = 'smem constant byte address 0x4 - core index']
  #allocation1 [shape = 'u32[72,128]{1,0:T(1,128)}', space=vmem, size = 0x9000, scoped, tag = 'internal scratch']
  %s0 = inlined_call_operand.vmem [shape: f32[2,64,27], index: 0, kind: input, shape index: {}]
  %s1 = inlined_call_operand.vmem [shape: f32[1,27], index: 1, kind: input, shape index: {}]
  %s2 = inlined_call_operand.vmem [shape: f32[1,27], index: 2, kind: input, shape index: {}]
  %s3 = inlined_call_operand.vmem [shape: f32[27,128], index: 3, kind: input, shape index: {}]
  %s4 = inlined_call_operand.vmem [shape: f32[1,128], index: 4, kind: input, shape index: {}]
  %s5 = inlined_call_operand.vmem [shape: f32[32,32], index: 5, kind: input, shape index: {}]
  %s6 = inlined_call_operand.vmem [shape: f32[1,32], index: 6, kind: input, shape index: {}]
  %s7 = inlined_call_operand.vmem [shape: f32[1,32], index: 7, kind: input, shape index: {}]
  %s8 = inlined_call_operand.vmem [shape: f32[1,32], index: 8, kind: input, shape index: {}]
  %s9 = inlined_call_operand.vmem [shape: f32[32,32], index: 9, kind: input, shape index: {}]
  %s10 = inlined_call_operand.vmem [shape: f32[1,32], index: 10, kind: input, shape index: {}]
  %s11 = inlined_call_operand.vmem [shape: f32[32,32], index: 11, kind: input, shape index: {}]
  %s12 = inlined_call_operand.vmem [shape: f32[1,32], index: 12, kind: input, shape index: {}]
  %s13 = inlined_call_operand.vmem [shape: f32[2,64,32], index: 13, kind: output, shape index: {}]
  %s14 = sld [smem:[#allocation0]]
  $region85: #{t2t_forward.3} parent=0
    _
  %s16 = ssub.s32 1, %s14
  %s17 = scalar_select 0, %s16, %s14
  loop: start=0, step=1, limit=4
  $region2: #{t2t_forward.3} parent=0 // loop_pre_header
    _
  $region3: #{t2t_forward.3} parent=0 // loop_header
    %s19 = sphi 0, %s23
    %p20 = scmp.ge.s32.totalorder %s19, 4
    %s29 = sphi 0, %s31
    %s32 = sphi 0, %s29
    %s33 = sphi 0, %s32
    %s49 = sphi 0, %s33
    %s53 = sphi 0, %s53
    %s55 = sphi 0, %s53
    %s56 = sphi 0, %s55
    %s70 = sphi 0, %s56
    %s74 = sphi 0, %s74
    %s76 = sphi 0, %s74
    %s77 = sphi 0, %s76
    %s91 = sphi 0, %s77
    %s95 = sphi 0, %s95
    %s97 = sphi 0, %s95
    %s98 = sphi 0, %s97
    %s112 = sphi 0, %s98
    %s116 = sphi 0, %s116
    %s118 = sphi 0, %s116
    %s119 = sphi 0, %s118
    %s133 = sphi 0, %s119
    %s137 = sphi 0, %s137
    %s139 = sphi 0, %s137
    %s140 = sphi 0, %s139
    %s154 = sphi 0, %s140
    %s158 = sphi 0, %s158
    %s160 = sphi 0, %s158
    %s161 = sphi 0, %s160
    %s175 = sphi 0, %s161
    %s179 = sphi 0, %s179
    %s181 = sphi 0, %s179
    %s182 = sphi 0, %s181
    %s196 = sphi 0, %s182
    %s200 = sphi 0, %s200
    %s202 = sphi 0, %s200
    %s203 = sphi 0, %s202
    %s217 = sphi 0, %s203
    %s221 = sphi 0, %s221
    %s223 = sphi 0, %s221
    %s224 = sphi 0, %s223
    %s238 = sphi 0, %s224
    %s242 = sphi 0, %s242
    %s244 = sphi 0, %s242
    %s245 = sphi 0, %s244
    %s259 = sphi 0, %s245
    %s263 = sphi 0, %s263
    %s265 = sphi 0, %s263
    %s266 = sphi 0, %s265
    %s280 = sphi 0, %s266
    %s284 = sphi 0, %s284
    %s286 = sphi 0, %s284
    %s287 = sphi 0, %s286
    %s301 = sphi 0, %s287
    %s307 = sphi 0, %s309
    %s310 = sphi 0, %s307
    %s311 = sphi 0, %s310
    %s327 = sphi 0, %s311
  $region4: #{t2t_forward.3} parent=0 // loop_header_branch
    %22 = sbr.rel (%p20) target = $region8
  $region5: #{t2t_forward.3} parent=0 // loop_body
    %s24 = ssub.s32 %s19, 1
    %s25 = ssub.s32 %s19, 2
    %s26 = sadd.s32 %s19, 1
    %s27 = ssub.s32 %s19, %s26
    %p28 = scmp.eq.s32.totalorder %s27, 0
    %s30 = sadd.s32 %s29, 1
    %s31 = scalar_select %p28, %s29, %s30
    %p34 = pneg %p28
    %p35 = scmp.eq.s32.totalorder %s19, 1
    %p36 = por %p34, %p35
    %p37 = scmp.ne.s32.totalorder %s29, %s32
    %p38 = scmp.eq.s32.totalorder %s19, 0
    %p39 = por %p37, %p38
    %p40 = scmp.ne.s32.totalorder %s29, %s32
    %p41 = scmp.eq.s32.totalorder %s24, 1
    %p42 = por %p40, %p41
    %p43 = scmp.ne.s32.totalorder %s32, %s33
    %p44 = scmp.eq.s32.totalorder %s24, 0
    %p45 = por %p43, %p44
    %p46 = scmp.ne.s32.totalorder %s32, %s33
    %p47 = scmp.eq.s32.totalorder %s25, 1
    %p48 = por %p46, %p47
    %p50 = scmp.ne.s32.totalorder %s33, %s49
    %p51 = scmp.eq.s32.totalorder %s25, 0
    %p52 = por %p50, %p51
    %s54 = sadd.s32 %s53, 1
    %p57 = scmp.eq.s32.totalorder %s19, 1
    %p58 = scmp.ne.s32.totalorder %s53, %s55
    %p59 = scmp.eq.s32.totalorder %s19, 0
    %p60 = por %p58, %p59
    %p61 = scmp.ne.s32.totalorder %s53, %s55
    %p62 = scmp.eq.s32.totalorder %s24, 1
    %p63 = por %p61, %p62
    %p64 = scmp.ne.s32.totalorder %s55, %s56
    %p65 = scmp.eq.s32.totalorder %s24, 0
    %p66 = por %p64, %p65
    %p67 = scmp.ne.s32.totalorder %s55, %s56
    %p68 = scmp.eq.s32.totalorder %s25, 1
    %p69 = por %p67, %p68
    %p71 = scmp.ne.s32.totalorder %s56, %s70
    %p72 = scmp.eq.s32.totalorder %s25, 0
    %p73 = por %p71, %p72
    %s75 = sadd.s32 %s74, 1
    %p78 = scmp.eq.s32.totalorder %s19, 1
    %p79 = scmp.ne.s32.totalorder %s74, %s76
    %p80 = scmp.eq.s32.totalorder %s19, 0
    %p81 = por %p79, %p80
    %p82 = scmp.ne.s32.totalorder %s74, %s76
    %p83 = scmp.eq.s32.totalorder %s24, 1
    %p84 = por %p82, %p83
    %p85 = scmp.ne.s32.totalorder %s76, %s77
    %p86 = scmp.eq.s32.totalorder %s24, 0
    %p87 = por %p85, %p86
    %p88 = scmp.ne.s32.totalorder %s76, %s77
    %p89 = scmp.eq.s32.totalorder %s25, 1
    %p90 = por %p88, %p89
    %p92 = scmp.ne.s32.totalorder %s77, %s91
    %p93 = scmp.eq.s32.totalorder %s25, 0
    %p94 = por %p92, %p93
    %s96 = sadd.s32 %s95, 1
    %p99 = scmp.eq.s32.totalorder %s19, 1
    %p100 = scmp.ne.s32.totalorder %s95, %s97
    %p101 = scmp.eq.s32.totalorder %s19, 0
    %p102 = por %p100, %p101
    %p103 = scmp.ne.s32.totalorder %s95, %s97
    %p104 = scmp.eq.s32.totalorder %s24, 1
    %p105 = por %p103, %p104
    %p106 = scmp.ne.s32.totalorder %s97, %s98
    %p107 = scmp.eq.s32.totalorder %s24, 0
    %p108 = por %p106, %p107
    %p109 = scmp.ne.s32.totalorder %s97, %s98
    %p110 = scmp.eq.s32.totalorder %s25, 1
    %p111 = por %p109, %p110
    %p113 = scmp.ne.s32.totalorder %s98, %s112
    %p114 = scmp.eq.s32.totalorder %s25, 0
    %p115 = por %p113, %p114
    %s117 = sadd.s32 %s116, 1
    %p120 = scmp.eq.s32.totalorder %s19, 1
    %p121 = scmp.ne.s32.totalorder %s116, %s118
    %p122 = scmp.eq.s32.totalorder %s19, 0
    %p123 = por %p121, %p122
    %p124 = scmp.ne.s32.totalorder %s116, %s118
    %p125 = scmp.eq.s32.totalorder %s24, 1
    %p126 = por %p124, %p125
    %p127 = scmp.ne.s32.totalorder %s118, %s119
    %p128 = scmp.eq.s32.totalorder %s24, 0
    %p129 = por %p127, %p128
    %p130 = scmp.ne.s32.totalorder %s118, %s119
    %p131 = scmp.eq.s32.totalorder %s25, 1
    %p132 = por %p130, %p131
    %p134 = scmp.ne.s32.totalorder %s119, %s133
    %p135 = scmp.eq.s32.totalorder %s25, 0
    %p136 = por %p134, %p135
    %s138 = sadd.s32 %s137, 1
    %p141 = scmp.eq.s32.totalorder %s19, 1
    %p142 = scmp.ne.s32.totalorder %s137, %s139
    %p143 = scmp.eq.s32.totalorder %s19, 0
    %p144 = por %p142, %p143
    %p145 = scmp.ne.s32.totalorder %s137, %s139
    %p146 = scmp.eq.s32.totalorder %s24, 1
    %p147 = por %p145, %p146
    %p148 = scmp.ne.s32.totalorder %s139, %s140
    %p149 = scmp.eq.s32.totalorder %s24, 0
    %p150 = por %p148, %p149
    %p151 = scmp.ne.s32.totalorder %s139, %s140
    %p152 = scmp.eq.s32.totalorder %s25, 1
    %p153 = por %p151, %p152
    %p155 = scmp.ne.s32.totalorder %s140, %s154
    %p156 = scmp.eq.s32.totalorder %s25, 0
    %p157 = por %p155, %p156
    %s159 = sadd.s32 %s158, 1
    %p162 = scmp.eq.s32.totalorder %s19, 1
    %p163 = scmp.ne.s32.totalorder %s158, %s160
    %p164 = scmp.eq.s32.totalorder %s19, 0
    %p165 = por %p163, %p164
    %p166 = scmp.ne.s32.totalorder %s158, %s160
    %p167 = scmp.eq.s32.totalorder %s24, 1
    %p168 = por %p166, %p167
    %p169 = scmp.ne.s32.totalorder %s160, %s161
    %p170 = scmp.eq.s32.totalorder %s24, 0
    %p171 = por %p169, %p170
    %p172 = scmp.ne.s32.totalorder %s160, %s161
    %p173 = scmp.eq.s32.totalorder %s25, 1
    %p174 = por %p172, %p173
    %p176 = scmp.ne.s32.totalorder %s161, %s175
    %p177 = scmp.eq.s32.totalorder %s25, 0
    %p178 = por %p176, %p177
    %s180 = sadd.s32 %s179, 1
    %p183 = scmp.eq.s32.totalorder %s19, 1
    %p184 = scmp.ne.s32.totalorder %s179, %s181
    %p185 = scmp.eq.s32.totalorder %s19, 0
    %p186 = por %p184, %p185
    %p187 = scmp.ne.s32.totalorder %s179, %s181
    %p188 = scmp.eq.s32.totalorder %s24, 1
    %p189 = por %p187, %p188
    %p190 = scmp.ne.s32.totalorder %s181, %s182
    %p191 = scmp.eq.s32.totalorder %s24, 0
    %p192 = por %p190, %p191
    %p193 = scmp.ne.s32.totalorder %s181, %s182
    %p194 = scmp.eq.s32.totalorder %s25, 1
    %p195 = por %p193, %p194
    %p197 = scmp.ne.s32.totalorder %s182, %s196
    %p198 = scmp.eq.s32.totalorder %s25, 0
    %p199 = por %p197, %p198
    %s201 = sadd.s32 %s200, 1
    %p204 = scmp.eq.s32.totalorder %s19, 1
    %p205 = scmp.ne.s32.totalorder %s200, %s202
    %p206 = scmp.eq.s32.totalorder %s19, 0
    %p207 = por %p205, %p206
    %p208 = scmp.ne.s32.totalorder %s200, %s202
    %p209 = scmp.eq.s32.totalorder %s24, 1
    %p210 = por %p208, %p209
    %p211 = scmp.ne.s32.totalorder %s202, %s203
    %p212 = scmp.eq.s32.totalorder %s24, 0
    %p213 = por %p211, %p212
    %p214 = scmp.ne.s32.totalorder %s202, %s203
    %p215 = scmp.eq.s32.totalorder %s25, 1
    %p216 = por %p214, %p215
    %p218 = scmp.ne.s32.totalorder %s203, %s217
    %p219 = scmp.eq.s32.totalorder %s25, 0
    %p220 = por %p218, %p219
    %s222 = sadd.s32 %s221, 1
    %p225 = scmp.eq.s32.totalorder %s19, 1
    %p226 = scmp.ne.s32.totalorder %s221, %s223
    %p227 = scmp.eq.s32.totalorder %s19, 0
    %p228 = por %p226, %p227
    %p229 = scmp.ne.s32.totalorder %s221, %s223
    %p230 = scmp.eq.s32.totalorder %s24, 1
    %p231 = por %p229, %p230
    %p232 = scmp.ne.s32.totalorder %s223, %s224
    %p233 = scmp.eq.s32.totalorder %s24, 0
    %p234 = por %p232, %p233
    %p235 = scmp.ne.s32.totalorder %s223, %s224
    %p236 = scmp.eq.s32.totalorder %s25, 1
    %p237 = por %p235, %p236
    %p239 = scmp.ne.s32.totalorder %s224, %s238
    %p240 = scmp.eq.s32.totalorder %s25, 0
    %p241 = por %p239, %p240
    %s243 = sadd.s32 %s242, 1
    %p246 = scmp.eq.s32.totalorder %s19, 1
    %p247 = scmp.ne.s32.totalorder %s242, %s244
    %p248 = scmp.eq.s32.totalorder %s19, 0
    %p249 = por %p247, %p248
    %p250 = scmp.ne.s32.totalorder %s242, %s244
    %p251 = scmp.eq.s32.totalorder %s24, 1
    %p252 = por %p250, %p251
    %p253 = scmp.ne.s32.totalorder %s244, %s245
    %p254 = scmp.eq.s32.totalorder %s24, 0
    %p255 = por %p253, %p254
    %p256 = scmp.ne.s32.totalorder %s244, %s245
    %p257 = scmp.eq.s32.totalorder %s25, 1
    %p258 = por %p256, %p257
    %p260 = scmp.ne.s32.totalorder %s245, %s259
    %p261 = scmp.eq.s32.totalorder %s25, 0
    %p262 = por %p260, %p261
    %s264 = sadd.s32 %s263, 1
    %p267 = scmp.eq.s32.totalorder %s19, 1
    %p268 = scmp.ne.s32.totalorder %s263, %s265
    %p269 = scmp.eq.s32.totalorder %s19, 0
    %p270 = por %p268, %p269
    %p271 = scmp.ne.s32.totalorder %s263, %s265
    %p272 = scmp.eq.s32.totalorder %s24, 1
    %p273 = por %p271, %p272
    %p274 = scmp.ne.s32.totalorder %s265, %s266
    %p275 = scmp.eq.s32.totalorder %s24, 0
    %p276 = por %p274, %p275
    %p277 = scmp.ne.s32.totalorder %s265, %s266
    %p278 = scmp.eq.s32.totalorder %s25, 1
    %p279 = por %p277, %p278
    %p281 = scmp.ne.s32.totalorder %s266, %s280
    %p282 = scmp.eq.s32.totalorder %s25, 0
    %p283 = por %p281, %p282
    %s285 = sadd.s32 %s284, 1
    %p288 = scmp.eq.s32.totalorder %s19, 1
    %p289 = scmp.ne.s32.totalorder %s284, %s286
    %p290 = scmp.eq.s32.totalorder %s19, 0
    %p291 = por %p289, %p290
    %p292 = scmp.ne.s32.totalorder %s284, %s286
    %p293 = scmp.eq.s32.totalorder %s24, 1
    %p294 = por %p292, %p293
    %p295 = scmp.ne.s32.totalorder %s286, %s287
    %p296 = scmp.eq.s32.totalorder %s24, 0
    %p297 = por %p295, %p296
    %p298 = scmp.ne.s32.totalorder %s286, %s287
    %p299 = scmp.eq.s32.totalorder %s25, 1
    %p300 = por %p298, %p299
    %p302 = scmp.ne.s32.totalorder %s287, %s301
    %p303 = scmp.eq.s32.totalorder %s25, 0
    %p304 = por %p302, %p303
    %s305 = ssub.s32 %s19, %s26
    %p306 = scmp.eq.s32.totalorder %s305, 0
    %s308 = sadd.s32 %s307, 1
    %s309 = scalar_select %p306, %s307, %s308
    %p312 = pneg %p306
    %p313 = scmp.eq.s32.totalorder %s19, 1
    %p314 = por %p312, %p313
    %p315 = scmp.ne.s32.totalorder %s307, %s310
    %p316 = scmp.eq.s32.totalorder %s19, 0
    %p317 = por %p315, %p316
    %p318 = scmp.ne.s32.totalorder %s307, %s310
    %p319 = scmp.eq.s32.totalorder %s24, 1
    %p320 = por %p318, %p319
    %p321 = scmp.ne.s32.totalorder %s310, %s311
    %p322 = scmp.eq.s32.totalorder %s24, 0
    %p323 = por %p321, %p322
    %p324 = scmp.ne.s32.totalorder %s310, %s311
    %p325 = scmp.eq.s32.totalorder %s25, 1
    %p326 = por %p324, %p325
    %p328 = scmp.ne.s32.totalorder %s311, %s327
    %p329 = scmp.eq.s32.totalorder %s25, 0
    %p330 = por %p328, %p329
    %p331 = scmp.le.s32.totalorder 1, %s19
    %p332 = scmp.lt.s32.totalorder %s19, 3
    %p333 = pnand %p331, %p332
    %p334 = pneg %p333
    // Predicated region
    $region9: #{t2t_forward.3} parent=5 // pred_check
      _
    $region10: #{t2t_forward.3} parent=5 // pred_check_branch
      %336 = sbr.rel (%p333) target = $region12
    $region11: #{t2t_forward.3} parent=5 // pred_region
      %s337 = ssub.s32 %s19, 1
      // Predicated region
      $region13: #{t2t_forward.3} parent=11 // pred_check
        %p338 = pneg %p66
      $region14: #{t2t_forward.3} parent=11 // pred_check_branch
        %340 = sbr.rel (%p338) target = $region16
      $region15: #{t2t_forward.3} parent=11 // pred_region
        _
      $region16: #{t2t_forward.3} parent=11 // pred_fallthru
        _
      // Predicated region
      $region17: #{t2t_forward.3} parent=11 // pred_check
        %p341 = pneg %p87
      $region18: #{t2t_forward.3} parent=11 // pred_check_branch
        %343 = sbr.rel (%p341) target = $region20
      $region19: #{t2t_forward.3} parent=11 // pred_region
        _
      $region20: #{t2t_forward.3} parent=11 // pred_fallthru
        _
      // Predicated region
      $region21: #{t2t_forward.3} parent=11 // pred_check
        %p344 = pneg %p108
      $region22: #{t2t_forward.3} parent=11 // pred_check_branch
        %346 = sbr.rel (%p344) target = $region24
      $region23: #{t2t_forward.3} parent=11 // pred_region
        _
      $region24: #{t2t_forward.3} parent=11 // pred_fallthru
        _
      // Predicated region
      $region25: #{t2t_forward.3} parent=11 // pred_check
        %p347 = pneg %p129
      $region26: #{t2t_forward.3} parent=11 // pred_check_branch
        %349 = sbr.rel (%p347) target = $region28
      $region27: #{t2t_forward.3} parent=11 // pred_region
        _
      $region28: #{t2t_forward.3} parent=11 // pred_fallthru
        _
      // Predicated region
      $region29: #{t2t_forward.3} parent=11 // pred_check
        %p350 = pneg %p150
      $region30: #{t2t_forward.3} parent=11 // pred_check_branch
        %352 = sbr.rel (%p350) target = $region32
      $region31: #{t2t_forward.3} parent=11 // pred_region
        _
      $region32: #{t2t_forward.3} parent=11 // pred_fallthru
        _
      // Predicated region
      $region33: #{t2t_forward.3} parent=11 // pred_check
        %p353 = pneg %p171
      $region34: #{t2t_forward.3} parent=11 // pred_check_branch
        %355 = sbr.rel (%p353) target = $region36
      $region35: #{t2t_forward.3} parent=11 // pred_region
        _
      $region36: #{t2t_forward.3} parent=11 // pred_fallthru
        _
      // Predicated region
      $region37: #{t2t_forward.3} parent=11 // pred_check
        %p356 = pneg %p192
      $region38: #{t2t_forward.3} parent=11 // pred_check_branch
        %358 = sbr.rel (%p356) target = $region40
      $region39: #{t2t_forward.3} parent=11 // pred_region
        _
      $region40: #{t2t_forward.3} parent=11 // pred_fallthru
        _
      // Predicated region
      $region41: #{t2t_forward.3} parent=11 // pred_check
        %p359 = pneg %p213
      $region42: #{t2t_forward.3} parent=11 // pred_check_branch
        %361 = sbr.rel (%p359) target = $region44
      $region43: #{t2t_forward.3} parent=11 // pred_region
        _
      $region44: #{t2t_forward.3} parent=11 // pred_fallthru
        _
      // Predicated region
      $region45: #{t2t_forward.3} parent=11 // pred_check
        %p362 = pneg %p234
      $region46: #{t2t_forward.3} parent=11 // pred_check_branch
        %364 = sbr.rel (%p362) target = $region48
      $region47: #{t2t_forward.3} parent=11 // pred_region
        _
      $region48: #{t2t_forward.3} parent=11 // pred_fallthru
        _
      // Predicated region
      $region49: #{t2t_forward.3} parent=11 // pred_check
        %p365 = pneg %p255
      $region50: #{t2t_forward.3} parent=11 // pred_check_branch
        %367 = sbr.rel (%p365) target = $region52
      $region51: #{t2t_forward.3} parent=11 // pred_region
        _
      $region52: #{t2t_forward.3} parent=11 // pred_fallthru
        _
      // Predicated region
      $region53: #{t2t_forward.3} parent=11 // pred_check
        %p368 = pneg %p276
      $region54: #{t2t_forward.3} parent=11 // pred_check_branch
        %370 = sbr.rel (%p368) target = $region56
      $region55: #{t2t_forward.3} parent=11 // pred_region
        _
      $region56: #{t2t_forward.3} parent=11 // pred_fallthru
        _
      // Predicated region
      $region57: #{t2t_forward.3} parent=11 // pred_check
        %p371 = pneg %p297
      $region58: #{t2t_forward.3} parent=11 // pred_check_branch
        %373 = sbr.rel (%p371) target = $region60
      $region59: #{t2t_forward.3} parent=11 // pred_region
        _
      $region60: #{t2t_forward.3} parent=11 // pred_fallthru
        _
    $region12: #{t2t_forward.3} parent=5 // pred_fallthru
      _
    %p374 = scmp.lt.s32.totalorder %s19, 2
    // Predicated region
    $region61: #{t2t_forward.3} parent=5 // pred_check
      %p375 = pneg %p374
    $region62: #{t2t_forward.3} parent=5 // pred_check_branch
      %377 = sbr.rel (%p375) target = $region64
    $region63: #{t2t_forward.3} parent=5 // pred_region
      // Predicated region
      $region65: #{t2t_forward.3} parent=63 // pred_check
        %p378 = pneg %p39
      $region66: #{t2t_forward.3} parent=63 // pred_check_branch
        %380 = sbr.rel (%p378) target = $region68
      $region67: #{t2t_forward.3} parent=63 // pred_region
        %p381 = scmp.lt.s32.totalorder %s19, 1
        %s382 = scalar_select %p381, %s19, 1
        %s383 = smul.addr %s382, 8
        %s384 = smul.addr %s383, 8
        %s385 = scalar_lea.vmem %s0, %s384
      $region68: #{t2t_forward.3} parent=63 // pred_fallthru
        _
    $region64: #{t2t_forward.3} parent=5 // pred_fallthru
      _
    %p386 = scmp.le.s32.totalorder 1, %s19
    %p387 = scmp.lt.s32.totalorder %s19, 3
    %p388 = pnand %p386, %p387
    %p389 = pneg %p388
    // Predicated region
    $region69: #{t2t_forward.3} parent=5 // pred_check
      _
    $region70: #{t2t_forward.3} parent=5 // pred_check_branch
      %391 = sbr.rel (%p388) target = $region72
    $region71: #{t2t_forward.3} parent=5 // pred_region
      %s392 = ssub.s32 %s19, 1
      %p393 = scmp.lt.s32.totalorder %s24, 1
      %s394 = scalar_select %p393, %s24, 1
      %s395 = smul.addr %s394, 8
      %s396 = smul.addr %s395, 8
      %s397 = scalar_lea.vmem %s0, %s396
      %p398 = pneg %p45
      %p399 = pneg %p42
      %p400 = pneg %p66
      %p401 = pneg %p63
      %p402 = pneg %p87
      %p403 = pneg %p84
      %p404 = pneg %p108
      %p405 = pneg %p105
      %p406 = pneg %p129
      %p407 = pneg %p126
      %p408 = pneg %p150
      %p409 = pneg %p147
      %p410 = pneg %p171
      %p411 = pneg %p168
      %p412 = pneg %p192
      %p413 = pneg %p189
      %p414 = pneg %p213
      %p415 = pneg %p210
      %p416 = pneg %p234
      %p417 = pneg %p231
      %p418 = pneg %p255
      %p419 = pneg %p252
      %p420 = pneg %p276
      %p421 = pneg %p273
      %p422 = pneg %p297
      %p423 = pneg %p294
      %p424 = pneg %p323
      %p425 = pneg %p320
      %p426 = scmp.lt.s32.totalorder %s24, 1
      %s427 = scalar_select %p426, %s24, 1
      %s428 = smul.addr %s427, 8
      %s429 = smul.addr %s428, 8
      %s430 = scalar_lea.vmem %s13, %s429
      %p431 = scmp.lt.s32.totalorder %s24, 1
      %s432 = scalar_select %p431, %s24, 1
      %s433 = smul.addr %s432, 8
      %s434 = smul.addr %s433, 8
      %s435 = scalar_lea.vmem %s0, %s434
      %p436 = scmp.lt.s32.totalorder %s24, 1
      %s437 = scalar_select %p436, %s24, 1
      %s438 = smul.addr %s437, 8
      %s439 = smul.addr %s438, 8
      %s440 = scalar_lea.vmem %s13, %s439
      %v441 = vld [vmem:[%s435] sm:$0xff]
      %v442 = vld [vmem:[%s435 + $0x8] sm:$0xff]
      %v443 = vld [vmem:[%s435 + $0x10] sm:$0xff]
      %v444 = vld [vmem:[%s435 + $0x18] sm:$0xff]
      %v445 = vld [vmem:[%s435 + $0x20] sm:$0xff]
      %v446 = vld [vmem:[%s435 + $0x28] sm:$0xff]
      %v447 = vld [vmem:[%s435 + $0x30] sm:$0xff]
      %v448 = vld [vmem:[%s435 + $0x38] sm:$0xff]
      %vm449 = vcmask 220160
      %v450 = vsel %vm449, %v441, 0.0
      %451 = vadd.xlane.f32.xlu0 %v450
      %v452 = vpop.xlane.xlu0 %451
      %v453 = vsel %vm449, %v442, 0.0
      %454 = vadd.xlane.f32.xlu0 %v453
      %v455 = vpop.xlane.xlu0 %454
      %v456 = vsel %vm449, %v443, 0.0
      %457 = vadd.xlane.f32.xlu0 %v456
      %v458 = vpop.xlane.xlu0 %457
      %v459 = vsel %vm449, %v444, 0.0
      %460 = vadd.xlane.f32.xlu0 %v459
      %v461 = vpop.xlane.xlu0 %460
      %v462 = vsel %vm449, %v445, 0.0
      %463 = vadd.xlane.f32.xlu0 %v462
      %v464 = vpop.xlane.xlu0 %463
      %v465 = vsel %vm449, %v446, 0.0
      %466 = vadd.xlane.f32.xlu0 %v465
      %v467 = vpop.xlane.xlu0 %466
      %v468 = vsel %vm449, %v447, 0.0
      %469 = vadd.xlane.f32.xlu0 %v468
      %v470 = vpop.xlane.xlu0 %469
      %v471 = vsel %vm449, %v448, 0.0
      %472 = vadd.xlane.f32.xlu0 %v471
      %v473 = vpop.xlane.xlu0 %472
      %v474 = vrcp.pop 27.0
      %v475 = vmul.f32 27.0, %v474
      %v476 = vsub.f32 1.0, %v475
      %v477 = vmul.f32 %v474, %v476
      %v478 = vadd.f32 %v474, %v477
      %vm479 = vweird.f32 %v474
      %v480 = vsel %vm479, %v474, %v478
      %v481 = vmul.f32 %v452, %v480
      %v482 = vmul.f32 %v455, %v480
      %v483 = vmul.f32 %v458, %v480
      %v484 = vmul.f32 %v461, %v480
      %v485 = vmul.f32 %v464, %v480
      %v486 = vmul.f32 %v467, %v480
      %v487 = vmul.f32 %v470, %v480
      %v488 = vmul.f32 %v473, %v480
      %v489 = vsub.f32 %v441, %v481
      %v490 = vsub.f32 %v442, %v482
      %v491 = vsub.f32 %v443, %v483
      %v492 = vsub.f32 %v444, %v484
      %v493 = vsub.f32 %v445, %v485
      %v494 = vsub.f32 %v446, %v486
      %v495 = vsub.f32 %v447, %v487
      %v496 = vsub.f32 %v448, %v488
      %v497 = vmul.f32 %v489, %v489
      %v498 = vmul.f32 %v490, %v490
      %v499 = vmul.f32 %v491, %v491
      %v500 = vmul.f32 %v492, %v492
      %v501 = vmul.f32 %v493, %v493
      %v502 = vmul.f32 %v494, %v494
      %v503 = vmul.f32 %v495, %v495
      %v504 = vmul.f32 %v496, %v496
      %v505 = vsel %vm449, %v497, 0.0
      %506 = vadd.xlane.f32.xlu0 %v505
      %v507 = vpop.xlane.xlu0 %506
      %v508 = vsel %vm449, %v498, 0.0
      %509 = vadd.xlane.f32.xlu0 %v508
      %v510 = vpop.xlane.xlu0 %509
      %v511 = vsel %vm449, %v499, 0.0
      %512 = vadd.xlane.f32.xlu0 %v511
      %v513 = vpop.xlane.xlu0 %512
      %v514 = vsel %vm449, %v500, 0.0
      %515 = vadd.xlane.f32.xlu0 %v514
      %v516 = vpop.xlane.xlu0 %515
      %v517 = vsel %vm449, %v501, 0.0
      %518 = vadd.xlane.f32.xlu0 %v517
      %v519 = vpop.xlane.xlu0 %518
      %v520 = vsel %vm449, %v502, 0.0
      %521 = vadd.xlane.f32.xlu0 %v520
      %v522 = vpop.xlane.xlu0 %521
      %v523 = vsel %vm449, %v503, 0.0
      %524 = vadd.xlane.f32.xlu0 %v523
      %v525 = vpop.xlane.xlu0 %524
      %v526 = vsel %vm449, %v504, 0.0
      %527 = vadd.xlane.f32.xlu0 %v526
      %v528 = vpop.xlane.xlu0 %527
      %v529 = vmul.f32 %v507, %v480
      %v530 = vmul.f32 %v510, %v480
      %v531 = vmul.f32 %v513, %v480
      %v532 = vmul.f32 %v516, %v480
      %v533 = vmul.f32 %v519, %v480
      %v534 = vmul.f32 %v522, %v480
      %v535 = vmul.f32 %v525, %v480
      %v536 = vmul.f32 %v528, %v480
      %v537 = vadd.f32 %v529, 1e-05
      %v538 = vadd.f32 %v530, 1e-05
      %v539 = vadd.f32 %v531, 1e-05
      %v540 = vadd.f32 %v532, 1e-05
      %v541 = vadd.f32 %v533, 1e-05
      %v542 = vadd.f32 %v534, 1e-05
      %v543 = vadd.f32 %v535, 1e-05
      %v544 = vadd.f32 %v536, 1e-05
      %v545 = vrsqrt.pop %v537
      %v546 = vmul.f32 %v545, %v537
      %v547 = vmul.f32 %v546, %v545
      %v548 = vmul.f32 0.5, %v547
      %v549 = vsub.f32 1.5, %v548
      %v550 = vmul.f32 %v545, %v549
      %vm551 = vweird.f32 %v537
      %vm552 = vweird.f32 %v545
      %vm553 = vmor %vm551, %vm552
      %v554 = vsel %vm553, %v545, %v550
      %v555 = vrsqrt.pop %v538
      %v556 = vmul.f32 %v555, %v538
      %v557 = vmul.f32 %v556, %v555
      %v558 = vmul.f32 0.5, %v557
      %v559 = vsub.f32 1.5, %v558
      %v560 = vmul.f32 %v555, %v559
      %vm561 = vweird.f32 %v538
      %vm562 = vweird.f32 %v555
      %vm563 = vmor %vm561, %vm562
      %v564 = vsel %vm563, %v555, %v560
      %v565 = vrsqrt.pop %v539
      %v566 = vmul.f32 %v565, %v539
      %v567 = vmul.f32 %v566, %v565
      %v568 = vmul.f32 0.5, %v567
      %v569 = vsub.f32 1.5, %v568
      %v570 = vmul.f32 %v565, %v569
      %vm571 = vweird.f32 %v539
      %vm572 = vweird.f32 %v565
      %vm573 = vmor %vm571, %vm572
      %v574 = vsel %vm573, %v565, %v570
      %v575 = vrsqrt.pop %v540
      %v576 = vmul.f32 %v575, %v540
      %v577 = vmul.f32 %v576, %v575
      %v578 = vmul.f32 0.5, %v577
      %v579 = vsub.f32 1.5, %v578
      %v580 = vmul.f32 %v575, %v579
      %vm581 = vweird.f32 %v540
      %vm582 = vweird.f32 %v575
      %vm583 = vmor %vm581, %vm582
      %v584 = vsel %vm583, %v575, %v580
      %v585 = vrsqrt.pop %v541
      %v586 = vmul.f32 %v585, %v541
      %v587 = vmul.f32 %v586, %v585
      %v588 = vmul.f32 0.5, %v587
      %v589 = vsub.f32 1.5, %v588
      %v590 = vmul.f32 %v585, %v589
      %vm591 = vweird.f32 %v541
      %vm592 = vweird.f32 %v585
      %vm593 = vmor %vm591, %vm592
      %v594 = vsel %vm593, %v585, %v590
      %v595 = vrsqrt.pop %v542
      %v596 = vmul.f32 %v595, %v542
      %v597 = vmul.f32 %v596, %v595
      %v598 = vmul.f32 0.5, %v597
      %v599 = vsub.f32 1.5, %v598
      %v600 = vmul.f32 %v595, %v599
      %vm601 = vweird.f32 %v542
      %vm602 = vweird.f32 %v595
      %vm603 = vmor %vm601, %vm602
      %v604 = vsel %vm603, %v595, %v600
      %v605 = vrsqrt.pop %v543
      %v606 = vmul.f32 %v605, %v543
      %v607 = vmul.f32 %v606, %v605
      %v608 = vmul.f32 0.5, %v607
      %v609 = vsub.f32 1.5, %v608
      %v610 = vmul.f32 %v605, %v609
      %vm611 = vweird.f32 %v543
      %vm612 = vweird.f32 %v605
      %vm613 = vmor %vm611, %vm612
      %v614 = vsel %vm613, %v605, %v610
      %v615 = vrsqrt.pop %v544
      %v616 = vmul.f32 %v615, %v544
      %v617 = vmul.f32 %v616, %v615
      %v618 = vmul.f32 0.5, %v617
      %v619 = vsub.f32 1.5, %v618
      %v620 = vmul.f32 %v615, %v619
      %vm621 = vweird.f32 %v544
      %vm622 = vweird.f32 %v615
      %vm623 = vmor %vm621, %vm622
      %v624 = vsel %vm623, %v615, %v620
      %v625 = vmul.f32 %v489, %v554
      %v626 = vmul.f32 %v490, %v564
      %v627 = vmul.f32 %v491, %v574
      %v628 = vmul.f32 %v492, %v584
      %v629 = vmul.f32 %v493, %v594
      %v630 = vmul.f32 %v494, %v604
      %v631 = vmul.f32 %v495, %v614
      %v632 = vmul.f32 %v496, %v624
      %v633 = vld [vmem:[%s1] sm:$0x1]
      %v635 = vperm.slane %v633, 0
      %v637 = vmul.f32 %v625, %v635
      %v638 = vmul.f32 %v626, %v635
      %v639 = vmul.f32 %v627, %v635
      %v640 = vmul.f32 %v628, %v635
      %v641 = vmul.f32 %v629, %v635
      %v642 = vmul.f32 %v630, %v635
      %v643 = vmul.f32 %v631, %v635
      %v644 = vmul.f32 %v632, %v635
      %v645 = vld [vmem:[%s2] sm:$0x1]
      %v647 = vperm.slane %v645, 0
      %v649 = vadd.f32 %v637, %v647
      %v650 = vadd.f32 %v638, %v647
      %v651 = vadd.f32 %v639, %v647
      %v652 = vadd.f32 %v640, %v647
      %v653 = vadd.f32 %v641, %v647
      %v654 = vadd.f32 %v642, %v647
      %v655 = vadd.f32 %v643, %v647
      %v656 = vadd.f32 %v644, %v647
      %v657 = vld [vmem:[%s3] sm:$0xff]
      %v658 = vld [vmem:[%s3 + $0x8] sm:$0xff]
      %v659 = vld [vmem:[%s3 + $0x10] sm:$0xff]
      %v660 = vld [vmem:[%s3 + $0x18] sm:$0x7]
      %v661 = vld [vmem:[%s4] sm:$0x1]
      %v663 = vperm.slane %v661, 0
      %v666 = vsel %vm449, %v649, 0
      %v669 = vsel %vm449, %v650, 0
      %v672 = vsel %vm449, %v651, 0
      %v675 = vsel %vm449, %v652, 0
      %v678 = vsel %vm449, %v653, 0
      %v681 = vsel %vm449, %v654, 0
      %v684 = vsel %vm449, %v655, 0
      %v687 = vsel %vm449, %v656, 0
      %vm689 = vcmask 1042432
      %v691 = vsel %vm689, %v660, 0
      %693 = vmatpush.msra.mxu0 0.0
      %694 = vmatpush.msra.mxu0 0.0
      %695 = vmatpush.msra.mxu0 0.0
      %696 = vmatpush.msra.mxu0 0.0
      %697 = vmatpush.msra.mxu0 0.0
      %698 = vmatpush.msra.mxu0 0.0
      %699 = vmatpush.msra.mxu0 0.0
      %700 = vmatpush.msra.mxu0 0.0
      %701 = vmatpush.msra.mxu0 0.0
      %702 = vmatpush.msra.mxu0 0.0
      %703 = vmatpush.msra.mxu0 0.0
      %704 = vmatpush.msra.mxu0 0.0
      %705 = vmatpush.msra.mxu0 %v691
      %706 = vmatpush.msra.mxu0 %v659
      %707 = vmatpush.msra.mxu0 %v658
      %708 = vmatpush.msra.mxu0 %v657
      %709 = vmatmul.f32.gmra.mxu0 %v666
      %v710 = vpop.f32.mrf.mxu0
      %v711 = vadd.f32 %v663, %v710
      %712 = vmatmul.f32.gmra.mxu0 %v669
      %v713 = vpop.f32.mrf.mxu0
      %v714 = vadd.f32 %v663, %v713
      %715 = vmatmul.f32.gmra.mxu0 %v672
      %v716 = vpop.f32.mrf.mxu0
      %v717 = vadd.f32 %v663, %v716
      %718 = vmatmul.f32.gmra.mxu0 %v675
      %v719 = vpop.f32.mrf.mxu0
      %v720 = vadd.f32 %v663, %v719
      %721 = vmatmul.f32.gmra.mxu0 %v678
      %v722 = vpop.f32.mrf.mxu0
      %v723 = vadd.f32 %v663, %v722
      %724 = vmatmul.f32.gmra.mxu0 %v681
      %v725 = vpop.f32.mrf.mxu0
      %v726 = vadd.f32 %v663, %v725
      %727 = vmatmul.f32.gmra.mxu0 %v684
      %v728 = vpop.f32.mrf.mxu0
      %v729 = vadd.f32 %v663, %v728
      %730 = vmatmul.f32.gmra.mxu0 %v687
      %v731 = vpop.f32.mrf.mxu0
      %v732 = vadd.f32 %v663, %v731
      %733 = vdwg.mxu0
      %v734 = vmul.f32 %v711, %v711
      %v735 = vmul.f32 %v714, %v714
      %v736 = vmul.f32 %v717, %v717
      %v737 = vmul.f32 %v720, %v720
      %v738 = vmul.f32 %v723, %v723
      %v739 = vmul.f32 %v726, %v726
      %v740 = vmul.f32 %v729, %v729
      %v741 = vmul.f32 %v732, %v732
      %vm742 = vcmask 261120
      %v743 = vsel %vm742, %v734, 0.0
      %744 = vadd.xlane.f32.xlu0 %v743
      %v745 = vpop.xlane.xlu0 %744
      %v746 = vsel %vm742, %v735, 0.0
      %747 = vadd.xlane.f32.xlu0 %v746
      %v748 = vpop.xlane.xlu0 %747
      %v749 = vsel %vm742, %v736, 0.0
      %750 = vadd.xlane.f32.xlu0 %v749
      %v751 = vpop.xlane.xlu0 %750
      %v752 = vsel %vm742, %v737, 0.0
      %753 = vadd.xlane.f32.xlu0 %v752
      %v754 = vpop.xlane.xlu0 %753
      %v755 = vsel %vm742, %v738, 0.0
      %756 = vadd.xlane.f32.xlu0 %v755
      %v757 = vpop.xlane.xlu0 %756
      %v758 = vsel %vm742, %v739, 0.0
      %759 = vadd.xlane.f32.xlu0 %v758
      %v760 = vpop.xlane.xlu0 %759
      %v761 = vsel %vm742, %v740, 0.0
      %762 = vadd.xlane.f32.xlu0 %v761
      %v763 = vpop.xlane.xlu0 %762
      %v764 = vsel %vm742, %v741, 0.0
      %765 = vadd.xlane.f32.xlu0 %v764
      %v766 = vpop.xlane.xlu0 %765
      %v767 = vmul.f32 %v745, 0.5
      %v768 = vmul.f32 %v748, 0.5
      %v769 = vmul.f32 %v751, 0.5
      %v770 = vmul.f32 %v754, 0.5
      %v771 = vmul.f32 %v757, 0.5
      %v772 = vmul.f32 %v760, 0.5
      %v773 = vmul.f32 %v763, 0.5
      %v774 = vmul.f32 %v766, 0.5
      %v775 = vsub.f32 %v711, %v767
      %v776 = vsub.f32 %v714, %v768
      %v777 = vsub.f32 %v717, %v769
      %v778 = vsub.f32 %v720, %v770
      %v779 = vsub.f32 %v723, %v771
      %v780 = vsub.f32 %v726, %v772
      %v781 = vsub.f32 %v729, %v773
      %v782 = vsub.f32 %v732, %v774
      %v783 = vmul.f32 %v775, 1.442695
      %v784 = vpow.pop %v783
      %v785 = vmul.f32 %v776, 1.442695
      %v786 = vpow.pop %v785
      %v787 = vmul.f32 %v777, 1.442695
      %v788 = vpow.pop %v787
      %v789 = vmul.f32 %v778, 1.442695
      %v790 = vpow.pop %v789
      %v791 = vmul.f32 %v779, 1.442695
      %v792 = vpow.pop %v791
      %v793 = vmul.f32 %v780, 1.442695
      %v794 = vpow.pop %v793
      %v795 = vmul.f32 %v781, 1.442695
      %v796 = vpow.pop %v795
      %v797 = vmul.f32 %v782, 1.442695
      %v798 = vpow.pop %v797
      %v799 = vmul.f32 %v784, 0.25
      %v800 = vmul.f32 %v786, 0.25
      %v801 = vmul.f32 %v788, 0.25
      %v802 = vmul.f32 %v790, 0.25
      %v803 = vmul.f32 %v792, 0.25
      %v804 = vmul.f32 %v794, 0.25
      %v805 = vmul.f32 %v796, 0.25
      %v806 = vmul.f32 %v798, 0.25
      %815 = vrot.lane.b32.xlu0 %v734, 96
      %v816 = vpop.permute.xlu0 %815
      %817 = vrot.lane.b32.xlu0 %v735, 96
      %v818 = vpop.permute.xlu0 %817
      %819 = vrot.lane.b32.xlu0 %v736, 96
      %v820 = vpop.permute.xlu0 %819
      %821 = vrot.lane.b32.xlu0 %v737, 96
      %v822 = vpop.permute.xlu0 %821
      %823 = vrot.lane.b32.xlu0 %v738, 96
      %v824 = vpop.permute.xlu0 %823
      %825 = vrot.lane.b32.xlu0 %v739, 96
      %v826 = vpop.permute.xlu0 %825
      %827 = vrot.lane.b32.xlu0 %v740, 96
      %v828 = vpop.permute.xlu0 %827
      %829 = vrot.lane.b32.xlu0 %v741, 96
      %v830 = vpop.permute.xlu0 %829
      %v839 = vsel %vm742, %v816, 0.0
      %840 = vadd.xlane.f32.xlu0 %v839
      %v841 = vpop.xlane.xlu0 %840
      %v842 = vsel %vm742, %v818, 0.0
      %843 = vadd.xlane.f32.xlu0 %v842
      %v844 = vpop.xlane.xlu0 %843
      %v845 = vsel %vm742, %v820, 0.0
      %846 = vadd.xlane.f32.xlu0 %v845
      %v847 = vpop.xlane.xlu0 %846
      %v848 = vsel %vm742, %v822, 0.0
      %849 = vadd.xlane.f32.xlu0 %v848
      %v850 = vpop.xlane.xlu0 %849
      %v851 = vsel %vm742, %v824, 0.0
      %852 = vadd.xlane.f32.xlu0 %v851
      %v853 = vpop.xlane.xlu0 %852
      %v854 = vsel %vm742, %v826, 0.0
      %855 = vadd.xlane.f32.xlu0 %v854
      %v856 = vpop.xlane.xlu0 %855
      %v857 = vsel %vm742, %v828, 0.0
      %858 = vadd.xlane.f32.xlu0 %v857
      %v859 = vpop.xlane.xlu0 %858
      %v860 = vsel %vm742, %v830, 0.0
      %861 = vadd.xlane.f32.xlu0 %v860
      %v862 = vpop.xlane.xlu0 %861
      %v863 = vmul.f32 %v841, 0.5
      %v864 = vmul.f32 %v844, 0.5
      %v865 = vmul.f32 %v847, 0.5
      %v866 = vmul.f32 %v850, 0.5
      %v867 = vmul.f32 %v853, 0.5
      %v868 = vmul.f32 %v856, 0.5
      %v869 = vmul.f32 %v859, 0.5
      %v870 = vmul.f32 %v862, 0.5
      %v871 = vsub.f32 %v711, %v863
      %v872 = vsub.f32 %v714, %v864
      %v873 = vsub.f32 %v717, %v865
      %v874 = vsub.f32 %v720, %v866
      %v875 = vsub.f32 %v723, %v867
      %v876 = vsub.f32 %v726, %v868
      %v877 = vsub.f32 %v729, %v869
      %v878 = vsub.f32 %v732, %v870
      %v879 = vmul.f32 %v871, 1.442695
      %v880 = vpow.pop %v879
      %v881 = vmul.f32 %v872, 1.442695
      %v882 = vpow.pop %v881
      %v883 = vmul.f32 %v873, 1.442695
      %v884 = vpow.pop %v883
      %v885 = vmul.f32 %v874, 1.442695
      %v886 = vpow.pop %v885
      %v887 = vmul.f32 %v875, 1.442695
      %v888 = vpow.pop %v887
      %v889 = vmul.f32 %v876, 1.442695
      %v890 = vpow.pop %v889
      %v891 = vmul.f32 %v877, 1.442695
      %v892 = vpow.pop %v891
      %v893 = vmul.f32 %v878, 1.442695
      %v894 = vpow.pop %v893
      %v895 = vmul.f32 %v880, 0.25
      %v896 = vmul.f32 %v882, 0.25
      %v897 = vmul.f32 %v884, 0.25
      %v898 = vmul.f32 %v886, 0.25
      %v899 = vmul.f32 %v888, 0.25
      %v900 = vmul.f32 %v890, 0.25
      %v901 = vmul.f32 %v892, 0.25
      %v902 = vmul.f32 %v894, 0.25
      %vm903 = vcmask 917248
      %v904 = vsel %vm903, %v799, 0.0
      %v905 = vsel %vm903, %v800, 0.0
      %v906 = vadd.f32 %v904, %v905
      %v907 = vsel %vm903, %v801, 0.0
      %v908 = vadd.f32 %v906, %v907
      %v909 = vsel %vm903, %v802, 0.0
      %v910 = vadd.f32 %v908, %v909
      %v911 = vsel %vm903, %v803, 0.0
      %v912 = vadd.f32 %v910, %v911
      %v913 = vsel %vm903, %v804, 0.0
      %v914 = vadd.f32 %v912, %v913
      %v915 = vsel %vm903, %v805, 0.0
      %v916 = vadd.f32 %v914, %v915
      %v917 = vsel %vm903, %v806, 0.0
      %v918 = vadd.f32 %v916, %v917
      %v919 = vrot.slane %v918, 4
      %v920 = vadd.f32 %v918, %v919
      %v921 = vrot.slane %v920, 2
      %v922 = vadd.f32 %v920, %v921
      %v923 = vrot.slane %v922, 1
      %v924 = vadd.f32 %v922, %v923
      %926 = vrot.lane.b32.xlu0 %v924, 16
      %v927 = vpop.permute.xlu0 %926
      %v929 = vmul.f32 %v895, %v927
      %v930 = vmul.f32 %v896, %v927
      %v931 = vmul.f32 %v897, %v927
      %v932 = vmul.f32 %v898, %v927
      %v933 = vmul.f32 %v899, %v927
      %v934 = vmul.f32 %v900, %v927
      %v935 = vmul.f32 %v901, %v927
      %v936 = vmul.f32 %v902, %v927
      %945 = vrot.lane.b32.xlu0 %v929, 16
      %v946 = vpop.permute.xlu0 %945
      %947 = vrot.lane.b32.xlu0 %v930, 16
      %v948 = vpop.permute.xlu0 %947
      %949 = vrot.lane.b32.xlu0 %v931, 16
      %v950 = vpop.permute.xlu0 %949
      %951 = vrot.lane.b32.xlu0 %v932, 16
      %v952 = vpop.permute.xlu0 %951
      %953 = vrot.lane.b32.xlu0 %v933, 16
      %v954 = vpop.permute.xlu0 %953
      %955 = vrot.lane.b32.xlu0 %v934, 16
      %v956 = vpop.permute.xlu0 %955
      %957 = vrot.lane.b32.xlu0 %v935, 16
      %v958 = vpop.permute.xlu0 %957
      %959 = vrot.lane.b32.xlu0 %v936, 16
      %v960 = vpop.permute.xlu0 %959
      %vm969 = vcmask 130048
      %v970 = vsel %vm969, %v946, 0.0
      %971 = vadd.xlane.f32.xlu0 %v970
      %v972 = vpop.xlane.xlu0 %971
      %v973 = vsel %vm969, %v948, 0.0
      %974 = vadd.xlane.f32.xlu0 %v973
      %v975 = vpop.xlane.xlu0 %974
      %v976 = vsel %vm969, %v950, 0.0
      %977 = vadd.xlane.f32.xlu0 %v976
      %v978 = vpop.xlane.xlu0 %977
      %v979 = vsel %vm969, %v952, 0.0
      %980 = vadd.xlane.f32.xlu0 %v979
      %v981 = vpop.xlane.xlu0 %980
      %v982 = vsel %vm969, %v954, 0.0
      %983 = vadd.xlane.f32.xlu0 %v982
      %v984 = vpop.xlane.xlu0 %983
      %v985 = vsel %vm969, %v956, 0.0
      %986 = vadd.xlane.f32.xlu0 %v985
      %v987 = vpop.xlane.xlu0 %986
      %v988 = vsel %vm969, %v958, 0.0
      %989 = vadd.xlane.f32.xlu0 %v988
      %v990 = vpop.xlane.xlu0 %989
      %v991 = vsel %vm969, %v960, 0.0
      %992 = vadd.xlane.f32.xlu0 %v991
      %v993 = vpop.xlane.xlu0 %992
      %1002 = vrot.lane.b32.xlu0 %v799, 32
      %v1003 = vpop.permute.xlu0 %1002
      %1004 = vrot.lane.b32.xlu0 %v800, 32
      %v1005 = vpop.permute.xlu0 %1004
      %1006 = vrot.lane.b32.xlu0 %v801, 32
      %v1007 = vpop.permute.xlu0 %1006
      %1008 = vrot.lane.b32.xlu0 %v802, 32
      %v1009 = vpop.permute.xlu0 %1008
      %1010 = vrot.lane.b32.xlu0 %v803, 32
      %v1011 = vpop.permute.xlu0 %1010
      %1012 = vrot.lane.b32.xlu0 %v804, 32
      %v1013 = vpop.permute.xlu0 %1012
      %1014 = vrot.lane.b32.xlu0 %v805, 32
      %v1015 = vpop.permute.xlu0 %1014
      %1016 = vrot.lane.b32.xlu0 %v806, 32
      %v1017 = vpop.permute.xlu0 %1016
      %1026 = vxpose.xlu0.b32.start [1/16] %v1003, 128
      %1027 = vxpose.xlu0.b32.cont [2/16] %v1005, 128
      %1028 = vxpose.xlu0.b32.cont [3/16] %v1007, 128
      %1029 = vxpose.xlu0.b32.cont [4/16] %v1009, 128
      %1030 = vxpose.xlu0.b32.cont [5/16] %v1011, 128
      %1031 = vxpose.xlu0.b32.cont [6/16] %v1013, 128
      %1032 = vxpose.xlu0.b32.cont [7/16] %v1015, 128
      %1033 = vxpose.xlu0.b32.cont [8/16] %v1017, 128
      %1034 = vxpose.xlu0.b32.cont [9/16] 0.0, 128
      %1035 = vxpose.xlu0.b32.cont [10/16] 0.0, 128
      %1036 = vxpose.xlu0.b32.cont [11/16] 0.0, 128
      %1037 = vxpose.xlu0.b32.cont [12/16] 0.0, 128
      %1038 = vxpose.xlu0.b32.cont [13/16] 0.0, 128
      %1039 = vxpose.xlu0.b32.cont [14/16] 0.0, 128
      %1040 = vxpose.xlu0.b32.cont [15/16] 0.0, 128
      %1041 = vxpose.xlu0.b32.end [16/16] 0.0, 128
      %v1042 = vpop.trf.xlu0
      %v1043 = vpop.trf.xlu0
      %v1044 = vpop.trf.xlu0
      %v1045 = vpop.trf.xlu0
      %v1046 = vpop.trf.xlu0
      %v1047 = vpop.trf.xlu0
      %v1048 = vpop.trf.xlu0
      %v1049 = vpop.trf.xlu0
      %v1050 = vpop.trf.xlu0
      %v1051 = vpop.trf.xlu0
      %v1052 = vpop.trf.xlu0
      %v1053 = vpop.trf.xlu0
      %v1054 = vpop.trf.xlu0
      %v1055 = vpop.trf.xlu0
      %v1056 = vpop.trf.xlu0
      %v1057 = vpop.trf.xlu0
      %1066 = vrot.lane.b32.xlu0 %v711, 64
      %v1067 = vpop.permute.xlu0 %1066
      %1068 = vrot.lane.b32.xlu0 %v714, 64
      %v1069 = vpop.permute.xlu0 %1068
      %1070 = vrot.lane.b32.xlu0 %v717, 64
      %v1071 = vpop.permute.xlu0 %1070
      %1072 = vrot.lane.b32.xlu0 %v720, 64
      %v1073 = vpop.permute.xlu0 %1072
      %1074 = vrot.lane.b32.xlu0 %v723, 64
      %v1075 = vpop.permute.xlu0 %1074
      %1076 = vrot.lane.b32.xlu0 %v726, 64
      %v1077 = vpop.permute.xlu0 %1076
      %1078 = vrot.lane.b32.xlu0 %v729, 64
      %v1079 = vpop.permute.xlu0 %1078
      %1080 = vrot.lane.b32.xlu0 %v732, 64
      %v1081 = vpop.permute.xlu0 %1080
      %vm1090 = vcmask 523264
      %v1092 = vsel %vm1090, %v1042, 0
      %v1095 = vsel %vm1090, %v1043, 0
      %1097 = vmatpush.msra.mxu0 0.0
      %1098 = vmatpush.msra.mxu0 0.0
      %1099 = vmatpush.msra.mxu0 0.0
      %1100 = vmatpush.msra.mxu0 0.0
      %1101 = vmatpush.msra.mxu0 0.0
      %1102 = vmatpush.msra.mxu0 0.0
      %1103 = vmatpush.msra.mxu0 0.0
      %1104 = vmatpush.msra.mxu0 0.0
      %1105 = vmatpush.msra.mxu0 %v1081
      %1106 = vmatpush.msra.mxu0 %v1079
      %1107 = vmatpush.msra.mxu0 %v1077
      %1108 = vmatpush.msra.mxu0 %v1075
      %1109 = vmatpush.msra.mxu0 %v1073
      %1110 = vmatpush.msra.mxu0 %v1071
      %1111 = vmatpush.msra.mxu0 %v1069
      %1112 = vmatpush.msra.mxu0 %v1067
      %1113 = vmatmul.f32.gmra.mxu0 %v1092
      %v1114 = vpop.f32.mrf.mxu0
      %v1115 = vadd.f32 0.0, %v1114
      %1116 = vmatmul.f32.gmra.mxu0 %v1095
      %v1117 = vpop.f32.mrf.mxu0
      %v1118 = vadd.f32 0.0, %v1117
      %1119 = vdwg.mxu0
      %1128 = vrot.lane.b32.xlu0 %v895, 16
      %v1129 = vpop.permute.xlu0 %1128
      %1130 = vrot.lane.b32.xlu0 %v896, 16
      %v1131 = vpop.permute.xlu0 %1130
      %1132 = vrot.lane.b32.xlu0 %v897, 16
      %v1133 = vpop.permute.xlu0 %1132
      %1134 = vrot.lane.b32.xlu0 %v898, 16
      %v1135 = vpop.permute.xlu0 %1134
      %1136 = vrot.lane.b32.xlu0 %v899, 16
      %v1137 = vpop.permute.xlu0 %1136
      %1138 = vrot.lane.b32.xlu0 %v900, 16
      %v1139 = vpop.permute.xlu0 %1138
      %1140 = vrot.lane.b32.xlu0 %v901, 16
      %v1141 = vpop.permute.xlu0 %1140
      %1142 = vrot.lane.b32.xlu0 %v902, 16
      %v1143 = vpop.permute.xlu0 %1142
      %v1144 = vsel %vm969, %v1129, 0
      %v1146 = vsel %vm969, %v1131, 0
      %v1148 = vsel %vm969, %v1133, 0
      %v1150 = vsel %vm969, %v1135, 0
      %v1152 = vsel %vm969, %v1137, 0
      %v1154 = vsel %vm969, %v1139, 0
      %v1156 = vsel %vm969, %v1141, 0
      %v1158 = vsel %vm969, %v1143, 0
      %1160 = vmatpush.msra.mxu0 0.0
      %1161 = vmatpush.msra.mxu0 0.0
      %1162 = vmatpush.msra.mxu0 0.0
      %1163 = vmatpush.msra.mxu0 0.0
      %1164 = vmatpush.msra.mxu0 0.0
      %1165 = vmatpush.msra.mxu0 0.0
      %1166 = vmatpush.msra.mxu0 0.0
      %1167 = vmatpush.msra.mxu0 0.0
      %1168 = vmatpush.msra.mxu0 0.0
      %1169 = vmatpush.msra.mxu0 0.0
      %1170 = vmatpush.msra.mxu0 0.0
      %1171 = vmatpush.msra.mxu0 0.0
      %1172 = vmatpush.msra.mxu0 0.0
      %1173 = vmatpush.msra.mxu0 0.0
      %1174 = vmatpush.msra.mxu0 %v1118
      %1175 = vmatpush.msra.mxu0 %v1115
      %1176 = vmatmul.f32.gmra.mxu0 %v1144
      %v1177 = vpop.f32.mrf.mxu0
      %v1178 = vadd.f32 0.0, %v1177
      %1179 = vmatmul.f32.gmra.mxu0 %v1146
      %v1180 = vpop.f32.mrf.mxu0
      %v1181 = vadd.f32 0.0, %v1180
      %1182 = vmatmul.f32.gmra.mxu0 %v1148
      %v1183 = vpop.f32.mrf.mxu0
      %v1184 = vadd.f32 0.0, %v1183
      %1185 = vmatmul.f32.gmra.mxu0 %v1150
      %v1186 = vpop.f32.mrf.mxu0
      %v1187 = vadd.f32 0.0, %v1186
      %1188 = vmatmul.f32.gmra.mxu0 %v1152
      %v1189 = vpop.f32.mrf.mxu0
      %v1190 = vadd.f32 0.0, %v1189
      %1191 = vmatmul.f32.gmra.mxu0 %v1154
      %v1192 = vpop.f32.mrf.mxu0
      %v1193 = vadd.f32 0.0, %v1192
      %1194 = vmatmul.f32.gmra.mxu0 %v1156
      %v1195 = vpop.f32.mrf.mxu0
      %v1196 = vadd.f32 0.0, %v1195
      %1197 = vmatmul.f32.gmra.mxu0 %v1158
      %v1198 = vpop.f32.mrf.mxu0
      %v1199 = vadd.f32 0.0, %v1198
      %1200 = vdwg.mxu0
      %v1201 = vadd.f32 %v972, 1e-08
      %v1202 = vadd.f32 %v975, 1e-08
      %v1203 = vadd.f32 %v978, 1e-08
      %v1204 = vadd.f32 %v981, 1e-08
      %v1205 = vadd.f32 %v984, 1e-08
      %v1206 = vadd.f32 %v987, 1e-08
      %v1207 = vadd.f32 %v990, 1e-08
      %v1208 = vadd.f32 %v993, 1e-08
      %v1209 = vrcp.pop %v1201
      %v1210 = vmul.f32 %v1201, %v1209
      %v1211 = vsub.f32 1.0, %v1210
      %v1212 = vmul.f32 %v1209, %v1211
      %v1213 = vadd.f32 %v1209, %v1212
      %vm1214 = vweird.f32 %v1201
      %vm1215 = vweird.f32 %v1209
      %vm1216 = vmor %vm1214, %vm1215
      %v1217 = vsel %vm1216, %v1209, %v1213
      %v1218 = vand.u32 2147483647, %v1201
      %vm1219 = vcmp.eq.f32.partialorder %v1218, 8.507059e+37
      %v1220 = vand.u32 %v1201, 2147483648
      %v1221 = vor.u32 1.1754944e-38, %v1220
      %v1222 = vsel %vm1219, %v1221, %v1217
      %v1223 = vrcp.pop %v1202
      %v1224 = vmul.f32 %v1202, %v1223
      %v1225 = vsub.f32 1.0, %v1224
      %v1226 = vmul.f32 %v1223, %v1225
      %v1227 = vadd.f32 %v1223, %v1226
      %vm1228 = vweird.f32 %v1202
      %vm1229 = vweird.f32 %v1223
      %vm1230 = vmor %vm1228, %vm1229
      %v1231 = vsel %vm1230, %v1223, %v1227
      %v1232 = vand.u32 2147483647, %v1202
      %vm1233 = vcmp.eq.f32.partialorder %v1232, 8.507059e+37
      %v1234 = vand.u32 %v1202, 2147483648
      %v1235 = vor.u32 1.1754944e-38, %v1234
      %v1236 = vsel %vm1233, %v1235, %v1231
      %v1237 = vrcp.pop %v1203
      %v1238 = vmul.f32 %v1203, %v1237
      %v1239 = vsub.f32 1.0, %v1238
      %v1240 = vmul.f32 %v1237, %v1239
      %v1241 = vadd.f32 %v1237, %v1240
      %vm1242 = vweird.f32 %v1203
      %vm1243 = vweird.f32 %v1237
      %vm1244 = vmor %vm1242, %vm1243
      %v1245 = vsel %vm1244, %v1237, %v1241
      %v1246 = vand.u32 2147483647, %v1203
      %vm1247 = vcmp.eq.f32.partialorder %v1246, 8.507059e+37
      %v1248 = vand.u32 %v1203, 2147483648
      %v1249 = vor.u32 1.1754944e-38, %v1248
      %v1250 = vsel %vm1247, %v1249, %v1245
      %v1251 = vrcp.pop %v1204
      %v1252 = vmul.f32 %v1204, %v1251
      %v1253 = vsub.f32 1.0, %v1252
      %v1254 = vmul.f32 %v1251, %v1253
      %v1255 = vadd.f32 %v1251, %v1254
      %vm1256 = vweird.f32 %v1204
      %vm1257 = vweird.f32 %v1251
      %vm1258 = vmor %vm1256, %vm1257
      %v1259 = vsel %vm1258, %v1251, %v1255
      %v1260 = vand.u32 2147483647, %v1204
      %vm1261 = vcmp.eq.f32.partialorder %v1260, 8.507059e+37
      %v1262 = vand.u32 %v1204, 2147483648
      %v1263 = vor.u32 1.1754944e-38, %v1262
      %v1264 = vsel %vm1261, %v1263, %v1259
      %v1265 = vrcp.pop %v1205
      %v1266 = vmul.f32 %v1205, %v1265
      %v1267 = vsub.f32 1.0, %v1266
      %v1268 = vmul.f32 %v1265, %v1267
      %v1269 = vadd.f32 %v1265, %v1268
      %vm1270 = vweird.f32 %v1205
      %vm1271 = vweird.f32 %v1265
      %vm1272 = vmor %vm1270, %vm1271
      %v1273 = vsel %vm1272, %v1265, %v1269
      %v1274 = vand.u32 2147483647, %v1205
      %vm1275 = vcmp.eq.f32.partialorder %v1274, 8.507059e+37
      %v1276 = vand.u32 %v1205, 2147483648
      %v1277 = vor.u32 1.1754944e-38, %v1276
      %v1278 = vsel %vm1275, %v1277, %v1273
      %v1279 = vrcp.pop %v1206
      %v1280 = vmul.f32 %v1206, %v1279
      %v1281 = vsub.f32 1.0, %v1280
      %v1282 = vmul.f32 %v1279, %v1281
      %v1283 = vadd.f32 %v1279, %v1282
      %vm1284 = vweird.f32 %v1206
      %vm1285 = vweird.f32 %v1279
      %vm1286 = vmor %vm1284, %vm1285
      %v1287 = vsel %vm1286, %v1279, %v1283
      %v1288 = vand.u32 2147483647, %v1206
      %vm1289 = vcmp.eq.f32.partialorder %v1288, 8.507059e+37
      %v1290 = vand.u32 %v1206, 2147483648
      %v1291 = vor.u32 1.1754944e-38, %v1290
      %v1292 = vsel %vm1289, %v1291, %v1287
      %v1293 = vrcp.pop %v1207
      %v1294 = vmul.f32 %v1207, %v1293
      %v1295 = vsub.f32 1.0, %v1294
      %v1296 = vmul.f32 %v1293, %v1295
      %v1297 = vadd.f32 %v1293, %v1296
      %vm1298 = vweird.f32 %v1207
      %vm1299 = vweird.f32 %v1293
      %vm1300 = vmor %vm1298, %vm1299
      %v1301 = vsel %vm1300, %v1293, %v1297
      %v1302 = vand.u32 2147483647, %v1207
      %vm1303 = vcmp.eq.f32.partialorder %v1302, 8.507059e+37
      %v1304 = vand.u32 %v1207, 2147483648
      %v1305 = vor.u32 1.1754944e-38, %v1304
      %v1306 = vsel %vm1303, %v1305, %v1301
      %v1307 = vrcp.pop %v1208
      %v1308 = vmul.f32 %v1208, %v1307
      %v1309 = vsub.f32 1.0, %v1308
      %v1310 = vmul.f32 %v1307, %v1309
      %v1311 = vadd.f32 %v1307, %v1310
      %vm1312 = vweird.f32 %v1208
      %vm1313 = vweird.f32 %v1307
      %vm1314 = vmor %vm1312, %vm1313
      %v1315 = vsel %vm1314, %v1307, %v1311
      %v1316 = vand.u32 2147483647, %v1208
      %vm1317 = vcmp.eq.f32.partialorder %v1316, 8.507059e+37
      %v1318 = vand.u32 %v1208, 2147483648
      %v1319 = vor.u32 1.1754944e-38, %v1318
      %v1320 = vsel %vm1317, %v1319, %v1315
      %v1321 = vmul.f32 %v1178, %v1222
      %v1322 = vmul.f32 %v1181, %v1236
      %v1323 = vmul.f32 %v1184, %v1250
      %v1324 = vmul.f32 %v1187, %v1264
      %v1325 = vmul.f32 %v1190, %v1278
      %v1326 = vmul.f32 %v1193, %v1292
      %v1327 = vmul.f32 %v1196, %v1306
      %v1328 = vmul.f32 %v1199, %v1320
      %v1329 = vld [vmem:[%s5] sm:$0xff]
      %v1330 = vld [vmem:[%s5 + $0x8] sm:$0xff]
      %v1331 = vld [vmem:[%s5 + $0x10] sm:$0xff]
      %v1332 = vld [vmem:[%s5 + $0x18] sm:$0xff]
      %v1334 = vsel %vm742, %v1321, 0
      %v1337 = vsel %vm742, %v1322, 0
      %v1340 = vsel %vm742, %v1323, 0
      %v1343 = vsel %vm742, %v1324, 0
      %v1346 = vsel %vm742, %v1325, 0
      %v1349 = vsel %vm742, %v1326, 0
      %v1352 = vsel %vm742, %v1327, 0
      %v1355 = vsel %vm742, %v1328, 0
      %1357 = vmatpush.msra.mxu0 0.0
      %1358 = vmatpush.msra.mxu0 0.0
      %1359 = vmatpush.msra.mxu0 0.0
      %1360 = vmatpush.msra.mxu0 0.0
      %1361 = vmatpush.msra.mxu0 0.0
      %1362 = vmatpush.msra.mxu0 0.0
      %1363 = vmatpush.msra.mxu0 0.0
      %1364 = vmatpush.msra.mxu0 0.0
      %1365 = vmatpush.msra.mxu0 0.0
      %1366 = vmatpush.msra.mxu0 0.0
      %1367 = vmatpush.msra.mxu0 0.0
      %1368 = vmatpush.msra.mxu0 0.0
      %1369 = vmatpush.msra.mxu0 %v1332
      %1370 = vmatpush.msra.mxu0 %v1331
      %1371 = vmatpush.msra.mxu0 %v1330
      %1372 = vmatpush.msra.mxu0 %v1329
      %1373 = vmatmul.f32.gmra.mxu0 %v1334
      %v1374 = vpop.f32.mrf.mxu0
      %v1375 = vadd.f32 0.0, %v1374
      %1376 = vmatmul.f32.gmra.mxu0 %v1337
      %v1377 = vpop.f32.mrf.mxu0
      %v1378 = vadd.f32 0.0, %v1377
      %1379 = vmatmul.f32.gmra.mxu0 %v1340
      %v1380 = vpop.f32.mrf.mxu0
      %v1381 = vadd.f32 0.0, %v1380
      %1382 = vmatmul.f32.gmra.mxu0 %v1343
      %v1383 = vpop.f32.mrf.mxu0
      %v1384 = vadd.f32 0.0, %v1383
      %1385 = vmatmul.f32.gmra.mxu0 %v1346
      %v1386 = vpop.f32.mrf.mxu0
      %v1387 = vadd.f32 0.0, %v1386
      %1388 = vmatmul.f32.gmra.mxu0 %v1349
      %v1389 = vpop.f32.mrf.mxu0
      %v1390 = vadd.f32 0.0, %v1389
      %1391 = vmatmul.f32.gmra.mxu0 %v1352
      %v1392 = vpop.f32.mrf.mxu0
      %v1393 = vadd.f32 0.0, %v1392
      %1394 = vmatmul.f32.gmra.mxu0 %v1355
      %v1395 = vpop.f32.mrf.mxu0
      %v1396 = vadd.f32 0.0, %v1395
      %1397 = vdwg.mxu0
      %1406 = vrot.lane.b32.xlu0 %v1375, 64
      %v1407 = vpop.permute.xlu0 %1406
      %1408 = vrot.lane.b32.xlu0 %v1378, 64
      %v1409 = vpop.permute.xlu0 %1408
      %1410 = vrot.lane.b32.xlu0 %v1381, 64
      %v1411 = vpop.permute.xlu0 %1410
      %1412 = vrot.lane.b32.xlu0 %v1384, 64
      %v1413 = vpop.permute.xlu0 %1412
      %1414 = vrot.lane.b32.xlu0 %v1387, 64
      %v1415 = vpop.permute.xlu0 %1414
      %1416 = vrot.lane.b32.xlu0 %v1390, 64
      %v1417 = vpop.permute.xlu0 %1416
      %1418 = vrot.lane.b32.xlu0 %v1393, 64
      %v1419 = vpop.permute.xlu0 %1418
      %1420 = vrot.lane.b32.xlu0 %v1396, 64
      %v1421 = vpop.permute.xlu0 %1420
      %v1430 = vadd.f32 %v711, %v1407
      %v1431 = vadd.f32 %v714, %v1409
      %v1432 = vadd.f32 %v717, %v1411
      %v1433 = vadd.f32 %v720, %v1413
      %v1434 = vadd.f32 %v723, %v1415
      %v1435 = vadd.f32 %v726, %v1417
      %v1436 = vadd.f32 %v729, %v1419
      %v1437 = vadd.f32 %v732, %v1421
      %v1438 = vld [vmem:[%s6] sm:$0x1]
      %v1440 = vperm.slane %v1438, 0
      %1441 = vrot.lane.b32.xlu0 %v1440, 64
      %v1442 = vpop.permute.xlu0 %1441
      %v1444 = vadd.f32 %v1430, %v1442
      %v1445 = vadd.f32 %v1431, %v1442
      %v1446 = vadd.f32 %v1432, %v1442
      %v1447 = vadd.f32 %v1433, %v1442
      %v1448 = vadd.f32 %v1434, %v1442
      %v1449 = vadd.f32 %v1435, %v1442
      %v1450 = vadd.f32 %v1436, %v1442
      %v1451 = vadd.f32 %v1437, %v1442
      %1460 = vrot.lane.b32.xlu0 %v1444, 64
      %v1461 = vpop.permute.xlu0 %1460
      %1462 = vrot.lane.b32.xlu0 %v1445, 64
      %v1463 = vpop.permute.xlu0 %1462
      %1464 = vrot.lane.b32.xlu0 %v1446, 64
      %v1465 = vpop.permute.xlu0 %1464
      %1466 = vrot.lane.b32.xlu0 %v1447, 64
      %v1467 = vpop.permute.xlu0 %1466
      %1468 = vrot.lane.b32.xlu0 %v1448, 64
      %v1469 = vpop.permute.xlu0 %1468
      %1470 = vrot.lane.b32.xlu0 %v1449, 64
      %v1471 = vpop.permute.xlu0 %1470
      %1472 = vrot.lane.b32.xlu0 %v1450, 64
      %v1473 = vpop.permute.xlu0 %1472
      %1474 = vrot.lane.b32.xlu0 %v1451, 64
      %v1475 = vpop.permute.xlu0 %1474
      %v1484 = vsel %vm742, %v1461, 0.0
      %1485 = vadd.xlane.f32.xlu0 %v1484
      %v1486 = vpop.xlane.xlu0 %1485
      %v1487 = vsel %vm742, %v1463, 0.0
      %1488 = vadd.xlane.f32.xlu0 %v1487
      %v1489 = vpop.xlane.xlu0 %1488
      %v1490 = vsel %vm742, %v1465, 0.0
      %1491 = vadd.xlane.f32.xlu0 %v1490
      %v1492 = vpop.xlane.xlu0 %1491
      %v1493 = vsel %vm742, %v1467, 0.0
      %1494 = vadd.xlane.f32.xlu0 %v1493
      %v1495 = vpop.xlane.xlu0 %1494
      %v1496 = vsel %vm742, %v1469, 0.0
      %1497 = vadd.xlane.f32.xlu0 %v1496
      %v1498 = vpop.xlane.xlu0 %1497
      %v1499 = vsel %vm742, %v1471, 0.0
      %1500 = vadd.xlane.f32.xlu0 %v1499
      %v1501 = vpop.xlane.xlu0 %1500
      %v1502 = vsel %vm742, %v1473, 0.0
      %1503 = vadd.xlane.f32.xlu0 %v1502
      %v1504 = vpop.xlane.xlu0 %1503
      %v1505 = vsel %vm742, %v1475, 0.0
      %1506 = vadd.xlane.f32.xlu0 %v1505
      %v1507 = vpop.xlane.xlu0 %1506
      %v1508 = vrcp.pop 32.0
      %v1509 = vmul.f32 32.0, %v1508
      %v1510 = vsub.f32 1.0, %v1509
      %v1511 = vmul.f32 %v1508, %v1510
      %v1512 = vadd.f32 %v1508, %v1511
      %vm1513 = vweird.f32 %v1508
      %v1514 = vsel %vm1513, %v1508, %v1512
      %v1515 = vmul.f32 %v1486, %v1514
      %v1516 = vmul.f32 %v1489, %v1514
      %v1517 = vmul.f32 %v1492, %v1514
      %v1518 = vmul.f32 %v1495, %v1514
      %v1519 = vmul.f32 %v1498, %v1514
      %v1520 = vmul.f32 %v1501, %v1514
      %v1521 = vmul.f32 %v1504, %v1514
      %v1522 = vmul.f32 %v1507, %v1514
      %v1523 = vsub.f32 %v1444, %v1515
      %v1524 = vsub.f32 %v1445, %v1516
      %v1525 = vsub.f32 %v1446, %v1517
      %v1526 = vsub.f32 %v1447, %v1518
      %v1527 = vsub.f32 %v1448, %v1519
      %v1528 = vsub.f32 %v1449, %v1520
      %v1529 = vsub.f32 %v1450, %v1521
      %v1530 = vsub.f32 %v1451, %v1522
      %v1531 = vmul.f32 %v1523, %v1523
      %v1532 = vmul.f32 %v1524, %v1524
      %v1533 = vmul.f32 %v1525, %v1525
      %v1534 = vmul.f32 %v1526, %v1526
      %v1535 = vmul.f32 %v1527, %v1527
      %v1536 = vmul.f32 %v1528, %v1528
      %v1537 = vmul.f32 %v1529, %v1529
      %v1538 = vmul.f32 %v1530, %v1530
      %1547 = vrot.lane.b32.xlu0 %v1531, 64
      %v1548 = vpop.permute.xlu0 %1547
      %1549 = vrot.lane.b32.xlu0 %v1532, 64
      %v1550 = vpop.permute.xlu0 %1549
      %1551 = vrot.lane.b32.xlu0 %v1533, 64
      %v1552 = vpop.permute.xlu0 %1551
      %1553 = vrot.lane.b32.xlu0 %v1534, 64
      %v1554 = vpop.permute.xlu0 %1553
      %1555 = vrot.lane.b32.xlu0 %v1535, 64
      %v1556 = vpop.permute.xlu0 %1555
      %1557 = vrot.lane.b32.xlu0 %v1536, 64
      %v1558 = vpop.permute.xlu0 %1557
      %1559 = vrot.lane.b32.xlu0 %v1537, 64
      %v1560 = vpop.permute.xlu0 %1559
      %1561 = vrot.lane.b32.xlu0 %v1538, 64
      %v1562 = vpop.permute.xlu0 %1561
      %v1571 = vsel %vm742, %v1548, 0.0
      %1572 = vadd.xlane.f32.xlu0 %v1571
      %v1573 = vpop.xlane.xlu0 %1572
      %v1574 = vsel %vm742, %v1550, 0.0
      %1575 = vadd.xlane.f32.xlu0 %v1574
      %v1576 = vpop.xlane.xlu0 %1575
      %v1577 = vsel %vm742, %v1552, 0.0
      %1578 = vadd.xlane.f32.xlu0 %v1577
      %v1579 = vpop.xlane.xlu0 %1578
      %v1580 = vsel %vm742, %v1554, 0.0
      %1581 = vadd.xlane.f32.xlu0 %v1580
      %v1582 = vpop.xlane.xlu0 %1581
      %v1583 = vsel %vm742, %v1556, 0.0
      %1584 = vadd.xlane.f32.xlu0 %v1583
      %v1585 = vpop.xlane.xlu0 %1584
      %v1586 = vsel %vm742, %v1558, 0.0
      %1587 = vadd.xlane.f32.xlu0 %v1586
      %v1588 = vpop.xlane.xlu0 %1587
      %v1589 = vsel %vm742, %v1560, 0.0
      %1590 = vadd.xlane.f32.xlu0 %v1589
      %v1591 = vpop.xlane.xlu0 %1590
      %v1592 = vsel %vm742, %v1562, 0.0
      %1593 = vadd.xlane.f32.xlu0 %v1592
      %v1594 = vpop.xlane.xlu0 %1593
      %v1595 = vmul.f32 %v1573, %v1514
      %v1596 = vmul.f32 %v1576, %v1514
      %v1597 = vmul.f32 %v1579, %v1514
      %v1598 = vmul.f32 %v1582, %v1514
      %v1599 = vmul.f32 %v1585, %v1514
      %v1600 = vmul.f32 %v1588, %v1514
      %v1601 = vmul.f32 %v1591, %v1514
      %v1602 = vmul.f32 %v1594, %v1514
      %v1603 = vadd.f32 %v1595, 1e-05
      %v1604 = vadd.f32 %v1596, 1e-05
      %v1605 = vadd.f32 %v1597, 1e-05
      %v1606 = vadd.f32 %v1598, 1e-05
      %v1607 = vadd.f32 %v1599, 1e-05
      %v1608 = vadd.f32 %v1600, 1e-05
      %v1609 = vadd.f32 %v1601, 1e-05
      %v1610 = vadd.f32 %v1602, 1e-05
      %v1611 = vrsqrt.pop %v1603
      %v1612 = vmul.f32 %v1611, %v1603
      %v1613 = vmul.f32 %v1612, %v1611
      %v1614 = vmul.f32 0.5, %v1613
      %v1615 = vsub.f32 1.5, %v1614
      %v1616 = vmul.f32 %v1611, %v1615
      %vm1617 = vweird.f32 %v1603
      %vm1618 = vweird.f32 %v1611
      %vm1619 = vmor %vm1617, %vm1618
      %v1620 = vsel %vm1619, %v1611, %v1616
      %v1621 = vrsqrt.pop %v1604
      %v1622 = vmul.f32 %v1621, %v1604
      %v1623 = vmul.f32 %v1622, %v1621
      %v1624 = vmul.f32 0.5, %v1623
      %v1625 = vsub.f32 1.5, %v1624
      %v1626 = vmul.f32 %v1621, %v1625
      %vm1627 = vweird.f32 %v1604
      %vm1628 = vweird.f32 %v1621
      %vm1629 = vmor %vm1627, %vm1628
      %v1630 = vsel %vm1629, %v1621, %v1626
      %v1631 = vrsqrt.pop %v1605
      %v1632 = vmul.f32 %v1631, %v1605
      %v1633 = vmul.f32 %v1632, %v1631
      %v1634 = vmul.f32 0.5, %v1633
      %v1635 = vsub.f32 1.5, %v1634
      %v1636 = vmul.f32 %v1631, %v1635
      %vm1637 = vweird.f32 %v1605
      %vm1638 = vweird.f32 %v1631
      %vm1639 = vmor %vm1637, %vm1638
      %v1640 = vsel %vm1639, %v1631, %v1636
      %v1641 = vrsqrt.pop %v1606
      %v1642 = vmul.f32 %v1641, %v1606
      %v1643 = vmul.f32 %v1642, %v1641
      %v1644 = vmul.f32 0.5, %v1643
      %v1645 = vsub.f32 1.5, %v1644
      %v1646 = vmul.f32 %v1641, %v1645
      %vm1647 = vweird.f32 %v1606
      %vm1648 = vweird.f32 %v1641
      %vm1649 = vmor %vm1647, %vm1648
      %v1650 = vsel %vm1649, %v1641, %v1646
      %v1651 = vrsqrt.pop %v1607
      %v1652 = vmul.f32 %v1651, %v1607
      %v1653 = vmul.f32 %v1652, %v1651
      %v1654 = vmul.f32 0.5, %v1653
      %v1655 = vsub.f32 1.5, %v1654
      %v1656 = vmul.f32 %v1651, %v1655
      %vm1657 = vweird.f32 %v1607
      %vm1658 = vweird.f32 %v1651
      %vm1659 = vmor %vm1657, %vm1658
      %v1660 = vsel %vm1659, %v1651, %v1656
      %v1661 = vrsqrt.pop %v1608
      %v1662 = vmul.f32 %v1661, %v1608
      %v1663 = vmul.f32 %v1662, %v1661
      %v1664 = vmul.f32 0.5, %v1663
      %v1665 = vsub.f32 1.5, %v1664
      %v1666 = vmul.f32 %v1661, %v1665
      %vm1667 = vweird.f32 %v1608
      %vm1668 = vweird.f32 %v1661
      %vm1669 = vmor %vm1667, %vm1668
      %v1670 = vsel %vm1669, %v1661, %v1666
      %v1671 = vrsqrt.pop %v1609
      %v1672 = vmul.f32 %v1671, %v1609
      %v1673 = vmul.f32 %v1672, %v1671
      %v1674 = vmul.f32 0.5, %v1673
      %v1675 = vsub.f32 1.5, %v1674
      %v1676 = vmul.f32 %v1671, %v1675
      %vm1677 = vweird.f32 %v1609
      %vm1678 = vweird.f32 %v1671
      %vm1679 = vmor %vm1677, %vm1678
      %v1680 = vsel %vm1679, %v1671, %v1676
      %v1681 = vrsqrt.pop %v1610
      %v1682 = vmul.f32 %v1681, %v1610
      %v1683 = vmul.f32 %v1682, %v1681
      %v1684 = vmul.f32 0.5, %v1683
      %v1685 = vsub.f32 1.5, %v1684
      %v1686 = vmul.f32 %v1681, %v1685
      %vm1687 = vweird.f32 %v1610
      %vm1688 = vweird.f32 %v1681
      %vm1689 = vmor %vm1687, %vm1688
      %v1690 = vsel %vm1689, %v1681, %v1686
      %v1691 = vmul.f32 %v1523, %v1620
      %v1692 = vmul.f32 %v1524, %v1630
      %v1693 = vmul.f32 %v1525, %v1640
      %v1694 = vmul.f32 %v1526, %v1650
      %v1695 = vmul.f32 %v1527, %v1660
      %v1696 = vmul.f32 %v1528, %v1670
      %v1697 = vmul.f32 %v1529, %v1680
      %v1698 = vmul.f32 %v1530, %v1690
      %v1699 = vld [vmem:[%s7] sm:$0x1]
      %v1701 = vperm.slane %v1699, 0
      %1702 = vrot.lane.b32.xlu0 %v1701, 64
      %v1703 = vpop.permute.xlu0 %1702
      %v1705 = vmul.f32 %v1691, %v1703
      %v1706 = vmul.f32 %v1692, %v1703
      %v1707 = vmul.f32 %v1693, %v1703
      %v1708 = vmul.f32 %v1694, %v1703
      %v1709 = vmul.f32 %v1695, %v1703
      %v1710 = vmul.f32 %v1696, %v1703
      %v1711 = vmul.f32 %v1697, %v1703
      %v1712 = vmul.f32 %v1698, %v1703
      %v1713 = vld [vmem:[%s8] sm:$0x1]
      %v1715 = vperm.slane %v1713, 0
      %1716 = vrot.lane.b32.xlu0 %v1715, 64
      %v1717 = vpop.permute.xlu0 %1716
      %v1719 = vadd.f32 %v1705, %v1717
      %v1720 = vadd.f32 %v1706, %v1717
      %v1721 = vadd.f32 %v1707, %v1717
      %v1722 = vadd.f32 %v1708, %v1717
      %v1723 = vadd.f32 %v1709, %v1717
      %v1724 = vadd.f32 %v1710, %v1717
      %v1725 = vadd.f32 %v1711, %v1717
      %v1726 = vadd.f32 %v1712, %v1717
      %v1727 = vld [vmem:[%s9] sm:$0xff]
      %v1728 = vld [vmem:[%s9 + $0x8] sm:$0xff]
      %v1729 = vld [vmem:[%s9 + $0x10] sm:$0xff]
      %v1730 = vld [vmem:[%s9 + $0x18] sm:$0xff]
      %v1731 = vld [vmem:[%s10] sm:$0x1]
      %v1733 = vperm.slane %v1731, 0
      %1743 = vrot.lane.b32.xlu0 %v1719, 64
      %v1744 = vpop.permute.xlu0 %1743
      %1745 = vrot.lane.b32.xlu0 %v1720, 64
      %v1746 = vpop.permute.xlu0 %1745
      %1747 = vrot.lane.b32.xlu0 %v1721, 64
      %v1748 = vpop.permute.xlu0 %1747
      %1749 = vrot.lane.b32.xlu0 %v1722, 64
      %v1750 = vpop.permute.xlu0 %1749
      %1751 = vrot.lane.b32.xlu0 %v1723, 64
      %v1752 = vpop.permute.xlu0 %1751
      %1753 = vrot.lane.b32.xlu0 %v1724, 64
      %v1754 = vpop.permute.xlu0 %1753
      %1755 = vrot.lane.b32.xlu0 %v1725, 64
      %v1756 = vpop.permute.xlu0 %1755
      %1757 = vrot.lane.b32.xlu0 %v1726, 64
      %v1758 = vpop.permute.xlu0 %1757
      %v1759 = vsel %vm742, %v1744, 0
      %v1761 = vsel %vm742, %v1746, 0
      %v1763 = vsel %vm742, %v1748, 0
      %v1765 = vsel %vm742, %v1750, 0
      %v1767 = vsel %vm742, %v1752, 0
      %v1769 = vsel %vm742, %v1754, 0
      %v1771 = vsel %vm742, %v1756, 0
      %v1773 = vsel %vm742, %v1758, 0
      %1775 = vmatpush.msra.mxu0 0.0
      %1776 = vmatpush.msra.mxu0 0.0
      %1777 = vmatpush.msra.mxu0 0.0
      %1778 = vmatpush.msra.mxu0 0.0
      %1779 = vmatpush.msra.mxu0 0.0
      %1780 = vmatpush.msra.mxu0 0.0
      %1781 = vmatpush.msra.mxu0 0.0
      %1782 = vmatpush.msra.mxu0 0.0
      %1783 = vmatpush.msra.mxu0 0.0
      %1784 = vmatpush.msra.mxu0 0.0
      %1785 = vmatpush.msra.mxu0 0.0
      %1786 = vmatpush.msra.mxu0 0.0
      %1787 = vmatpush.msra.mxu0 %v1730
      %1788 = vmatpush.msra.mxu0 %v1729
      %1789 = vmatpush.msra.mxu0 %v1728
      %1790 = vmatpush.msra.mxu0 %v1727
      %1791 = vmatmul.f32.gmra.mxu0 %v1759
      %v1792 = vpop.f32.mrf.mxu0
      %v1793 = vadd.f32 %v1733, %v1792
      %1794 = vmatmul.f32.gmra.mxu0 %v1761
      %v1795 = vpop.f32.mrf.mxu0
      %v1796 = vadd.f32 %v1733, %v1795
      %1797 = vmatmul.f32.gmra.mxu0 %v1763
      %v1798 = vpop.f32.mrf.mxu0
      %v1799 = vadd.f32 %v1733, %v1798
      %1800 = vmatmul.f32.gmra.mxu0 %v1765
      %v1801 = vpop.f32.mrf.mxu0
      %v1802 = vadd.f32 %v1733, %v1801
      %1803 = vmatmul.f32.gmra.mxu0 %v1767
      %v1804 = vpop.f32.mrf.mxu0
      %v1805 = vadd.f32 %v1733, %v1804
      %1806 = vmatmul.f32.gmra.mxu0 %v1769
      %v1807 = vpop.f32.mrf.mxu0
      %v1808 = vadd.f32 %v1733, %v1807
      %1809 = vmatmul.f32.gmra.mxu0 %v1771
      %v1810 = vpop.f32.mrf.mxu0
      %v1811 = vadd.f32 %v1733, %v1810
      %1812 = vmatmul.f32.gmra.mxu0 %v1773
      %v1813 = vpop.f32.mrf.mxu0
      %v1814 = vadd.f32 %v1733, %v1813
      %1815 = vdwg.mxu0
      %v1816 = vmul.f32 %v1793, 0.5
      %v1817 = vmul.f32 %v1796, 0.5
      %v1818 = vmul.f32 %v1799, 0.5
      %v1819 = vmul.f32 %v1802, 0.5
      %v1820 = vmul.f32 %v1805, 0.5
      %v1821 = vmul.f32 %v1808, 0.5
      %v1822 = vmul.f32 %v1811, 0.5
      %v1823 = vmul.f32 %v1814, 0.5
      %v1824 = vmul.f32 %v1793, 0.70710677
      %v1825 = vmul.f32 %v1796, 0.70710677
      %v1826 = vmul.f32 %v1799, 0.70710677
      %v1827 = vmul.f32 %v1802, 0.70710677
      %v1828 = vmul.f32 %v1805, 0.70710677
      %v1829 = vmul.f32 %v1808, 0.70710677
      %v1830 = vmul.f32 %v1811, 0.70710677
      %v1831 = vmul.f32 %v1814, 0.70710677
      %v1832 = vmul.f32 %v1824, %v1824
      %v1833 = vmin.f32 16.0, %v1832
      %v1834 = vmul.f32 %v1833, 2.1237322e-06
      %v1835 = vadd.f32 %v1834, 0.00028619796
      %v1836 = vmul.f32 %v1833, %v1835
      %v1837 = vadd.f32 %v1836, 0.0036580483
      %v1838 = vmul.f32 %v1833, %v1837
      %v1839 = vadd.f32 %v1838, 0.05243302
      %v1840 = vmul.f32 %v1833, %v1839
      %v1841 = vadd.f32 %v1840, 0.18741608
      %v1842 = vmul.f32 %v1833, %v1841
      %v1843 = vadd.f32 %v1842, 1.1283791
      %v1844 = vmul.f32 %v1824, %v1843
      %v1845 = vmul.f32 %v1833, 3.8918573e-05
      %v1846 = vadd.f32 %v1845, 0.001143296
      %v1847 = vmul.f32 %v1833, %v1846
      %v1848 = vadd.f32 %v1847, 0.014752088
      %v1849 = vmul.f32 %v1833, %v1848
      %v1850 = vadd.f32 %v1849, 0.112945676
      %v1851 = vmul.f32 %v1833, %v1850
      %v1852 = vadd.f32 %v1851, 0.4994258
      %v1853 = vmul.f32 %v1833, %v1852
      %v1854 = vadd.f32 %v1853, 1.0
      %v1855 = vrcp.pop %v1854
      %v1856 = vmul.f32 %v1854, %v1855
      %v1857 = vsub.f32 1.0, %v1856
      %v1858 = vmul.f32 %v1855, %v1857
      %v1859 = vadd.f32 %v1855, %v1858
      %vm1860 = vweird.f32 %v1854
      %vm1861 = vweird.f32 %v1855
      %vm1862 = vmor %vm1860, %vm1861
      %v1863 = vsel %vm1862, %v1855, %v1859
      %v1864 = vand.u32 2147483647, %v1854
      %vm1865 = vcmp.eq.f32.partialorder %v1864, 8.507059e+37
      %v1866 = vand.u32 %v1854, 2147483648
      %v1867 = vor.u32 1.1754944e-38, %v1866
      %v1868 = vsel %vm1865, %v1867, %v1863
      %v1869 = vmul.f32 %v1844, %v1868
      %v1870 = vmin.f32 %v1869, 1.0
      %v1871 = vmax.f32 %v1870, -1.0
      %v1872 = vmul.f32 %v1825, %v1825
      %v1873 = vmin.f32 16.0, %v1872
      %v1874 = vmul.f32 %v1873, 2.1237322e-06
      %v1875 = vadd.f32 %v1874, 0.00028619796
      %v1876 = vmul.f32 %v1873, %v1875
      %v1877 = vadd.f32 %v1876, 0.0036580483
      %v1878 = vmul.f32 %v1873, %v1877
      %v1879 = vadd.f32 %v1878, 0.05243302
      %v1880 = vmul.f32 %v1873, %v1879
      %v1881 = vadd.f32 %v1880, 0.18741608
      %v1882 = vmul.f32 %v1873, %v1881
      %v1883 = vadd.f32 %v1882, 1.1283791
      %v1884 = vmul.f32 %v1825, %v1883
      %v1885 = vmul.f32 %v1873, 3.8918573e-05
      %v1886 = vadd.f32 %v1885, 0.001143296
      %v1887 = vmul.f32 %v1873, %v1886
      %v1888 = vadd.f32 %v1887, 0.014752088
      %v1889 = vmul.f32 %v1873, %v1888
      %v1890 = vadd.f32 %v1889, 0.112945676
      %v1891 = vmul.f32 %v1873, %v1890
      %v1892 = vadd.f32 %v1891, 0.4994258
      %v1893 = vmul.f32 %v1873, %v1892
      %v1894 = vadd.f32 %v1893, 1.0
      %v1895 = vrcp.pop %v1894
      %v1896 = vmul.f32 %v1894, %v1895
      %v1897 = vsub.f32 1.0, %v1896
      %v1898 = vmul.f32 %v1895, %v1897
      %v1899 = vadd.f32 %v1895, %v1898
      %vm1900 = vweird.f32 %v1894
      %vm1901 = vweird.f32 %v1895
      %vm1902 = vmor %vm1900, %vm1901
      %v1903 = vsel %vm1902, %v1895, %v1899
      %v1904 = vand.u32 2147483647, %v1894
      %vm1905 = vcmp.eq.f32.partialorder %v1904, 8.507059e+37
      %v1906 = vand.u32 %v1894, 2147483648
      %v1907 = vor.u32 1.1754944e-38, %v1906
      %v1908 = vsel %vm1905, %v1907, %v1903
      %v1909 = vmul.f32 %v1884, %v1908
      %v1910 = vmin.f32 %v1909, 1.0
      %v1911 = vmax.f32 %v1910, -1.0
      %v1912 = vmul.f32 %v1826, %v1826
      %v1913 = vmin.f32 16.0, %v1912
      %v1914 = vmul.f32 %v1913, 2.1237322e-06
      %v1915 = vadd.f32 %v1914, 0.00028619796
      %v1916 = vmul.f32 %v1913, %v1915
      %v1917 = vadd.f32 %v1916, 0.0036580483
      %v1918 = vmul.f32 %v1913, %v1917
      %v1919 = vadd.f32 %v1918, 0.05243302
      %v1920 = vmul.f32 %v1913, %v1919
      %v1921 = vadd.f32 %v1920, 0.18741608
      %v1922 = vmul.f32 %v1913, %v1921
      %v1923 = vadd.f32 %v1922, 1.1283791
      %v1924 = vmul.f32 %v1826, %v1923
      %v1925 = vmul.f32 %v1913, 3.8918573e-05
      %v1926 = vadd.f32 %v1925, 0.001143296
      %v1927 = vmul.f32 %v1913, %v1926
      %v1928 = vadd.f32 %v1927, 0.014752088
      %v1929 = vmul.f32 %v1913, %v1928
      %v1930 = vadd.f32 %v1929, 0.112945676
      %v1931 = vmul.f32 %v1913, %v1930
      %v1932 = vadd.f32 %v1931, 0.4994258
      %v1933 = vmul.f32 %v1913, %v1932
      %v1934 = vadd.f32 %v1933, 1.0
      %v1935 = vrcp.pop %v1934
      %v1936 = vmul.f32 %v1934, %v1935
      %v1937 = vsub.f32 1.0, %v1936
      %v1938 = vmul.f32 %v1935, %v1937
      %v1939 = vadd.f32 %v1935, %v1938
      %vm1940 = vweird.f32 %v1934
      %vm1941 = vweird.f32 %v1935
      %vm1942 = vmor %vm1940, %vm1941
      %v1943 = vsel %vm1942, %v1935, %v1939
      %v1944 = vand.u32 2147483647, %v1934
      %vm1945 = vcmp.eq.f32.partialorder %v1944, 8.507059e+37
      %v1946 = vand.u32 %v1934, 2147483648
      %v1947 = vor.u32 1.1754944e-38, %v1946
      %v1948 = vsel %vm1945, %v1947, %v1943
      %v1949 = vmul.f32 %v1924, %v1948
      %v1950 = vmin.f32 %v1949, 1.0
      %v1951 = vmax.f32 %v1950, -1.0
      %v1952 = vmul.f32 %v1827, %v1827
      %v1953 = vmin.f32 16.0, %v1952
      %v1954 = vmul.f32 %v1953, 2.1237322e-06
      %v1955 = vadd.f32 %v1954, 0.00028619796
      %v1956 = vmul.f32 %v1953, %v1955
      %v1957 = vadd.f32 %v1956, 0.0036580483
      %v1958 = vmul.f32 %v1953, %v1957
      %v1959 = vadd.f32 %v1958, 0.05243302
      %v1960 = vmul.f32 %v1953, %v1959
      %v1961 = vadd.f32 %v1960, 0.18741608
      %v1962 = vmul.f32 %v1953, %v1961
      %v1963 = vadd.f32 %v1962, 1.1283791
      %v1964 = vmul.f32 %v1827, %v1963
      %v1965 = vmul.f32 %v1953, 3.8918573e-05
      %v1966 = vadd.f32 %v1965, 0.001143296
      %v1967 = vmul.f32 %v1953, %v1966
      %v1968 = vadd.f32 %v1967, 0.014752088
      %v1969 = vmul.f32 %v1953, %v1968
      %v1970 = vadd.f32 %v1969, 0.112945676
      %v1971 = vmul.f32 %v1953, %v1970
      %v1972 = vadd.f32 %v1971, 0.4994258
      %v1973 = vmul.f32 %v1953, %v1972
      %v1974 = vadd.f32 %v1973, 1.0
      %v1975 = vrcp.pop %v1974
      %v1976 = vmul.f32 %v1974, %v1975
      %v1977 = vsub.f32 1.0, %v1976
      %v1978 = vmul.f32 %v1975, %v1977
      %v1979 = vadd.f32 %v1975, %v1978
      %vm1980 = vweird.f32 %v1974
      %vm1981 = vweird.f32 %v1975
      %vm1982 = vmor %vm1980, %vm1981
      %v1983 = vsel %vm1982, %v1975, %v1979
      %v1984 = vand.u32 2147483647, %v1974
      %vm1985 = vcmp.eq.f32.partialorder %v1984, 8.507059e+37
      %v1986 = vand.u32 %v1974, 2147483648
      %v1987 = vor.u32 1.1754944e-38, %v1986
      %v1988 = vsel %vm1985, %v1987, %v1983
      %v1989 = vmul.f32 %v1964, %v1988
      %v1990 = vmin.f32 %v1989, 1.0
      %v1991 = vmax.f32 %v1990, -1.0
      %v1992 = vmul.f32 %v1828, %v1828
      %v1993 = vmin.f32 16.0, %v1992
      %v1994 = vmul.f32 %v1993, 2.1237322e-06
      %v1995 = vadd.f32 %v1994, 0.00028619796
      %v1996 = vmul.f32 %v1993, %v1995
      %v1997 = vadd.f32 %v1996, 0.0036580483
      %v1998 = vmul.f32 %v1993, %v1997
      %v1999 = vadd.f32 %v1998, 0.05243302
      %v2000 = vmul.f32 %v1993, %v1999
      %v2001 = vadd.f32 %v2000, 0.18741608
      %v2002 = vmul.f32 %v1993, %v2001
      %v2003 = vadd.f32 %v2002, 1.1283791
      %v2004 = vmul.f32 %v1828, %v2003
      %v2005 = vmul.f32 %v1993, 3.8918573e-05
      %v2006 = vadd.f32 %v2005, 0.001143296
      %v2007 = vmul.f32 %v1993, %v2006
      %v2008 = vadd.f32 %v2007, 0.014752088
      %v2009 = vmul.f32 %v1993, %v2008
      %v2010 = vadd.f32 %v2009, 0.112945676
      %v2011 = vmul.f32 %v1993, %v2010
      %v2012 = vadd.f32 %v2011, 0.4994258
      %v2013 = vmul.f32 %v1993, %v2012
      %v2014 = vadd.f32 %v2013, 1.0
      %v2015 = vrcp.pop %v2014
      %v2016 = vmul.f32 %v2014, %v2015
      %v2017 = vsub.f32 1.0, %v2016
      %v2018 = vmul.f32 %v2015, %v2017
      %v2019 = vadd.f32 %v2015, %v2018
      %vm2020 = vweird.f32 %v2014
      %vm2021 = vweird.f32 %v2015
      %vm2022 = vmor %vm2020, %vm2021
      %v2023 = vsel %vm2022, %v2015, %v2019
      %v2024 = vand.u32 2147483647, %v2014
      %vm2025 = vcmp.eq.f32.partialorder %v2024, 8.507059e+37
      %v2026 = vand.u32 %v2014, 2147483648
      %v2027 = vor.u32 1.1754944e-38, %v2026
      %v2028 = vsel %vm2025, %v2027, %v2023
      %v2029 = vmul.f32 %v2004, %v2028
      %v2030 = vmin.f32 %v2029, 1.0
      %v2031 = vmax.f32 %v2030, -1.0
      %v2032 = vmul.f32 %v1829, %v1829
      %v2033 = vmin.f32 16.0, %v2032
      %v2034 = vmul.f32 %v2033, 2.1237322e-06
      %v2035 = vadd.f32 %v2034, 0.00028619796
      %v2036 = vmul.f32 %v2033, %v2035
      %v2037 = vadd.f32 %v2036, 0.0036580483
      %v2038 = vmul.f32 %v2033, %v2037
      %v2039 = vadd.f32 %v2038, 0.05243302
      %v2040 = vmul.f32 %v2033, %v2039
      %v2041 = vadd.f32 %v2040, 0.18741608
      %v2042 = vmul.f32 %v2033, %v2041
      %v2043 = vadd.f32 %v2042, 1.1283791
      %v2044 = vmul.f32 %v1829, %v2043
      %v2045 = vmul.f32 %v2033, 3.8918573e-05
      %v2046 = vadd.f32 %v2045, 0.001143296
      %v2047 = vmul.f32 %v2033, %v2046
      %v2048 = vadd.f32 %v2047, 0.014752088
      %v2049 = vmul.f32 %v2033, %v2048
      %v2050 = vadd.f32 %v2049, 0.112945676
      %v2051 = vmul.f32 %v2033, %v2050
      %v2052 = vadd.f32 %v2051, 0.4994258
      %v2053 = vmul.f32 %v2033, %v2052
      %v2054 = vadd.f32 %v2053, 1.0
      %v2055 = vrcp.pop %v2054
      %v2056 = vmul.f32 %v2054, %v2055
      %v2057 = vsub.f32 1.0, %v2056
      %v2058 = vmul.f32 %v2055, %v2057
      %v2059 = vadd.f32 %v2055, %v2058
      %vm2060 = vweird.f32 %v2054
      %vm2061 = vweird.f32 %v2055
      %vm2062 = vmor %vm2060, %vm2061
      %v2063 = vsel %vm2062, %v2055, %v2059
      %v2064 = vand.u32 2147483647, %v2054
      %vm2065 = vcmp.eq.f32.partialorder %v2064, 8.507059e+37
      %v2066 = vand.u32 %v2054, 2147483648
      %v2067 = vor.u32 1.1754944e-38, %v2066
      %v2068 = vsel %vm2065, %v2067, %v2063
      %v2069 = vmul.f32 %v2044, %v2068
      %v2070 = vmin.f32 %v2069, 1.0
      %v2071 = vmax.f32 %v2070, -1.0
      %v2072 = vmul.f32 %v1830, %v1830
      %v2073 = vmin.f32 16.0, %v2072
      %v2074 = vmul.f32 %v2073, 2.1237322e-06
      %v2075 = vadd.f32 %v2074, 0.00028619796
      %v2076 = vmul.f32 %v2073, %v2075
      %v2077 = vadd.f32 %v2076, 0.0036580483
      %v2078 = vmul.f32 %v2073, %v2077
      %v2079 = vadd.f32 %v2078, 0.05243302
      %v2080 = vmul.f32 %v2073, %v2079
      %v2081 = vadd.f32 %v2080, 0.18741608
      %v2082 = vmul.f32 %v2073, %v2081
      %v2083 = vadd.f32 %v2082, 1.1283791
      %v2084 = vmul.f32 %v1830, %v2083
      %v2085 = vmul.f32 %v2073, 3.8918573e-05
      %v2086 = vadd.f32 %v2085, 0.001143296
      %v2087 = vmul.f32 %v2073, %v2086
      %v2088 = vadd.f32 %v2087, 0.014752088
      %v2089 = vmul.f32 %v2073, %v2088
      %v2090 = vadd.f32 %v2089, 0.112945676
      %v2091 = vmul.f32 %v2073, %v2090
      %v2092 = vadd.f32 %v2091, 0.4994258
      %v2093 = vmul.f32 %v2073, %v2092
      %v2094 = vadd.f32 %v2093, 1.0
      %v2095 = vrcp.pop %v2094
      %v2096 = vmul.f32 %v2094, %v2095
      %v2097 = vsub.f32 1.0, %v2096
      %v2098 = vmul.f32 %v2095, %v2097
      %v2099 = vadd.f32 %v2095, %v2098
      %vm2100 = vweird.f32 %v2094
      %vm2101 = vweird.f32 %v2095
      %vm2102 = vmor %vm2100, %vm2101
      %v2103 = vsel %vm2102, %v2095, %v2099
      %v2104 = vand.u32 2147483647, %v2094
      %vm2105 = vcmp.eq.f32.partialorder %v2104, 8.507059e+37
      %v2106 = vand.u32 %v2094, 2147483648
      %v2107 = vor.u32 1.1754944e-38, %v2106
      %v2108 = vsel %vm2105, %v2107, %v2103
      %v2109 = vmul.f32 %v2084, %v2108
      %v2110 = vmin.f32 %v2109, 1.0
      %v2111 = vmax.f32 %v2110, -1.0
      %v2112 = vmul.f32 %v1831, %v1831
      %v2113 = vmin.f32 16.0, %v2112
      %v2114 = vmul.f32 %v2113, 2.1237322e-06
      %v2115 = vadd.f32 %v2114, 0.00028619796
      %v2116 = vmul.f32 %v2113, %v2115
      %v2117 = vadd.f32 %v2116, 0.0036580483
      %v2118 = vmul.f32 %v2113, %v2117
      %v2119 = vadd.f32 %v2118, 0.05243302
      %v2120 = vmul.f32 %v2113, %v2119
      %v2121 = vadd.f32 %v2120, 0.18741608
      %v2122 = vmul.f32 %v2113, %v2121
      %v2123 = vadd.f32 %v2122, 1.1283791
      %v2124 = vmul.f32 %v1831, %v2123
      %v2125 = vmul.f32 %v2113, 3.8918573e-05
      %v2126 = vadd.f32 %v2125, 0.001143296
      %v2127 = vmul.f32 %v2113, %v2126
      %v2128 = vadd.f32 %v2127, 0.014752088
      %v2129 = vmul.f32 %v2113, %v2128
      %v2130 = vadd.f32 %v2129, 0.112945676
      %v2131 = vmul.f32 %v2113, %v2130
      %v2132 = vadd.f32 %v2131, 0.4994258
      %v2133 = vmul.f32 %v2113, %v2132
      %v2134 = vadd.f32 %v2133, 1.0
      %v2135 = vrcp.pop %v2134
      %v2136 = vmul.f32 %v2134, %v2135
      %v2137 = vsub.f32 1.0, %v2136
      %v2138 = vmul.f32 %v2135, %v2137
      %v2139 = vadd.f32 %v2135, %v2138
      %vm2140 = vweird.f32 %v2134
      %vm2141 = vweird.f32 %v2135
      %vm2142 = vmor %vm2140, %vm2141
      %v2143 = vsel %vm2142, %v2135, %v2139
      %v2144 = vand.u32 2147483647, %v2134
      %vm2145 = vcmp.eq.f32.partialorder %v2144, 8.507059e+37
      %v2146 = vand.u32 %v2134, 2147483648
      %v2147 = vor.u32 1.1754944e-38, %v2146
      %v2148 = vsel %vm2145, %v2147, %v2143
      %v2149 = vmul.f32 %v2124, %v2148
      %v2150 = vmin.f32 %v2149, 1.0
      %v2151 = vmax.f32 %v2150, -1.0
      %v2152 = vadd.f32 %v1871, 1.0
      %v2153 = vadd.f32 %v1911, 1.0
      %v2154 = vadd.f32 %v1951, 1.0
      %v2155 = vadd.f32 %v1991, 1.0
      %v2156 = vadd.f32 %v2031, 1.0
      %v2157 = vadd.f32 %v2071, 1.0
      %v2158 = vadd.f32 %v2111, 1.0
      %v2159 = vadd.f32 %v2151, 1.0
      %v2160 = vmul.f32 %v1816, %v2152
      %v2161 = vmul.f32 %v1817, %v2153
      %v2162 = vmul.f32 %v1818, %v2154
      %v2163 = vmul.f32 %v1819, %v2155
      %v2164 = vmul.f32 %v1820, %v2156
      %v2165 = vmul.f32 %v1821, %v2157
      %v2166 = vmul.f32 %v1822, %v2158
      %v2167 = vmul.f32 %v1823, %v2159
      %v2168 = vld [vmem:[%s11] sm:$0xff]
      %v2169 = vld [vmem:[%s11 + $0x8] sm:$0xff]
      %v2170 = vld [vmem:[%s11 + $0x10] sm:$0xff]
      %v2171 = vld [vmem:[%s11 + $0x18] sm:$0xff]
      %v2172 = vld [vmem:[%s12] sm:$0x1]
      %v2174 = vperm.slane %v2172, 0
      %v2177 = vsel %vm742, %v2160, 0
      %v2180 = vsel %vm742, %v2161, 0
      %v2183 = vsel %vm742, %v2162, 0
      %v2186 = vsel %vm742, %v2163, 0
      %v2189 = vsel %vm742, %v2164, 0
      %v2192 = vsel %vm742, %v2165, 0
      %v2195 = vsel %vm742, %v2166, 0
      %v2198 = vsel %vm742, %v2167, 0
      %2200 = vmatpush.msra.mxu0 0.0
      %2201 = vmatpush.msra.mxu0 0.0
      %2202 = vmatpush.msra.mxu0 0.0
      %2203 = vmatpush.msra.mxu0 0.0
      %2204 = vmatpush.msra.mxu0 0.0
      %2205 = vmatpush.msra.mxu0 0.0
      %2206 = vmatpush.msra.mxu0 0.0
      %2207 = vmatpush.msra.mxu0 0.0
      %2208 = vmatpush.msra.mxu0 0.0
      %2209 = vmatpush.msra.mxu0 0.0
      %2210 = vmatpush.msra.mxu0 0.0
      %2211 = vmatpush.msra.mxu0 0.0
      %2212 = vmatpush.msra.mxu0 %v2171
      %2213 = vmatpush.msra.mxu0 %v2170
      %2214 = vmatpush.msra.mxu0 %v2169
      %2215 = vmatpush.msra.mxu0 %v2168
      %2216 = vmatmul.f32.gmra.mxu0 %v2177
      %v2217 = vpop.f32.mrf.mxu0
      %v2218 = vadd.f32 %v2174, %v2217
      %2219 = vmatmul.f32.gmra.mxu0 %v2180
      %v2220 = vpop.f32.mrf.mxu0
      %v2221 = vadd.f32 %v2174, %v2220
      %2222 = vmatmul.f32.gmra.mxu0 %v2183
      %v2223 = vpop.f32.mrf.mxu0
      %v2224 = vadd.f32 %v2174, %v2223
      %2225 = vmatmul.f32.gmra.mxu0 %v2186
      %v2226 = vpop.f32.mrf.mxu0
      %v2227 = vadd.f32 %v2174, %v2226
      %2228 = vmatmul.f32.gmra.mxu0 %v2189
      %v2229 = vpop.f32.mrf.mxu0
      %v2230 = vadd.f32 %v2174, %v2229
      %2231 = vmatmul.f32.gmra.mxu0 %v2192
      %v2232 = vpop.f32.mrf.mxu0
      %v2233 = vadd.f32 %v2174, %v2232
      %2234 = vmatmul.f32.gmra.mxu0 %v2195
      %v2235 = vpop.f32.mrf.mxu0
      %v2236 = vadd.f32 %v2174, %v2235
      %2237 = vmatmul.f32.gmra.mxu0 %v2198
      %v2238 = vpop.f32.mrf.mxu0
      %v2239 = vadd.f32 %v2174, %v2238
      %2240 = vdwg.mxu0
      %2249 = vrot.lane.b32.xlu0 %v2218, 64
      %v2250 = vpop.permute.xlu0 %2249
      %2251 = vrot.lane.b32.xlu0 %v2221, 64
      %v2252 = vpop.permute.xlu0 %2251
      %2253 = vrot.lane.b32.xlu0 %v2224, 64
      %v2254 = vpop.permute.xlu0 %2253
      %2255 = vrot.lane.b32.xlu0 %v2227, 64
      %v2256 = vpop.permute.xlu0 %2255
      %2257 = vrot.lane.b32.xlu0 %v2230, 64
      %v2258 = vpop.permute.xlu0 %2257
      %2259 = vrot.lane.b32.xlu0 %v2233, 64
      %v2260 = vpop.permute.xlu0 %2259
      %2261 = vrot.lane.b32.xlu0 %v2236, 64
      %v2262 = vpop.permute.xlu0 %2261
      %2263 = vrot.lane.b32.xlu0 %v2239, 64
      %v2264 = vpop.permute.xlu0 %2263
      %v2273 = vadd.f32 %v1444, %v2250
      %v2274 = vadd.f32 %v1445, %v2252
      %v2275 = vadd.f32 %v1446, %v2254
      %v2276 = vadd.f32 %v1447, %v2256
      %v2277 = vadd.f32 %v1448, %v2258
      %v2278 = vadd.f32 %v1449, %v2260
      %v2279 = vadd.f32 %v1450, %v2262
      %v2280 = vadd.f32 %v1451, %v2264
      %2289 = vrot.lane.b32.xlu0 %v2273, 64
      %v2290 = vpop.permute.xlu0 %2289
      %2291 = vrot.lane.b32.xlu0 %v2274, 64
      %v2292 = vpop.permute.xlu0 %2291
      %2293 = vrot.lane.b32.xlu0 %v2275, 64
      %v2294 = vpop.permute.xlu0 %2293
      %2295 = vrot.lane.b32.xlu0 %v2276, 64
      %v2296 = vpop.permute.xlu0 %2295
      %2297 = vrot.lane.b32.xlu0 %v2277, 64
      %v2298 = vpop.permute.xlu0 %2297
      %2299 = vrot.lane.b32.xlu0 %v2278, 64
      %v2300 = vpop.permute.xlu0 %2299
      %2301 = vrot.lane.b32.xlu0 %v2279, 64
      %v2302 = vpop.permute.xlu0 %2301
      %2303 = vrot.lane.b32.xlu0 %v2280, 64
      %v2304 = vpop.permute.xlu0 %2303
      %2313 = vst.msk [vmem:[%s440] sm:$0xff] %vm742, %v2290
      %2314 = vst.msk [vmem:[%s440 + $0x8] sm:$0xff] %vm742, %v2292
      %2315 = vst.msk [vmem:[%s440 + $0x10] sm:$0xff] %vm742, %v2294
      %2316 = vst.msk [vmem:[%s440 + $0x18] sm:$0xff] %vm742, %v2296
      %2317 = vst.msk [vmem:[%s440 + $0x20] sm:$0xff] %vm742, %v2298
      %2318 = vst.msk [vmem:[%s440 + $0x28] sm:$0xff] %vm742, %v2300
      %2319 = vst.msk [vmem:[%s440 + $0x30] sm:$0xff] %vm742, %v2302
      %2320 = vst.msk [vmem:[%s440 + $0x38] sm:$0xff] %vm742, %v2304
      %p2321 = scmp.lt.s32.totalorder %s24, 1
      %s2322 = scalar_select %p2321, %s24, 1
      %s2323 = smul.addr %s2322, 8
      %s2324 = smul.addr %s2323, 8
      %s2325 = scalar_lea.vmem %s13, %s2324
      // Predicated region
      $region73: #{t2t_forward.3} parent=71 // pred_check
        %p2326 = pneg %p320
      $region74: #{t2t_forward.3} parent=71 // pred_check_branch
        %2328 = sbr.rel (%p2326) target = $region76
      $region75: #{t2t_forward.3} parent=71 // pred_region
        _
      $region76: #{t2t_forward.3} parent=71 // pred_fallthru
        _
    $region72: #{t2t_forward.3} parent=5 // pred_fallthru
      _
    %p2329 = scmp.le.s32.totalorder 2, %s19
    // Predicated region
    $region77: #{t2t_forward.3} parent=5 // pred_check
      %p2330 = pneg %p2329
    $region78: #{t2t_forward.3} parent=5 // pred_check_branch
      %2332 = sbr.rel (%p2330) target = $region80
    $region79: #{t2t_forward.3} parent=5 // pred_region
      %s2333 = ssub.s32 %s19, 2
      // Predicated region
      $region81: #{t2t_forward.3} parent=79 // pred_check
        %p2334 = pneg %p326
      $region82: #{t2t_forward.3} parent=79 // pred_check_branch
        %2336 = sbr.rel (%p2334) target = $region84
      $region83: #{t2t_forward.3} parent=79 // pred_region
        %p2337 = scmp.lt.s32.totalorder %s25, 1
        %s2338 = scalar_select %p2337, %s25, 1
        %s2339 = smul.addr %s2338, 8
        %s2340 = smul.addr %s2339, 8
        %s2341 = scalar_lea.vmem %s13, %s2340
      $region84: #{t2t_forward.3} parent=79 // pred_fallthru
        _
    $region80: #{t2t_forward.3} parent=5 // pred_fallthru
      _
  $region6: #{t2t_forward.3} parent=0 // loop_footer
    %s23 = sadd.s32 1, %s19
  $region7: #{t2t_forward.3} parent=0 // loop_footer_branch
    %18 = sbr.rel target = $region3
  $region8: #{t2t_forward.3} parent=0 // loop_exit
    _

// kernel: t2t_forward.4
$region0: #{t2t_forward.4}
  #allocation0 [shape = 'u32[]', space=smem, size = 0x4, offset = 0x4, fixed_abs, tag = 'smem constant byte address 0x4 - core index']
  #allocation1 [shape = 'u32[72,128]{1,0:T(1,128)}', space=vmem, size = 0x9000, scoped, tag = 'internal scratch']
  %s0 = inlined_call_operand.vmem [shape: f32[2,16,288], index: 0, kind: input, shape index: {}]
  %s1 = inlined_call_operand.vmem [shape: f32[1,288], index: 1, kind: input, shape index: {}]
  %s2 = inlined_call_operand.vmem [shape: f32[1,288], index: 2, kind: input, shape index: {}]
  %s3 = inlined_call_operand.vmem [shape: f32[288,128], index: 3, kind: input, shape index: {}]
  %s4 = inlined_call_operand.vmem [shape: f32[1,128], index: 4, kind: input, shape index: {}]
  %s5 = inlined_call_operand.vmem [shape: f32[32,32], index: 5, kind: input, shape index: {}]
  %s6 = inlined_call_operand.vmem [shape: f32[1,32], index: 6, kind: input, shape index: {}]
  %s7 = inlined_call_operand.vmem [shape: f32[1,32], index: 7, kind: input, shape index: {}]
  %s8 = inlined_call_operand.vmem [shape: f32[1,32], index: 8, kind: input, shape index: {}]
  %s9 = inlined_call_operand.vmem [shape: f32[32,32], index: 9, kind: input, shape index: {}]
  %s10 = inlined_call_operand.vmem [shape: f32[1,32], index: 10, kind: input, shape index: {}]
  %s11 = inlined_call_operand.vmem [shape: f32[32,32], index: 11, kind: input, shape index: {}]
  %s12 = inlined_call_operand.vmem [shape: f32[1,32], index: 12, kind: input, shape index: {}]
  %s13 = inlined_call_operand.vmem [shape: f32[2,16,32], index: 13, kind: output, shape index: {}]
  %s14 = sld [smem:[#allocation0]]
  $region85: #{t2t_forward.4} parent=0
    _
  %s16 = ssub.s32 1, %s14
  %s17 = scalar_select 0, %s16, %s14
  loop: start=0, step=1, limit=4
  $region2: #{t2t_forward.4} parent=0 // loop_pre_header
    _
  $region3: #{t2t_forward.4} parent=0 // loop_header
    %s19 = sphi 0, %s23
    %p20 = scmp.ge.s32.totalorder %s19, 4
    %s29 = sphi 0, %s31
    %s32 = sphi 0, %s29
    %s33 = sphi 0, %s32
    %s49 = sphi 0, %s33
    %s53 = sphi 0, %s53
    %s55 = sphi 0, %s53
    %s56 = sphi 0, %s55
    %s70 = sphi 0, %s56
    %s74 = sphi 0, %s74
    %s76 = sphi 0, %s74
    %s77 = sphi 0, %s76
    %s91 = sphi 0, %s77
    %s95 = sphi 0, %s95
    %s97 = sphi 0, %s95
    %s98 = sphi 0, %s97
    %s112 = sphi 0, %s98
    %s116 = sphi 0, %s116
    %s118 = sphi 0, %s116
    %s119 = sphi 0, %s118
    %s133 = sphi 0, %s119
    %s137 = sphi 0, %s137
    %s139 = sphi 0, %s137
    %s140 = sphi 0, %s139
    %s154 = sphi 0, %s140
    %s158 = sphi 0, %s158
    %s160 = sphi 0, %s158
    %s161 = sphi 0, %s160
    %s175 = sphi 0, %s161
    %s179 = sphi 0, %s179
    %s181 = sphi 0, %s179
    %s182 = sphi 0, %s181
    %s196 = sphi 0, %s182
    %s200 = sphi 0, %s200
    %s202 = sphi 0, %s200
    %s203 = sphi 0, %s202
    %s217 = sphi 0, %s203
    %s221 = sphi 0, %s221
    %s223 = sphi 0, %s221
    %s224 = sphi 0, %s223
    %s238 = sphi 0, %s224
    %s242 = sphi 0, %s242
    %s244 = sphi 0, %s242
    %s245 = sphi 0, %s244
    %s259 = sphi 0, %s245
    %s263 = sphi 0, %s263
    %s265 = sphi 0, %s263
    %s266 = sphi 0, %s265
    %s280 = sphi 0, %s266
    %s284 = sphi 0, %s284
    %s286 = sphi 0, %s284
    %s287 = sphi 0, %s286
    %s301 = sphi 0, %s287
    %s307 = sphi 0, %s309
    %s310 = sphi 0, %s307
    %s311 = sphi 0, %s310
    %s327 = sphi 0, %s311
  $region4: #{t2t_forward.4} parent=0 // loop_header_branch
    %22 = sbr.rel (%p20) target = $region8
  $region5: #{t2t_forward.4} parent=0 // loop_body
    %s24 = ssub.s32 %s19, 1
    %s25 = ssub.s32 %s19, 2
    %s26 = sadd.s32 %s19, 1
    %s27 = ssub.s32 %s19, %s26
    %p28 = scmp.eq.s32.totalorder %s27, 0
    %s30 = sadd.s32 %s29, 1
    %s31 = scalar_select %p28, %s29, %s30
    %p34 = pneg %p28
    %p35 = scmp.eq.s32.totalorder %s19, 1
    %p36 = por %p34, %p35
    %p37 = scmp.ne.s32.totalorder %s29, %s32
    %p38 = scmp.eq.s32.totalorder %s19, 0
    %p39 = por %p37, %p38
    %p40 = scmp.ne.s32.totalorder %s29, %s32
    %p41 = scmp.eq.s32.totalorder %s24, 1
    %p42 = por %p40, %p41
    %p43 = scmp.ne.s32.totalorder %s32, %s33
    %p44 = scmp.eq.s32.totalorder %s24, 0
    %p45 = por %p43, %p44
    %p46 = scmp.ne.s32.totalorder %s32, %s33
    %p47 = scmp.eq.s32.totalorder %s25, 1
    %p48 = por %p46, %p47
    %p50 = scmp.ne.s32.totalorder %s33, %s49
    %p51 = scmp.eq.s32.totalorder %s25, 0
    %p52 = por %p50, %p51
    %s54 = sadd.s32 %s53, 1
    %p57 = scmp.eq.s32.totalorder %s19, 1
    %p58 = scmp.ne.s32.totalorder %s53, %s55
    %p59 = scmp.eq.s32.totalorder %s19, 0
    %p60 = por %p58, %p59
    %p61 = scmp.ne.s32.totalorder %s53, %s55
    %p62 = scmp.eq.s32.totalorder %s24, 1
    %p63 = por %p61, %p62
    %p64 = scmp.ne.s32.totalorder %s55, %s56
    %p65 = scmp.eq.s32.totalorder %s24, 0
    %p66 = por %p64, %p65
    %p67 = scmp.ne.s32.totalorder %s55, %s56
    %p68 = scmp.eq.s32.totalorder %s25, 1
    %p69 = por %p67, %p68
    %p71 = scmp.ne.s32.totalorder %s56, %s70
    %p72 = scmp.eq.s32.totalorder %s25, 0
    %p73 = por %p71, %p72
    %s75 = sadd.s32 %s74, 1
    %p78 = scmp.eq.s32.totalorder %s19, 1
    %p79 = scmp.ne.s32.totalorder %s74, %s76
    %p80 = scmp.eq.s32.totalorder %s19, 0
    %p81 = por %p79, %p80
    %p82 = scmp.ne.s32.totalorder %s74, %s76
    %p83 = scmp.eq.s32.totalorder %s24, 1
    %p84 = por %p82, %p83
    %p85 = scmp.ne.s32.totalorder %s76, %s77
    %p86 = scmp.eq.s32.totalorder %s24, 0
    %p87 = por %p85, %p86
    %p88 = scmp.ne.s32.totalorder %s76, %s77
    %p89 = scmp.eq.s32.totalorder %s25, 1
    %p90 = por %p88, %p89
    %p92 = scmp.ne.s32.totalorder %s77, %s91
    %p93 = scmp.eq.s32.totalorder %s25, 0
    %p94 = por %p92, %p93
    %s96 = sadd.s32 %s95, 1
    %p99 = scmp.eq.s32.totalorder %s19, 1
    %p100 = scmp.ne.s32.totalorder %s95, %s97
    %p101 = scmp.eq.s32.totalorder %s19, 0
    %p102 = por %p100, %p101
    %p103 = scmp.ne.s32.totalorder %s95, %s97
    %p104 = scmp.eq.s32.totalorder %s24, 1
    %p105 = por %p103, %p104
    %p106 = scmp.ne.s32.totalorder %s97, %s98
    %p107 = scmp.eq.s32.totalorder %s24, 0
    %p108 = por %p106, %p107
    %p109 = scmp.ne.s32.totalorder %s97, %s98
    %p110 = scmp.eq.s32.totalorder %s25, 1
    %p111 = por %p109, %p110
    %p113 = scmp.ne.s32.totalorder %s98, %s112
    %p114 = scmp.eq.s32.totalorder %s25, 0
    %p115 = por %p113, %p114
    %s117 = sadd.s32 %s116, 1
    %p120 = scmp.eq.s32.totalorder %s19, 1
    %p121 = scmp.ne.s32.totalorder %s116, %s118
    %p122 = scmp.eq.s32.totalorder %s19, 0
    %p123 = por %p121, %p122
    %p124 = scmp.ne.s32.totalorder %s116, %s118
    %p125 = scmp.eq.s32.totalorder %s24, 1
    %p126 = por %p124, %p125
    %p127 = scmp.ne.s32.totalorder %s118, %s119
    %p128 = scmp.eq.s32.totalorder %s24, 0
    %p129 = por %p127, %p128
    %p130 = scmp.ne.s32.totalorder %s118, %s119
    %p131 = scmp.eq.s32.totalorder %s25, 1
    %p132 = por %p130, %p131
    %p134 = scmp.ne.s32.totalorder %s119, %s133
    %p135 = scmp.eq.s32.totalorder %s25, 0
    %p136 = por %p134, %p135
    %s138 = sadd.s32 %s137, 1
    %p141 = scmp.eq.s32.totalorder %s19, 1
    %p142 = scmp.ne.s32.totalorder %s137, %s139
    %p143 = scmp.eq.s32.totalorder %s19, 0
    %p144 = por %p142, %p143
    %p145 = scmp.ne.s32.totalorder %s137, %s139
    %p146 = scmp.eq.s32.totalorder %s24, 1
    %p147 = por %p145, %p146
    %p148 = scmp.ne.s32.totalorder %s139, %s140
    %p149 = scmp.eq.s32.totalorder %s24, 0
    %p150 = por %p148, %p149
    %p151 = scmp.ne.s32.totalorder %s139, %s140
    %p152 = scmp.eq.s32.totalorder %s25, 1
    %p153 = por %p151, %p152
    %p155 = scmp.ne.s32.totalorder %s140, %s154
    %p156 = scmp.eq.s32.totalorder %s25, 0
    %p157 = por %p155, %p156
    %s159 = sadd.s32 %s158, 1
    %p162 = scmp.eq.s32.totalorder %s19, 1
    %p163 = scmp.ne.s32.totalorder %s158, %s160
    %p164 = scmp.eq.s32.totalorder %s19, 0
    %p165 = por %p163, %p164
    %p166 = scmp.ne.s32.totalorder %s158, %s160
    %p167 = scmp.eq.s32.totalorder %s24, 1
    %p168 = por %p166, %p167
    %p169 = scmp.ne.s32.totalorder %s160, %s161
    %p170 = scmp.eq.s32.totalorder %s24, 0
    %p171 = por %p169, %p170
    %p172 = scmp.ne.s32.totalorder %s160, %s161
    %p173 = scmp.eq.s32.totalorder %s25, 1
    %p174 = por %p172, %p173
    %p176 = scmp.ne.s32.totalorder %s161, %s175
    %p177 = scmp.eq.s32.totalorder %s25, 0
    %p178 = por %p176, %p177
    %s180 = sadd.s32 %s179, 1
    %p183 = scmp.eq.s32.totalorder %s19, 1
    %p184 = scmp.ne.s32.totalorder %s179, %s181
    %p185 = scmp.eq.s32.totalorder %s19, 0
    %p186 = por %p184, %p185
    %p187 = scmp.ne.s32.totalorder %s179, %s181
    %p188 = scmp.eq.s32.totalorder %s24, 1
    %p189 = por %p187, %p188
    %p190 = scmp.ne.s32.totalorder %s181, %s182
    %p191 = scmp.eq.s32.totalorder %s24, 0
    %p192 = por %p190, %p191
    %p193 = scmp.ne.s32.totalorder %s181, %s182
    %p194 = scmp.eq.s32.totalorder %s25, 1
    %p195 = por %p193, %p194
    %p197 = scmp.ne.s32.totalorder %s182, %s196
    %p198 = scmp.eq.s32.totalorder %s25, 0
    %p199 = por %p197, %p198
    %s201 = sadd.s32 %s200, 1
    %p204 = scmp.eq.s32.totalorder %s19, 1
    %p205 = scmp.ne.s32.totalorder %s200, %s202
    %p206 = scmp.eq.s32.totalorder %s19, 0
    %p207 = por %p205, %p206
    %p208 = scmp.ne.s32.totalorder %s200, %s202
    %p209 = scmp.eq.s32.totalorder %s24, 1
    %p210 = por %p208, %p209
    %p211 = scmp.ne.s32.totalorder %s202, %s203
    %p212 = scmp.eq.s32.totalorder %s24, 0
    %p213 = por %p211, %p212
    %p214 = scmp.ne.s32.totalorder %s202, %s203
    %p215 = scmp.eq.s32.totalorder %s25, 1
    %p216 = por %p214, %p215
    %p218 = scmp.ne.s32.totalorder %s203, %s217
    %p219 = scmp.eq.s32.totalorder %s25, 0
    %p220 = por %p218, %p219
    %s222 = sadd.s32 %s221, 1
    %p225 = scmp.eq.s32.totalorder %s19, 1
    %p226 = scmp.ne.s32.totalorder %s221, %s223
    %p227 = scmp.eq.s32.totalorder %s19, 0
    %p228 = por %p226, %p227
    %p229 = scmp.ne.s32.totalorder %s221, %s223
    %p230 = scmp.eq.s32.totalorder %s24, 1
    %p231 = por %p229, %p230
    %p232 = scmp.ne.s32.totalorder %s223, %s224
    %p233 = scmp.eq.s32.totalorder %s24, 0
    %p234 = por %p232, %p233
    %p235 = scmp.ne.s32.totalorder %s223, %s224
    %p236 = scmp.eq.s32.totalorder %s25, 1
    %p237 = por %p235, %p236
    %p239 = scmp.ne.s32.totalorder %s224, %s238
    %p240 = scmp.eq.s32.totalorder %s25, 0
    %p241 = por %p239, %p240
    %s243 = sadd.s32 %s242, 1
    %p246 = scmp.eq.s32.totalorder %s19, 1
    %p247 = scmp.ne.s32.totalorder %s242, %s244
    %p248 = scmp.eq.s32.totalorder %s19, 0
    %p249 = por %p247, %p248
    %p250 = scmp.ne.s32.totalorder %s242, %s244
    %p251 = scmp.eq.s32.totalorder %s24, 1
    %p252 = por %p250, %p251
    %p253 = scmp.ne.s32.totalorder %s244, %s245
    %p254 = scmp.eq.s32.totalorder %s24, 0
    %p255 = por %p253, %p254
    %p256 = scmp.ne.s32.totalorder %s244, %s245
    %p257 = scmp.eq.s32.totalorder %s25, 1
    %p258 = por %p256, %p257
    %p260 = scmp.ne.s32.totalorder %s245, %s259
    %p261 = scmp.eq.s32.totalorder %s25, 0
    %p262 = por %p260, %p261
    %s264 = sadd.s32 %s263, 1
    %p267 = scmp.eq.s32.totalorder %s19, 1
    %p268 = scmp.ne.s32.totalorder %s263, %s265
    %p269 = scmp.eq.s32.totalorder %s19, 0
    %p270 = por %p268, %p269
    %p271 = scmp.ne.s32.totalorder %s263, %s265
    %p272 = scmp.eq.s32.totalorder %s24, 1
    %p273 = por %p271, %p272
    %p274 = scmp.ne.s32.totalorder %s265, %s266
    %p275 = scmp.eq.s32.totalorder %s24, 0
    %p276 = por %p274, %p275
    %p277 = scmp.ne.s32.totalorder %s265, %s266
    %p278 = scmp.eq.s32.totalorder %s25, 1
    %p279 = por %p277, %p278
    %p281 = scmp.ne.s32.totalorder %s266, %s280
    %p282 = scmp.eq.s32.totalorder %s25, 0
    %p283 = por %p281, %p282
    %s285 = sadd.s32 %s284, 1
    %p288 = scmp.eq.s32.totalorder %s19, 1
    %p289 = scmp.ne.s32.totalorder %s284, %s286
    %p290 = scmp.eq.s32.totalorder %s19, 0
    %p291 = por %p289, %p290
    %p292 = scmp.ne.s32.totalorder %s284, %s286
    %p293 = scmp.eq.s32.totalorder %s24, 1
    %p294 = por %p292, %p293
    %p295 = scmp.ne.s32.totalorder %s286, %s287
    %p296 = scmp.eq.s32.totalorder %s24, 0
    %p297 = por %p295, %p296
    %p298 = scmp.ne.s32.totalorder %s286, %s287
    %p299 = scmp.eq.s32.totalorder %s25, 1
    %p300 = por %p298, %p299
    %p302 = scmp.ne.s32.totalorder %s287, %s301
    %p303 = scmp.eq.s32.totalorder %s25, 0
    %p304 = por %p302, %p303
    %s305 = ssub.s32 %s19, %s26
    %p306 = scmp.eq.s32.totalorder %s305, 0
    %s308 = sadd.s32 %s307, 1
    %s309 = scalar_select %p306, %s307, %s308
    %p312 = pneg %p306
    %p313 = scmp.eq.s32.totalorder %s19, 1
    %p314 = por %p312, %p313
    %p315 = scmp.ne.s32.totalorder %s307, %s310
    %p316 = scmp.eq.s32.totalorder %s19, 0
    %p317 = por %p315, %p316
    %p318 = scmp.ne.s32.totalorder %s307, %s310
    %p319 = scmp.eq.s32.totalorder %s24, 1
    %p320 = por %p318, %p319
    %p321 = scmp.ne.s32.totalorder %s310, %s311
    %p322 = scmp.eq.s32.totalorder %s24, 0
    %p323 = por %p321, %p322
    %p324 = scmp.ne.s32.totalorder %s310, %s311
    %p325 = scmp.eq.s32.totalorder %s25, 1
    %p326 = por %p324, %p325
    %p328 = scmp.ne.s32.totalorder %s311, %s327
    %p329 = scmp.eq.s32.totalorder %s25, 0
    %p330 = por %p328, %p329
    %p331 = scmp.le.s32.totalorder 1, %s19
    %p332 = scmp.lt.s32.totalorder %s19, 3
    %p333 = pnand %p331, %p332
    %p334 = pneg %p333
    // Predicated region
    $region9: #{t2t_forward.4} parent=5 // pred_check
      _
    $region10: #{t2t_forward.4} parent=5 // pred_check_branch
      %336 = sbr.rel (%p333) target = $region12
    $region11: #{t2t_forward.4} parent=5 // pred_region
      %s337 = ssub.s32 %s19, 1
      // Predicated region
      $region13: #{t2t_forward.4} parent=11 // pred_check
        %p338 = pneg %p66
      $region14: #{t2t_forward.4} parent=11 // pred_check_branch
        %340 = sbr.rel (%p338) target = $region16
      $region15: #{t2t_forward.4} parent=11 // pred_region
        _
      $region16: #{t2t_forward.4} parent=11 // pred_fallthru
        _
      // Predicated region
      $region17: #{t2t_forward.4} parent=11 // pred_check
        %p341 = pneg %p87
      $region18: #{t2t_forward.4} parent=11 // pred_check_branch
        %343 = sbr.rel (%p341) target = $region20
      $region19: #{t2t_forward.4} parent=11 // pred_region
        _
      $region20: #{t2t_forward.4} parent=11 // pred_fallthru
        _
      // Predicated region
      $region21: #{t2t_forward.4} parent=11 // pred_check
        %p344 = pneg %p108
      $region22: #{t2t_forward.4} parent=11 // pred_check_branch
        %346 = sbr.rel (%p344) target = $region24
      $region23: #{t2t_forward.4} parent=11 // pred_region
        _
      $region24: #{t2t_forward.4} parent=11 // pred_fallthru
        _
      // Predicated region
      $region25: #{t2t_forward.4} parent=11 // pred_check
        %p347 = pneg %p129
      $region26: #{t2t_forward.4} parent=11 // pred_check_branch
        %349 = sbr.rel (%p347) target = $region28
      $region27: #{t2t_forward.4} parent=11 // pred_region
        _
      $region28: #{t2t_forward.4} parent=11 // pred_fallthru
        _
      // Predicated region
      $region29: #{t2t_forward.4} parent=11 // pred_check
        %p350 = pneg %p150
      $region30: #{t2t_forward.4} parent=11 // pred_check_branch
        %352 = sbr.rel (%p350) target = $region32
      $region31: #{t2t_forward.4} parent=11 // pred_region
        _
      $region32: #{t2t_forward.4} parent=11 // pred_fallthru
        _
      // Predicated region
      $region33: #{t2t_forward.4} parent=11 // pred_check
        %p353 = pneg %p171
      $region34: #{t2t_forward.4} parent=11 // pred_check_branch
        %355 = sbr.rel (%p353) target = $region36
      $region35: #{t2t_forward.4} parent=11 // pred_region
        _
      $region36: #{t2t_forward.4} parent=11 // pred_fallthru
        _
      // Predicated region
      $region37: #{t2t_forward.4} parent=11 // pred_check
        %p356 = pneg %p192
      $region38: #{t2t_forward.4} parent=11 // pred_check_branch
        %358 = sbr.rel (%p356) target = $region40
      $region39: #{t2t_forward.4} parent=11 // pred_region
        _
      $region40: #{t2t_forward.4} parent=11 // pred_fallthru
        _
      // Predicated region
      $region41: #{t2t_forward.4} parent=11 // pred_check
        %p359 = pneg %p213
      $region42: #{t2t_forward.4} parent=11 // pred_check_branch
        %361 = sbr.rel (%p359) target = $region44
      $region43: #{t2t_forward.4} parent=11 // pred_region
        _
      $region44: #{t2t_forward.4} parent=11 // pred_fallthru
        _
      // Predicated region
      $region45: #{t2t_forward.4} parent=11 // pred_check
        %p362 = pneg %p234
      $region46: #{t2t_forward.4} parent=11 // pred_check_branch
        %364 = sbr.rel (%p362) target = $region48
      $region47: #{t2t_forward.4} parent=11 // pred_region
        _
      $region48: #{t2t_forward.4} parent=11 // pred_fallthru
        _
      // Predicated region
      $region49: #{t2t_forward.4} parent=11 // pred_check
        %p365 = pneg %p255
      $region50: #{t2t_forward.4} parent=11 // pred_check_branch
        %367 = sbr.rel (%p365) target = $region52
      $region51: #{t2t_forward.4} parent=11 // pred_region
        _
      $region52: #{t2t_forward.4} parent=11 // pred_fallthru
        _
      // Predicated region
      $region53: #{t2t_forward.4} parent=11 // pred_check
        %p368 = pneg %p276
      $region54: #{t2t_forward.4} parent=11 // pred_check_branch
        %370 = sbr.rel (%p368) target = $region56
      $region55: #{t2t_forward.4} parent=11 // pred_region
        _
      $region56: #{t2t_forward.4} parent=11 // pred_fallthru
        _
      // Predicated region
      $region57: #{t2t_forward.4} parent=11 // pred_check
        %p371 = pneg %p297
      $region58: #{t2t_forward.4} parent=11 // pred_check_branch
        %373 = sbr.rel (%p371) target = $region60
      $region59: #{t2t_forward.4} parent=11 // pred_region
        _
      $region60: #{t2t_forward.4} parent=11 // pred_fallthru
        _
    $region12: #{t2t_forward.4} parent=5 // pred_fallthru
      _
    %p374 = scmp.lt.s32.totalorder %s19, 2
    // Predicated region
    $region61: #{t2t_forward.4} parent=5 // pred_check
      %p375 = pneg %p374
    $region62: #{t2t_forward.4} parent=5 // pred_check_branch
      %377 = sbr.rel (%p375) target = $region64
    $region63: #{t2t_forward.4} parent=5 // pred_region
      // Predicated region
      $region65: #{t2t_forward.4} parent=63 // pred_check
        %p378 = pneg %p39
      $region66: #{t2t_forward.4} parent=63 // pred_check_branch
        %380 = sbr.rel (%p378) target = $region68
      $region67: #{t2t_forward.4} parent=63 // pred_region
        %p381 = scmp.lt.s32.totalorder %s19, 1
        %s382 = scalar_select %p381, %s19, 1
        %s383 = smul.addr %s382, 6
        %s384 = smul.addr %s383, 8
        %s385 = scalar_lea.vmem %s0, %s384
      $region68: #{t2t_forward.4} parent=63 // pred_fallthru
        _
    $region64: #{t2t_forward.4} parent=5 // pred_fallthru
      _
    %p386 = scmp.le.s32.totalorder 1, %s19
    %p387 = scmp.lt.s32.totalorder %s19, 3
    %p388 = pnand %p386, %p387
    %p389 = pneg %p388
    // Predicated region
    $region69: #{t2t_forward.4} parent=5 // pred_check
      _
    $region70: #{t2t_forward.4} parent=5 // pred_check_branch
      %391 = sbr.rel (%p388) target = $region72
    $region71: #{t2t_forward.4} parent=5 // pred_region
      %s392 = ssub.s32 %s19, 1
      %p393 = scmp.lt.s32.totalorder %s24, 1
      %s394 = scalar_select %p393, %s24, 1
      %s395 = smul.addr %s394, 6
      %s396 = smul.addr %s395, 8
      %s397 = scalar_lea.vmem %s0, %s396
      %p398 = pneg %p45
      %p399 = pneg %p42
      %p400 = pneg %p66
      %p401 = pneg %p63
      %p402 = pneg %p87
      %p403 = pneg %p84
      %p404 = pneg %p108
      %p405 = pneg %p105
      %p406 = pneg %p129
      %p407 = pneg %p126
      %p408 = pneg %p150
      %p409 = pneg %p147
      %p410 = pneg %p171
      %p411 = pneg %p168
      %p412 = pneg %p192
      %p413 = pneg %p189
      %p414 = pneg %p213
      %p415 = pneg %p210
      %p416 = pneg %p234
      %p417 = pneg %p231
      %p418 = pneg %p255
      %p419 = pneg %p252
      %p420 = pneg %p276
      %p421 = pneg %p273
      %p422 = pneg %p297
      %p423 = pneg %p294
      %p424 = pneg %p323
      %p425 = pneg %p320
      %p426 = scmp.lt.s32.totalorder %s24, 1
      %s427 = scalar_select %p426, %s24, 1
      %s428 = smul.addr %s427, 2
      %s429 = smul.addr %s428, 8
      %s430 = scalar_lea.vmem %s13, %s429
      %p431 = scmp.lt.s32.totalorder %s24, 1
      %s432 = scalar_select %p431, %s24, 1
      %s433 = smul.addr %s432, 6
      %s434 = smul.addr %s433, 8
      %s435 = scalar_lea.vmem %s0, %s434
      %p436 = scmp.lt.s32.totalorder %s24, 1
      %s437 = scalar_select %p436, %s24, 1
      %s438 = smul.addr %s437, 2
      %s439 = smul.addr %s438, 8
      %s440 = scalar_lea.vmem %s13, %s439
      %v441 = vld [vmem:[%s435] sm:$0xff]
      %v442 = vld [vmem:[%s435 + $0x8] sm:$0xff]
      %v443 = vld [vmem:[%s435 + $0x10] sm:$0xff]
      %v444 = vld [vmem:[%s435 + $0x18] sm:$0xff]
      %v445 = vld [vmem:[%s435 + $0x20] sm:$0xff]
      %v446 = vld [vmem:[%s435 + $0x28] sm:$0xff]
      %v447 = vadd.f32 %v441, %v442
      %vm448 = vcmask 261120
      %v449 = vsel %vm448, %v443, 0.0
      %v450 = vadd.f32 %v447, %v449
      %451 = vadd.xlane.f32.xlu0 %v450
      %v452 = vpop.xlane.xlu0 %451
      %v453 = vadd.f32 %v444, %v445
      %v454 = vsel %vm448, %v446, 0.0
      %v455 = vadd.f32 %v453, %v454
      %456 = vadd.xlane.f32.xlu0 %v455
      %v457 = vpop.xlane.xlu0 %456
      %v458 = vrcp.pop 288.0
      %v459 = vmul.f32 288.0, %v458
      %v460 = vsub.f32 1.0, %v459
      %v461 = vmul.f32 %v458, %v460
      %v462 = vadd.f32 %v458, %v461
      %vm463 = vweird.f32 %v458
      %v464 = vsel %vm463, %v458, %v462
      %v465 = vmul.f32 %v452, %v464
      %v466 = vmul.f32 %v457, %v464
      %v467 = vsub.f32 %v441, %v465
      %v468 = vsub.f32 %v442, %v465
      %v469 = vsub.f32 %v443, %v465
      %v470 = vsub.f32 %v444, %v466
      %v471 = vsub.f32 %v445, %v466
      %v472 = vsub.f32 %v446, %v466
      %v473 = vmul.f32 %v467, %v467
      %v474 = vmul.f32 %v468, %v468
      %v475 = vmul.f32 %v469, %v469
      %v476 = vmul.f32 %v470, %v470
      %v477 = vmul.f32 %v471, %v471
      %v478 = vmul.f32 %v472, %v472
      %v479 = vadd.f32 %v473, %v474
      %v480 = vsel %vm448, %v475, 0.0
      %v481 = vadd.f32 %v479, %v480
      %482 = vadd.xlane.f32.xlu0 %v481
      %v483 = vpop.xlane.xlu0 %482
      %v484 = vadd.f32 %v476, %v477
      %v485 = vsel %vm448, %v478, 0.0
      %v486 = vadd.f32 %v484, %v485
      %487 = vadd.xlane.f32.xlu0 %v486
      %v488 = vpop.xlane.xlu0 %487
      %v489 = vmul.f32 %v483, %v464
      %v490 = vmul.f32 %v488, %v464
      %v491 = vadd.f32 %v489, 1e-05
      %v492 = vadd.f32 %v490, 1e-05
      %v493 = vrsqrt.pop %v491
      %v494 = vmul.f32 %v493, %v491
      %v495 = vmul.f32 %v494, %v493
      %v496 = vmul.f32 0.5, %v495
      %v497 = vsub.f32 1.5, %v496
      %v498 = vmul.f32 %v493, %v497
      %vm499 = vweird.f32 %v491
      %vm500 = vweird.f32 %v493
      %vm501 = vmor %vm499, %vm500
      %v502 = vsel %vm501, %v493, %v498
      %v503 = vrsqrt.pop %v492
      %v504 = vmul.f32 %v503, %v492
      %v505 = vmul.f32 %v504, %v503
      %v506 = vmul.f32 0.5, %v505
      %v507 = vsub.f32 1.5, %v506
      %v508 = vmul.f32 %v503, %v507
      %vm509 = vweird.f32 %v492
      %vm510 = vweird.f32 %v503
      %vm511 = vmor %vm509, %vm510
      %v512 = vsel %vm511, %v503, %v508
      %v513 = vmul.f32 %v467, %v502
      %v514 = vmul.f32 %v468, %v502
      %v515 = vmul.f32 %v469, %v502
      %v516 = vmul.f32 %v470, %v512
      %v517 = vmul.f32 %v471, %v512
      %v518 = vmul.f32 %v472, %v512
      %v519 = vld [vmem:[%s1] sm:$0x7]
      %v521 = vperm.slane %v519, 0
      %v522 = vperm.slane %v519, 1
      %v523 = vperm.slane %v519, 2
      %v527 = vmul.f32 %v513, %v521
      %v528 = vmul.f32 %v514, %v522
      %v529 = vmul.f32 %v515, %v523
      %v530 = vmul.f32 %v516, %v521
      %v531 = vmul.f32 %v517, %v522
      %v532 = vmul.f32 %v518, %v523
      %v533 = vld [vmem:[%s2] sm:$0x7]
      %v535 = vperm.slane %v533, 0
      %v536 = vperm.slane %v533, 1
      %v537 = vperm.slane %v533, 2
      %v541 = vadd.f32 %v527, %v535
      %v542 = vadd.f32 %v528, %v536
      %v543 = vadd.f32 %v529, %v537
      %v544 = vadd.f32 %v530, %v535
      %v545 = vadd.f32 %v531, %v536
      %v546 = vadd.f32 %v532, %v537
      %v547 = vld [vmem:[%s3] sm:$0xff]
      %v548 = vld [vmem:[%s3 + $0x8] sm:$0xff]
      %v549 = vld [vmem:[%s3 + $0x10] sm:$0xff]
      %v550 = vld [vmem:[%s3 + $0x18] sm:$0xff]
      %v551 = vld [vmem:[%s3 + $0x20] sm:$0xff]
      %v552 = vld [vmem:[%s3 + $0x28] sm:$0xff]
      %v553 = vld [vmem:[%s3 + $0x30] sm:$0xff]
      %v554 = vld [vmem:[%s3 + $0x38] sm:$0xff]
      %v555 = vld [vmem:[%s3 + $0x40] sm:$0xff]
      %v556 = vld [vmem:[%s3 + $0x48] sm:$0xff]
      %v557 = vld [vmem:[%s3 + $0x50] sm:$0xff]
      %v558 = vld [vmem:[%s3 + $0x58] sm:$0xff]
      %v559 = vld [vmem:[%s3 + $0x60] sm:$0xff]
      %v560 = vld [vmem:[%s3 + $0x68] sm:$0xff]
      %v561 = vld [vmem:[%s3 + $0x70] sm:$0xff]
      %v562 = vld [vmem:[%s3 + $0x78] sm:$0xff]
      %v563 = vld [vmem:[%s3 + $0x80] sm:$0xff]
      %v564 = vld [vmem:[%s3 + $0x88] sm:$0xff]
      %v565 = vld [vmem:[%s3 + $0x90] sm:$0xff]
      %v566 = vld [vmem:[%s3 + $0x98] sm:$0xff]
      %v567 = vld [vmem:[%s3 + $0xa0] sm:$0xff]
      %v568 = vld [vmem:[%s3 + $0xa8] sm:$0xff]
      %v569 = vld [vmem:[%s3 + $0xb0] sm:$0xff]
      %v570 = vld [vmem:[%s3 + $0xb8] sm:$0xff]
      %v571 = vld [vmem:[%s3 + $0xc0] sm:$0xff]
      %v572 = vld [vmem:[%s3 + $0xc8] sm:$0xff]
      %v573 = vld [vmem:[%s3 + $0xd0] sm:$0xff]
      %v574 = vld [vmem:[%s3 + $0xd8] sm:$0xff]
      %v575 = vld [vmem:[%s3 + $0xe0] sm:$0xff]
      %v576 = vld [vmem:[%s3 + $0xe8] sm:$0xff]
      %v577 = vld [vmem:[%s3 + $0xf0] sm:$0xff]
      %v578 = vld [vmem:[%s3 + $0xf8] sm:$0xff]
      %v579 = vld [vmem:[%s3 + $0x100] sm:$0xff]
      %v580 = vld [vmem:[%s3 + $0x108] sm:$0xff]
      %v581 = vld [vmem:[%s3 + $0x110] sm:$0xff]
      %v582 = vld [vmem:[%s3 + $0x118] sm:$0xff]
      %v583 = vld [vmem:[%s4] sm:$0x1]
      %v585 = vperm.slane %v583, 0
      %v588 = vsel %vm448, %v543, 0
      %v591 = vsel %vm448, %v546, 0
      %593 = vmatpush.msra.mxu0 %v562
      %594 = vmatpush.msra.mxu0 %v561
      %595 = vmatpush.msra.mxu0 %v560
      %596 = vmatpush.msra.mxu0 %v559
      %597 = vmatpush.msra.mxu0 %v558
      %598 = vmatpush.msra.mxu0 %v557
      %599 = vmatpush.msra.mxu0 %v556
      %600 = vmatpush.msra.mxu0 %v555
      %601 = vmatpush.msra.mxu0 %v554
      %602 = vmatpush.msra.mxu0 %v553
      %603 = vmatpush.msra.mxu0 %v552
      %604 = vmatpush.msra.mxu0 %v551
      %605 = vmatpush.msra.mxu0 %v550
      %606 = vmatpush.msra.mxu0 %v549
      %607 = vmatpush.msra.mxu0 %v548
      %608 = vmatpush.msra.mxu0 %v547
      %609 = vmatmul.f32.gmra.mxu0 %v541
      %v610 = vpop.f32.mrf.mxu0
      %v611 = vadd.f32 %v585, %v610
      %612 = vmatmul.f32.gmra.mxu0 %v544
      %v613 = vpop.f32.mrf.mxu0
      %v614 = vadd.f32 %v585, %v613
      %615 = vdwg.mxu0
      %616 = vmatpush.msra.mxu0 %v578
      %617 = vmatpush.msra.mxu0 %v577
      %618 = vmatpush.msra.mxu0 %v576
      %619 = vmatpush.msra.mxu0 %v575
      %620 = vmatpush.msra.mxu0 %v574
      %621 = vmatpush.msra.mxu0 %v573
      %622 = vmatpush.msra.mxu0 %v572
      %623 = vmatpush.msra.mxu0 %v571
      %624 = vmatpush.msra.mxu0 %v570
      %625 = vmatpush.msra.mxu0 %v569
      %626 = vmatpush.msra.mxu0 %v568
      %627 = vmatpush.msra.mxu0 %v567
      %628 = vmatpush.msra.mxu0 %v566
      %629 = vmatpush.msra.mxu0 %v565
      %630 = vmatpush.msra.mxu0 %v564
      %631 = vmatpush.msra.mxu0 %v563
      %632 = vmatmul.f32.gmra.mxu0 %v542
      %v633 = vpop.f32.mrf.mxu0
      %v634 = vadd.f32 %v611, %v633
      %635 = vmatmul.f32.gmra.mxu0 %v545
      %v636 = vpop.f32.mrf.mxu0
      %v637 = vadd.f32 %v614, %v636
      %638 = vdwg.mxu0
      %639 = vmatpush.msra.mxu0 0.0
      %640 = vmatpush.msra.mxu0 0.0
      %641 = vmatpush.msra.mxu0 0.0
      %642 = vmatpush.msra.mxu0 0.0
      %643 = vmatpush.msra.mxu0 0.0
      %644 = vmatpush.msra.mxu0 0.0
      %645 = vmatpush.msra.mxu0 0.0
      %646 = vmatpush.msra.mxu0 0.0
      %647 = vmatpush.msra.mxu0 0.0
      %648 = vmatpush.msra.mxu0 0.0
      %649 = vmatpush.msra.mxu0 0.0
      %650 = vmatpush.msra.mxu0 0.0
      %651 = vmatpush.msra.mxu0 %v582
      %652 = vmatpush.msra.mxu0 %v581
      %653 = vmatpush.msra.mxu0 %v580
      %654 = vmatpush.msra.mxu0 %v579
      %655 = vmatmul.f32.gmra.mxu0 %v588
      %v656 = vpop.f32.mrf.mxu0
      %v657 = vadd.f32 %v634, %v656
      %658 = vmatmul.f32.gmra.mxu0 %v591
      %v659 = vpop.f32.mrf.mxu0
      %v660 = vadd.f32 %v637, %v659
      %661 = vdwg.mxu0
      %v662 = vmul.f32 %v657, %v657
      %v663 = vmul.f32 %v660, %v660
      %v664 = vsel %vm448, %v662, 0.0
      %665 = vadd.xlane.f32.xlu0 %v664
      %v666 = vpop.xlane.xlu0 %665
      %v667 = vsel %vm448, %v663, 0.0
      %668 = vadd.xlane.f32.xlu0 %v667
      %v669 = vpop.xlane.xlu0 %668
      %v670 = vmul.f32 %v666, 0.5
      %v671 = vmul.f32 %v669, 0.5
      %v672 = vsub.f32 %v657, %v670
      %v673 = vsub.f32 %v660, %v671
      %v674 = vmul.f32 %v672, 1.442695
      %v675 = vpow.pop %v674
      %v676 = vmul.f32 %v673, 1.442695
      %v677 = vpow.pop %v676
      %v678 = vmul.f32 %v675, 0.25
      %v679 = vmul.f32 %v677, 0.25
      %682 = vrot.lane.b32.xlu0 %v662, 96
      %v683 = vpop.permute.xlu0 %682
      %684 = vrot.lane.b32.xlu0 %v663, 96
      %v685 = vpop.permute.xlu0 %684
      %v688 = vsel %vm448, %v683, 0.0
      %689 = vadd.xlane.f32.xlu0 %v688
      %v690 = vpop.xlane.xlu0 %689
      %v691 = vsel %vm448, %v685, 0.0
      %692 = vadd.xlane.f32.xlu0 %v691
      %v693 = vpop.xlane.xlu0 %692
      %v694 = vmul.f32 %v690, 0.5
      %v695 = vmul.f32 %v693, 0.5
      %v696 = vsub.f32 %v657, %v694
      %v697 = vsub.f32 %v660, %v695
      %v698 = vmul.f32 %v696, 1.442695
      %v699 = vpow.pop %v698
      %v700 = vmul.f32 %v697, 1.442695
      %v701 = vpow.pop %v700
      %v702 = vmul.f32 %v699, 0.25
      %v703 = vmul.f32 %v701, 0.25
      %vm704 = vcmask 917248
      %v705 = vsel %vm704, %v678, 0.0
      %v706 = vsel %vm704, %v679, 0.0
      %v707 = vadd.f32 %v705, %v706
      %v708 = vrot.slane %v707, 4
      %v709 = vadd.f32 %v707, %v708
      %v710 = vrot.slane %v709, 2
      %v711 = vadd.f32 %v709, %v710
      %v712 = vrot.slane %v711, 1
      %v713 = vadd.f32 %v711, %v712
      %715 = vrot.lane.b32.xlu0 %v713, 16
      %v716 = vpop.permute.xlu0 %715
      %v718 = vmul.f32 %v702, %v716
      %v719 = vmul.f32 %v703, %v716
      %722 = vrot.lane.b32.xlu0 %v718, 16
      %v723 = vpop.permute.xlu0 %722
      %724 = vrot.lane.b32.xlu0 %v719, 16
      %v725 = vpop.permute.xlu0 %724
      %vm728 = vcmask 130048
      %v729 = vsel %vm728, %v723, 0.0
      %730 = vadd.xlane.f32.xlu0 %v729
      %v731 = vpop.xlane.xlu0 %730
      %v732 = vsel %vm728, %v725, 0.0
      %733 = vadd.xlane.f32.xlu0 %v732
      %v734 = vpop.xlane.xlu0 %733
      %737 = vrot.lane.b32.xlu0 %v678, 32
      %v738 = vpop.permute.xlu0 %737
      %739 = vrot.lane.b32.xlu0 %v679, 32
      %v740 = vpop.permute.xlu0 %739
      %743 = vxpose.xlu0.b32.start [1/16] %v738, 128
      %744 = vxpose.xlu0.b32.cont [2/16] %v740, 128
      %745 = vxpose.xlu0.b32.cont [3/16] 0.0, 128
      %746 = vxpose.xlu0.b32.cont [4/16] 0.0, 128
      %747 = vxpose.xlu0.b32.cont [5/16] 0.0, 128
      %748 = vxpose.xlu0.b32.cont [6/16] 0.0, 128
      %749 = vxpose.xlu0.b32.cont [7/16] 0.0, 128
      %750 = vxpose.xlu0.b32.cont [8/16] 0.0, 128
      %751 = vxpose.xlu0.b32.cont [9/16] 0.0, 128
      %752 = vxpose.xlu0.b32.cont [10/16] 0.0, 128
      %753 = vxpose.xlu0.b32.cont [11/16] 0.0, 128
      %754 = vxpose.xlu0.b32.cont [12/16] 0.0, 128
      %755 = vxpose.xlu0.b32.cont [13/16] 0.0, 128
      %756 = vxpose.xlu0.b32.cont [14/16] 0.0, 128
      %757 = vxpose.xlu0.b32.cont [15/16] 0.0, 128
      %758 = vxpose.xlu0.b32.end [16/16] 0.0, 128
      %v759 = vpop.trf.xlu0
      %v760 = vpop.trf.xlu0
      %v761 = vpop.trf.xlu0
      %v762 = vpop.trf.xlu0
      %v763 = vpop.trf.xlu0
      %v764 = vpop.trf.xlu0
      %v765 = vpop.trf.xlu0
      %v766 = vpop.trf.xlu0
      %v767 = vpop.trf.xlu0
      %v768 = vpop.trf.xlu0
      %v769 = vpop.trf.xlu0
      %v770 = vpop.trf.xlu0
      %v771 = vpop.trf.xlu0
      %v772 = vpop.trf.xlu0
      %v773 = vpop.trf.xlu0
      %v774 = vpop.trf.xlu0
      %777 = vrot.lane.b32.xlu0 %v657, 64
      %v778 = vpop.permute.xlu0 %777
      %779 = vrot.lane.b32.xlu0 %v660, 64
      %v780 = vpop.permute.xlu0 %779
      %v784 = vsel %vm728, %v759, 0
      %v787 = vsel %vm728, %v760, 0
      %789 = vmatpush.msra.mxu0 0.0
      %790 = vmatpush.msra.mxu0 0.0
      %791 = vmatpush.msra.mxu0 0.0
      %792 = vmatpush.msra.mxu0 0.0
      %793 = vmatpush.msra.mxu0 0.0
      %794 = vmatpush.msra.mxu0 0.0
      %795 = vmatpush.msra.mxu0 0.0
      %796 = vmatpush.msra.mxu0 0.0
      %797 = vmatpush.msra.mxu0 0.0
      %798 = vmatpush.msra.mxu0 0.0
      %799 = vmatpush.msra.mxu0 0.0
      %800 = vmatpush.msra.mxu0 0.0
      %801 = vmatpush.msra.mxu0 0.0
      %802 = vmatpush.msra.mxu0 0.0
      %803 = vmatpush.msra.mxu0 %v780
      %804 = vmatpush.msra.mxu0 %v778
      %805 = vmatmul.f32.gmra.mxu0 %v784
      %v806 = vpop.f32.mrf.mxu0
      %v807 = vadd.f32 0.0, %v806
      %808 = vmatmul.f32.gmra.mxu0 %v787
      %v809 = vpop.f32.mrf.mxu0
      %v810 = vadd.f32 0.0, %v809
      %811 = vdwg.mxu0
      %814 = vrot.lane.b32.xlu0 %v702, 16
      %v815 = vpop.permute.xlu0 %814
      %816 = vrot.lane.b32.xlu0 %v703, 16
      %v817 = vpop.permute.xlu0 %816
      %v818 = vsel %vm728, %v815, 0
      %v820 = vsel %vm728, %v817, 0
      %822 = vmatpush.msra.mxu0 0.0
      %823 = vmatpush.msra.mxu0 0.0
      %824 = vmatpush.msra.mxu0 0.0
      %825 = vmatpush.msra.mxu0 0.0
      %826 = vmatpush.msra.mxu0 0.0
      %827 = vmatpush.msra.mxu0 0.0
      %828 = vmatpush.msra.mxu0 0.0
      %829 = vmatpush.msra.mxu0 0.0
      %830 = vmatpush.msra.mxu0 0.0
      %831 = vmatpush.msra.mxu0 0.0
      %832 = vmatpush.msra.mxu0 0.0
      %833 = vmatpush.msra.mxu0 0.0
      %834 = vmatpush.msra.mxu0 0.0
      %835 = vmatpush.msra.mxu0 0.0
      %836 = vmatpush.msra.mxu0 %v810
      %837 = vmatpush.msra.mxu0 %v807
      %838 = vmatmul.f32.gmra.mxu0 %v818
      %v839 = vpop.f32.mrf.mxu0
      %v840 = vadd.f32 0.0, %v839
      %841 = vmatmul.f32.gmra.mxu0 %v820
      %v842 = vpop.f32.mrf.mxu0
      %v843 = vadd.f32 0.0, %v842
      %844 = vdwg.mxu0
      %v845 = vadd.f32 %v731, 1e-08
      %v846 = vadd.f32 %v734, 1e-08
      %v847 = vrcp.pop %v845
      %v848 = vmul.f32 %v845, %v847
      %v849 = vsub.f32 1.0, %v848
      %v850 = vmul.f32 %v847, %v849
      %v851 = vadd.f32 %v847, %v850
      %vm852 = vweird.f32 %v845
      %vm853 = vweird.f32 %v847
      %vm854 = vmor %vm852, %vm853
      %v855 = vsel %vm854, %v847, %v851
      %v856 = vand.u32 2147483647, %v845
      %vm857 = vcmp.eq.f32.partialorder %v856, 8.507059e+37
      %v858 = vand.u32 %v845, 2147483648
      %v859 = vor.u32 1.1754944e-38, %v858
      %v860 = vsel %vm857, %v859, %v855
      %v861 = vrcp.pop %v846
      %v862 = vmul.f32 %v846, %v861
      %v863 = vsub.f32 1.0, %v862
      %v864 = vmul.f32 %v861, %v863
      %v865 = vadd.f32 %v861, %v864
      %vm866 = vweird.f32 %v846
      %vm867 = vweird.f32 %v861
      %vm868 = vmor %vm866, %vm867
      %v869 = vsel %vm868, %v861, %v865
      %v870 = vand.u32 2147483647, %v846
      %vm871 = vcmp.eq.f32.partialorder %v870, 8.507059e+37
      %v872 = vand.u32 %v846, 2147483648
      %v873 = vor.u32 1.1754944e-38, %v872
      %v874 = vsel %vm871, %v873, %v869
      %v875 = vmul.f32 %v840, %v860
      %v876 = vmul.f32 %v843, %v874
      %v877 = vld [vmem:[%s5] sm:$0xff]
      %v878 = vld [vmem:[%s5 + $0x8] sm:$0xff]
      %v879 = vld [vmem:[%s5 + $0x10] sm:$0xff]
      %v880 = vld [vmem:[%s5 + $0x18] sm:$0xff]
      %v882 = vsel %vm448, %v875, 0
      %v885 = vsel %vm448, %v876, 0
      %887 = vmatpush.msra.mxu0 0.0
      %888 = vmatpush.msra.mxu0 0.0
      %889 = vmatpush.msra.mxu0 0.0
      %890 = vmatpush.msra.mxu0 0.0
      %891 = vmatpush.msra.mxu0 0.0
      %892 = vmatpush.msra.mxu0 0.0
      %893 = vmatpush.msra.mxu0 0.0
      %894 = vmatpush.msra.mxu0 0.0
      %895 = vmatpush.msra.mxu0 0.0
      %896 = vmatpush.msra.mxu0 0.0
      %897 = vmatpush.msra.mxu0 0.0
      %898 = vmatpush.msra.mxu0 0.0
      %899 = vmatpush.msra.mxu0 %v880
      %900 = vmatpush.msra.mxu0 %v879
      %901 = vmatpush.msra.mxu0 %v878
      %902 = vmatpush.msra.mxu0 %v877
      %903 = vmatmul.f32.gmra.mxu0 %v882
      %v904 = vpop.f32.mrf.mxu0
      %v905 = vadd.f32 0.0, %v904
      %906 = vmatmul.f32.gmra.mxu0 %v885
      %v907 = vpop.f32.mrf.mxu0
      %v908 = vadd.f32 0.0, %v907
      %909 = vdwg.mxu0
      %912 = vrot.lane.b32.xlu0 %v905, 64
      %v913 = vpop.permute.xlu0 %912
      %914 = vrot.lane.b32.xlu0 %v908, 64
      %v915 = vpop.permute.xlu0 %914
      %v918 = vadd.f32 %v657, %v913
      %v919 = vadd.f32 %v660, %v915
      %v920 = vld [vmem:[%s6] sm:$0x1]
      %v922 = vperm.slane %v920, 0
      %923 = vrot.lane.b32.xlu0 %v922, 64
      %v924 = vpop.permute.xlu0 %923
      %v926 = vadd.f32 %v918, %v924
      %v927 = vadd.f32 %v919, %v924
      %930 = vrot.lane.b32.xlu0 %v926, 64
      %v931 = vpop.permute.xlu0 %930
      %932 = vrot.lane.b32.xlu0 %v927, 64
      %v933 = vpop.permute.xlu0 %932
      %v936 = vsel %vm448, %v931, 0.0
      %937 = vadd.xlane.f32.xlu0 %v936
      %v938 = vpop.xlane.xlu0 %937
      %v939 = vsel %vm448, %v933, 0.0
      %940 = vadd.xlane.f32.xlu0 %v939
      %v941 = vpop.xlane.xlu0 %940
      %v942 = vrcp.pop 32.0
      %v943 = vmul.f32 32.0, %v942
      %v944 = vsub.f32 1.0, %v943
      %v945 = vmul.f32 %v942, %v944
      %v946 = vadd.f32 %v942, %v945
      %vm947 = vweird.f32 %v942
      %v948 = vsel %vm947, %v942, %v946
      %v949 = vmul.f32 %v938, %v948
      %v950 = vmul.f32 %v941, %v948
      %v951 = vsub.f32 %v926, %v949
      %v952 = vsub.f32 %v927, %v950
      %v953 = vmul.f32 %v951, %v951
      %v954 = vmul.f32 %v952, %v952
      %957 = vrot.lane.b32.xlu0 %v953, 64
      %v958 = vpop.permute.xlu0 %957
      %959 = vrot.lane.b32.xlu0 %v954, 64
      %v960 = vpop.permute.xlu0 %959
      %v963 = vsel %vm448, %v958, 0.0
      %964 = vadd.xlane.f32.xlu0 %v963
      %v965 = vpop.xlane.xlu0 %964
      %v966 = vsel %vm448, %v960, 0.0
      %967 = vadd.xlane.f32.xlu0 %v966
      %v968 = vpop.xlane.xlu0 %967
      %v969 = vmul.f32 %v965, %v948
      %v970 = vmul.f32 %v968, %v948
      %v971 = vadd.f32 %v969, 1e-05
      %v972 = vadd.f32 %v970, 1e-05
      %v973 = vrsqrt.pop %v971
      %v974 = vmul.f32 %v973, %v971
      %v975 = vmul.f32 %v974, %v973
      %v976 = vmul.f32 0.5, %v975
      %v977 = vsub.f32 1.5, %v976
      %v978 = vmul.f32 %v973, %v977
      %vm979 = vweird.f32 %v971
      %vm980 = vweird.f32 %v973
      %vm981 = vmor %vm979, %vm980
      %v982 = vsel %vm981, %v973, %v978
      %v983 = vrsqrt.pop %v972
      %v984 = vmul.f32 %v983, %v972
      %v985 = vmul.f32 %v984, %v983
      %v986 = vmul.f32 0.5, %v985
      %v987 = vsub.f32 1.5, %v986
      %v988 = vmul.f32 %v983, %v987
      %vm989 = vweird.f32 %v972
      %vm990 = vweird.f32 %v983
      %vm991 = vmor %vm989, %vm990
      %v992 = vsel %vm991, %v983, %v988
      %v993 = vmul.f32 %v951, %v982
      %v994 = vmul.f32 %v952, %v992
      %v995 = vld [vmem:[%s7] sm:$0x1]
      %v997 = vperm.slane %v995, 0
      %998 = vrot.lane.b32.xlu0 %v997, 64
      %v999 = vpop.permute.xlu0 %998
      %v1001 = vmul.f32 %v993, %v999
      %v1002 = vmul.f32 %v994, %v999
      %v1003 = vld [vmem:[%s8] sm:$0x1]
      %v1005 = vperm.slane %v1003, 0
      %1006 = vrot.lane.b32.xlu0 %v1005, 64
      %v1007 = vpop.permute.xlu0 %1006
      %v1009 = vadd.f32 %v1001, %v1007
      %v1010 = vadd.f32 %v1002, %v1007
      %v1011 = vld [vmem:[%s9] sm:$0xff]
      %v1012 = vld [vmem:[%s9 + $0x8] sm:$0xff]
      %v1013 = vld [vmem:[%s9 + $0x10] sm:$0xff]
      %v1014 = vld [vmem:[%s9 + $0x18] sm:$0xff]
      %v1015 = vld [vmem:[%s10] sm:$0x1]
      %v1017 = vperm.slane %v1015, 0
      %1021 = vrot.lane.b32.xlu0 %v1009, 64
      %v1022 = vpop.permute.xlu0 %1021
      %1023 = vrot.lane.b32.xlu0 %v1010, 64
      %v1024 = vpop.permute.xlu0 %1023
      %v1025 = vsel %vm448, %v1022, 0
      %v1027 = vsel %vm448, %v1024, 0
      %1029 = vmatpush.msra.mxu0 0.0
      %1030 = vmatpush.msra.mxu0 0.0
      %1031 = vmatpush.msra.mxu0 0.0
      %1032 = vmatpush.msra.mxu0 0.0
      %1033 = vmatpush.msra.mxu0 0.0
      %1034 = vmatpush.msra.mxu0 0.0
      %1035 = vmatpush.msra.mxu0 0.0
      %1036 = vmatpush.msra.mxu0 0.0
      %1037 = vmatpush.msra.mxu0 0.0
      %1038 = vmatpush.msra.mxu0 0.0
      %1039 = vmatpush.msra.mxu0 0.0
      %1040 = vmatpush.msra.mxu0 0.0
      %1041 = vmatpush.msra.mxu0 %v1014
      %1042 = vmatpush.msra.mxu0 %v1013
      %1043 = vmatpush.msra.mxu0 %v1012
      %1044 = vmatpush.msra.mxu0 %v1011
      %1045 = vmatmul.f32.gmra.mxu0 %v1025
      %v1046 = vpop.f32.mrf.mxu0
      %v1047 = vadd.f32 %v1017, %v1046
      %1048 = vmatmul.f32.gmra.mxu0 %v1027
      %v1049 = vpop.f32.mrf.mxu0
      %v1050 = vadd.f32 %v1017, %v1049
      %1051 = vdwg.mxu0
      %v1052 = vmul.f32 %v1047, 0.5
      %v1053 = vmul.f32 %v1050, 0.5
      %v1054 = vmul.f32 %v1047, 0.70710677
      %v1055 = vmul.f32 %v1050, 0.70710677
      %v1056 = vmul.f32 %v1054, %v1054
      %v1057 = vmin.f32 16.0, %v1056
      %v1058 = vmul.f32 %v1057, 2.1237322e-06
      %v1059 = vadd.f32 %v1058, 0.00028619796
      %v1060 = vmul.f32 %v1057, %v1059
      %v1061 = vadd.f32 %v1060, 0.0036580483
      %v1062 = vmul.f32 %v1057, %v1061
      %v1063 = vadd.f32 %v1062, 0.05243302
      %v1064 = vmul.f32 %v1057, %v1063
      %v1065 = vadd.f32 %v1064, 0.18741608
      %v1066 = vmul.f32 %v1057, %v1065
      %v1067 = vadd.f32 %v1066, 1.1283791
      %v1068 = vmul.f32 %v1054, %v1067
      %v1069 = vmul.f32 %v1057, 3.8918573e-05
      %v1070 = vadd.f32 %v1069, 0.001143296
      %v1071 = vmul.f32 %v1057, %v1070
      %v1072 = vadd.f32 %v1071, 0.014752088
      %v1073 = vmul.f32 %v1057, %v1072
      %v1074 = vadd.f32 %v1073, 0.112945676
      %v1075 = vmul.f32 %v1057, %v1074
      %v1076 = vadd.f32 %v1075, 0.4994258
      %v1077 = vmul.f32 %v1057, %v1076
      %v1078 = vadd.f32 %v1077, 1.0
      %v1079 = vrcp.pop %v1078
      %v1080 = vmul.f32 %v1078, %v1079
      %v1081 = vsub.f32 1.0, %v1080
      %v1082 = vmul.f32 %v1079, %v1081
      %v1083 = vadd.f32 %v1079, %v1082
      %vm1084 = vweird.f32 %v1078
      %vm1085 = vweird.f32 %v1079
      %vm1086 = vmor %vm1084, %vm1085
      %v1087 = vsel %vm1086, %v1079, %v1083
      %v1088 = vand.u32 2147483647, %v1078
      %vm1089 = vcmp.eq.f32.partialorder %v1088, 8.507059e+37
      %v1090 = vand.u32 %v1078, 2147483648
      %v1091 = vor.u32 1.1754944e-38, %v1090
      %v1092 = vsel %vm1089, %v1091, %v1087
      %v1093 = vmul.f32 %v1068, %v1092
      %v1094 = vmin.f32 %v1093, 1.0
      %v1095 = vmax.f32 %v1094, -1.0
      %v1096 = vmul.f32 %v1055, %v1055
      %v1097 = vmin.f32 16.0, %v1096
      %v1098 = vmul.f32 %v1097, 2.1237322e-06
      %v1099 = vadd.f32 %v1098, 0.00028619796
      %v1100 = vmul.f32 %v1097, %v1099
      %v1101 = vadd.f32 %v1100, 0.0036580483
      %v1102 = vmul.f32 %v1097, %v1101
      %v1103 = vadd.f32 %v1102, 0.05243302
      %v1104 = vmul.f32 %v1097, %v1103
      %v1105 = vadd.f32 %v1104, 0.18741608
      %v1106 = vmul.f32 %v1097, %v1105
      %v1107 = vadd.f32 %v1106, 1.1283791
      %v1108 = vmul.f32 %v1055, %v1107
      %v1109 = vmul.f32 %v1097, 3.8918573e-05
      %v1110 = vadd.f32 %v1109, 0.001143296
      %v1111 = vmul.f32 %v1097, %v1110
      %v1112 = vadd.f32 %v1111, 0.014752088
      %v1113 = vmul.f32 %v1097, %v1112
      %v1114 = vadd.f32 %v1113, 0.112945676
      %v1115 = vmul.f32 %v1097, %v1114
      %v1116 = vadd.f32 %v1115, 0.4994258
      %v1117 = vmul.f32 %v1097, %v1116
      %v1118 = vadd.f32 %v1117, 1.0
      %v1119 = vrcp.pop %v1118
      %v1120 = vmul.f32 %v1118, %v1119
      %v1121 = vsub.f32 1.0, %v1120
      %v1122 = vmul.f32 %v1119, %v1121
      %v1123 = vadd.f32 %v1119, %v1122
      %vm1124 = vweird.f32 %v1118
      %vm1125 = vweird.f32 %v1119
      %vm1126 = vmor %vm1124, %vm1125
      %v1127 = vsel %vm1126, %v1119, %v1123
      %v1128 = vand.u32 2147483647, %v1118
      %vm1129 = vcmp.eq.f32.partialorder %v1128, 8.507059e+37
      %v1130 = vand.u32 %v1118, 2147483648
      %v1131 = vor.u32 1.1754944e-38, %v1130
      %v1132 = vsel %vm1129, %v1131, %v1127
      %v1133 = vmul.f32 %v1108, %v1132
      %v1134 = vmin.f32 %v1133, 1.0
      %v1135 = vmax.f32 %v1134, -1.0
      %v1136 = vadd.f32 %v1095, 1.0
      %v1137 = vadd.f32 %v1135, 1.0
      %v1138 = vmul.f32 %v1052, %v1136
      %v1139 = vmul.f32 %v1053, %v1137
      %v1140 = vld [vmem:[%s11] sm:$0xff]
      %v1141 = vld [vmem:[%s11 + $0x8] sm:$0xff]
      %v1142 = vld [vmem:[%s11 + $0x10] sm:$0xff]
      %v1143 = vld [vmem:[%s11 + $0x18] sm:$0xff]
      %v1144 = vld [vmem:[%s12] sm:$0x1]
      %v1146 = vperm.slane %v1144, 0
      %v1149 = vsel %vm448, %v1138, 0
      %v1152 = vsel %vm448, %v1139, 0
      %1154 = vmatpush.msra.mxu0 0.0
      %1155 = vmatpush.msra.mxu0 0.0
      %1156 = vmatpush.msra.mxu0 0.0
      %1157 = vmatpush.msra.mxu0 0.0
      %1158 = vmatpush.msra.mxu0 0.0
      %1159 = vmatpush.msra.mxu0 0.0
      %1160 = vmatpush.msra.mxu0 0.0
      %1161 = vmatpush.msra.mxu0 0.0
      %1162 = vmatpush.msra.mxu0 0.0
      %1163 = vmatpush.msra.mxu0 0.0
      %1164 = vmatpush.msra.mxu0 0.0
      %1165 = vmatpush.msra.mxu0 0.0
      %1166 = vmatpush.msra.mxu0 %v1143
      %1167 = vmatpush.msra.mxu0 %v1142
      %1168 = vmatpush.msra.mxu0 %v1141
      %1169 = vmatpush.msra.mxu0 %v1140
      %1170 = vmatmul.f32.gmra.mxu0 %v1149
      %v1171 = vpop.f32.mrf.mxu0
      %v1172 = vadd.f32 %v1146, %v1171
      %1173 = vmatmul.f32.gmra.mxu0 %v1152
      %v1174 = vpop.f32.mrf.mxu0
      %v1175 = vadd.f32 %v1146, %v1174
      %1176 = vdwg.mxu0
      %1179 = vrot.lane.b32.xlu0 %v1172, 64
      %v1180 = vpop.permute.xlu0 %1179
      %1181 = vrot.lane.b32.xlu0 %v1175, 64
      %v1182 = vpop.permute.xlu0 %1181
      %v1185 = vadd.f32 %v926, %v1180
      %v1186 = vadd.f32 %v927, %v1182
      %1189 = vrot.lane.b32.xlu0 %v1185, 64
      %v1190 = vpop.permute.xlu0 %1189
      %1191 = vrot.lane.b32.xlu0 %v1186, 64
      %v1192 = vpop.permute.xlu0 %1191
      %1195 = vst.msk [vmem:[%s440] sm:$0xff] %vm448, %v1190
      %1196 = vst.msk [vmem:[%s440 + $0x8] sm:$0xff] %vm448, %v1192
      %p1197 = scmp.lt.s32.totalorder %s24, 1
      %s1198 = scalar_select %p1197, %s24, 1
      %s1199 = smul.addr %s1198, 2
      %s1200 = smul.addr %s1199, 8
      %s1201 = scalar_lea.vmem %s13, %s1200
      // Predicated region
      $region73: #{t2t_forward.4} parent=71 // pred_check
        %p1202 = pneg %p320
      $region74: #{t2t_forward.4} parent=71 // pred_check_branch
        %1204 = sbr.rel (%p1202) target = $region76
      $region75: #{t2t_forward.4} parent=71 // pred_region
        _
      $region76: #{t2t_forward.4} parent=71 // pred_fallthru
        _
    $region72: #{t2t_forward.4} parent=5 // pred_fallthru
      _
    %p1205 = scmp.le.s32.totalorder 2, %s19
    // Predicated region
    $region77: #{t2t_forward.4} parent=5 // pred_check
      %p1206 = pneg %p1205
    $region78: #{t2t_forward.4} parent=5 // pred_check_branch
      %1208 = sbr.rel (%p1206) target = $region80
    $region79: #{t2t_forward.4} parent=5 // pred_region
      %s1209 = ssub.s32 %s19, 2
      // Predicated region
      $region81: #{t2t_forward.4} parent=79 // pred_check
        %p1210 = pneg %p326
      $region82: #{t2t_forward.4} parent=79 // pred_check_branch
        %1212 = sbr.rel (%p1210) target = $region84
      $region83: #{t2t_forward.4} parent=79 // pred_region
        %p1213 = scmp.lt.s32.totalorder %s25, 1
        %s1214 = scalar_select %p1213, %s25, 1
        %s1215 = smul.addr %s1214, 2
        %s1216 = smul.addr %s1215, 8
        %s1217 = scalar_lea.vmem %s13, %s1216
      $region84: #{t2t_forward.4} parent=79 // pred_fallthru
        _
    $region80: #{t2t_forward.4} parent=5 // pred_fallthru
      _
  $region6: #{t2t_forward.4} parent=0 // loop_footer
    %s23 = sadd.s32 1, %s19
  $region7: #{t2t_forward.4} parent=0 // loop_footer_branch
    %18 = sbr.rel target = $region3
  $region8: #{t2t_forward.4} parent=0 // loop_exit
    _

// kernel: t2t_forward.5
$region0: #{t2t_forward.5}
  #allocation0 [shape = 'u32[]', space=smem, size = 0x4, offset = 0x4, fixed_abs, tag = 'smem constant byte address 0x4 - core index']
  #allocation1 [shape = 'u32[72,128]{1,0:T(1,128)}', space=vmem, size = 0x9000, scoped, tag = 'internal scratch']
  %s0 = inlined_call_operand.vmem [shape: f32[32,288], index: 0, kind: input, shape index: {}]
  %s1 = inlined_call_operand.vmem [shape: f32[288,64], index: 1, kind: input, shape index: {}]
  %s2 = inlined_call_operand.vmem [shape: f32[1,64], index: 2, kind: input, shape index: {}]
  %s3 = inlined_call_operand.hbm [shape: f32[32,64], index: 3, kind: output, shape index: {}]
  %s4 = sld [smem:[#allocation0]]
  $region45: #{t2t_forward.5} parent=0
    _
  %s6 = ssub.s32 1, %s4
  %s7 = scalar_select 0, %s6, %s4
  $region1: #{t2t_forward.5} parent=0
    #allocation2 [shape = 'u8[16384]{0}', space=vmem, size = 0x4000, scoped, tag = 'output window, operand 0']
    #allocation3 [shape = 's32[2]{0}', space=sflag, size = 0x8, scoped, tag = 'scoped memory for t2t_forward.5']
    %8 = vsyncpa [#allocation3], 0
    %s9 = scalar_lea.sflag [#allocation3], 1
    %10 = vsyncpa %s9, 0
    loop: start=0, step=1, limit=4
    $region2: #{t2t_forward.5} parent=1 // loop_pre_header
      _
    $region3: #{t2t_forward.5} parent=1 // loop_header
      %s12 = sphi 0, %s16
      %p13 = scmp.ge.s32.totalorder %s12, 4
      %s22 = sphi 0, %s24
      %s25 = sphi 0, %s22
      %s26 = sphi 0, %s25
      %s42 = sphi 0, %s26
      %s46 = sphi 0, %s46
      %s48 = sphi 0, %s46
      %s49 = sphi 0, %s48
      %s63 = sphi 0, %s49
      %s67 = sphi 0, %s67
      %s69 = sphi 0, %s67
      %s70 = sphi 0, %s69
      %s84 = sphi 0, %s70
      %s90 = sphi 0, %s92
      %s93 = sphi 0, %s90
      %s94 = sphi 0, %s93
      %s110 = sphi 0, %s94
    $region4: #{t2t_forward.5} parent=1 // loop_header_branch
      %15 = sbr.rel (%p13) target = $region8
    $region5: #{t2t_forward.5} parent=1 // loop_body
      %s17 = ssub.s32 %s12, 1
      %s18 = ssub.s32 %s12, 2
      %s19 = sadd.s32 %s12, 1
      %s20 = ssub.s32 %s12, %s19
      %p21 = scmp.eq.s32.totalorder %s20, 0
      %s23 = sadd.s32 %s22, 1
      %s24 = scalar_select %p21, %s22, %s23
      %p27 = pneg %p21
      %p28 = scmp.eq.s32.totalorder %s12, 1
      %p29 = por %p27, %p28
      %p30 = scmp.ne.s32.totalorder %s22, %s25
      %p31 = scmp.eq.s32.totalorder %s12, 0
      %p32 = por %p30, %p31
      %p33 = scmp.ne.s32.totalorder %s22, %s25
      %p34 = scmp.eq.s32.totalorder %s17, 1
      %p35 = por %p33, %p34
      %p36 = scmp.ne.s32.totalorder %s25, %s26
      %p37 = scmp.eq.s32.totalorder %s17, 0
      %p38 = por %p36, %p37
      %p39 = scmp.ne.s32.totalorder %s25, %s26
      %p40 = scmp.eq.s32.totalorder %s18, 1
      %p41 = por %p39, %p40
      %p43 = scmp.ne.s32.totalorder %s26, %s42
      %p44 = scmp.eq.s32.totalorder %s18, 0
      %p45 = por %p43, %p44
      %s47 = sadd.s32 %s46, 1
      %p50 = scmp.eq.s32.totalorder %s12, 1
      %p51 = scmp.ne.s32.totalorder %s46, %s48
      %p52 = scmp.eq.s32.totalorder %s12, 0
      %p53 = por %p51, %p52
      %p54 = scmp.ne.s32.totalorder %s46, %s48
      %p55 = scmp.eq.s32.totalorder %s17, 1
      %p56 = por %p54, %p55
      %p57 = scmp.ne.s32.totalorder %s48, %s49
      %p58 = scmp.eq.s32.totalorder %s17, 0
      %p59 = por %p57, %p58
      %p60 = scmp.ne.s32.totalorder %s48, %s49
      %p61 = scmp.eq.s32.totalorder %s18, 1
      %p62 = por %p60, %p61
      %p64 = scmp.ne.s32.totalorder %s49, %s63
      %p65 = scmp.eq.s32.totalorder %s18, 0
      %p66 = por %p64, %p65
      %s68 = sadd.s32 %s67, 1
      %p71 = scmp.eq.s32.totalorder %s12, 1
      %p72 = scmp.ne.s32.totalorder %s67, %s69
      %p73 = scmp.eq.s32.totalorder %s12, 0
      %p74 = por %p72, %p73
      %p75 = scmp.ne.s32.totalorder %s67, %s69
      %p76 = scmp.eq.s32.totalorder %s17, 1
      %p77 = por %p75, %p76
      %p78 = scmp.ne.s32.totalorder %s69, %s70
      %p79 = scmp.eq.s32.totalorder %s17, 0
      %p80 = por %p78, %p79
      %p81 = scmp.ne.s32.totalorder %s69, %s70
      %p82 = scmp.eq.s32.totalorder %s18, 1
      %p83 = por %p81, %p82
      %p85 = scmp.ne.s32.totalorder %s70, %s84
      %p86 = scmp.eq.s32.totalorder %s18, 0
      %p87 = por %p85, %p86
      %s88 = ssub.s32 %s12, %s19
      %p89 = scmp.eq.s32.totalorder %s88, 0
      %s91 = sadd.s32 %s90, 1
      %s92 = scalar_select %p89, %s90, %s91
      %p95 = pneg %p89
      %p96 = scmp.eq.s32.totalorder %s12, 1
      %p97 = por %p95, %p96
      %p98 = scmp.ne.s32.totalorder %s90, %s93
      %p99 = scmp.eq.s32.totalorder %s12, 0
      %p100 = por %p98, %p99
      %p101 = scmp.ne.s32.totalorder %s90, %s93
      %p102 = scmp.eq.s32.totalorder %s17, 1
      %p103 = por %p101, %p102
      %p104 = scmp.ne.s32.totalorder %s93, %s94
      %p105 = scmp.eq.s32.totalorder %s17, 0
      %p106 = por %p104, %p105
      %p107 = scmp.ne.s32.totalorder %s93, %s94
      %p108 = scmp.eq.s32.totalorder %s18, 1
      %p109 = por %p107, %p108
      %p111 = scmp.ne.s32.totalorder %s94, %s110
      %p112 = scmp.eq.s32.totalorder %s18, 0
      %p113 = por %p111, %p112
      %p114 = scmp.le.s32.totalorder 1, %s12
      %p115 = scmp.lt.s32.totalorder %s12, 3
      %p116 = pnand %p114, %p115
      %p117 = pneg %p116
      // Predicated region
      $region9: #{t2t_forward.5} parent=5 // pred_check
        _
      $region10: #{t2t_forward.5} parent=5 // pred_check_branch
        %119 = sbr.rel (%p116) target = $region12
      $region11: #{t2t_forward.5} parent=5 // pred_region
        %s120 = ssub.s32 %s12, 1
        // Predicated region
        $region13: #{t2t_forward.5} parent=11 // pred_check
          %p121 = pneg %p59
        $region14: #{t2t_forward.5} parent=11 // pred_check_branch
          %123 = sbr.rel (%p121) target = $region16
        $region15: #{t2t_forward.5} parent=11 // pred_region
          _
        $region16: #{t2t_forward.5} parent=11 // pred_fallthru
          _
        // Predicated region
        $region17: #{t2t_forward.5} parent=11 // pred_check
          %p124 = pneg %p80
        $region18: #{t2t_forward.5} parent=11 // pred_check_branch
          %126 = sbr.rel (%p124) target = $region20
        $region19: #{t2t_forward.5} parent=11 // pred_region
          _
        $region20: #{t2t_forward.5} parent=11 // pred_fallthru
          _
      $region12: #{t2t_forward.5} parent=5 // pred_fallthru
        _
      %p127 = scmp.lt.s32.totalorder %s12, 2
      // Predicated region
      $region21: #{t2t_forward.5} parent=5 // pred_check
        %p128 = pneg %p127
      $region22: #{t2t_forward.5} parent=5 // pred_check_branch
        %130 = sbr.rel (%p128) target = $region24
      $region23: #{t2t_forward.5} parent=5 // pred_region
        // Predicated region
        $region25: #{t2t_forward.5} parent=23 // pred_check
          %p131 = pneg %p32
        $region26: #{t2t_forward.5} parent=23 // pred_check_branch
          %133 = sbr.rel (%p131) target = $region28
        $region27: #{t2t_forward.5} parent=23 // pred_region
          %s134 = smul.u32 2, %s12
          %p135 = scmp.lt.s32.totalorder %s134, 3
          %s136 = scalar_select %p135, %s134, 3
          %s137 = smul.addr %s136, 3
          %s138 = smul.addr %s137, 8
          %s139 = scalar_lea.vmem %s0, %s138
          %s140 = smul.u32 2, %s12
        $region28: #{t2t_forward.5} parent=23 // pred_fallthru
          _
      $region24: #{t2t_forward.5} parent=5 // pred_fallthru
        _
      %p141 = scmp.le.s32.totalorder 1, %s12
      %p142 = scmp.lt.s32.totalorder %s12, 3
      %p143 = pnand %p141, %p142
      %p144 = pneg %p143
      // Predicated region
      $region29: #{t2t_forward.5} parent=5 // pred_check
        _
      $region30: #{t2t_forward.5} parent=5 // pred_check_branch
        %146 = sbr.rel (%p143) target = $region32
      $region31: #{t2t_forward.5} parent=5 // pred_region
        %s147 = ssub.s32 %s12, 1
        %s148 = smul.u32 2, %s17
        %p149 = scmp.lt.s32.totalorder %s148, 3
        %s150 = scalar_select %p149, %s148, 3
        %s151 = smul.addr %s150, 3
        %s152 = smul.addr %s151, 8
        %s153 = scalar_lea.vmem %s0, %s152
        %p154 = pneg %p38
        %p155 = pneg %p35
        %p156 = pneg %p59
        %p157 = pneg %p56
        %p158 = pneg %p80
        %p159 = pneg %p77
        %p160 = pneg %p106
        %p161 = pneg %p103
        %s162 = sand.u32 %s93, 1
        %s163 = scalar_lea.sflag [#allocation3], %s162
        %s164 = sand.u32 %s93, 1
        %s165 = smul.addr %s164, 16
        %s166 = scalar_lea.vmem [#allocation2], %s165
        %s167 = smul.u32 2, %s17
        %p168 = scmp.lt.s32.totalorder %s167, 3
        %s169 = scalar_select %p168, %s167, 3
        %s170 = smul.addr %s169, 3
        %s171 = smul.addr %s170, 8
        %s172 = scalar_lea.vmem %s0, %s171
        %s173 = smul.u32 2, %s17
        %s174 = smul.u32 2, %s17
        %v175 = vld [vmem:[%s172] sm:$0xff]
        %v176 = vld [vmem:[%s172 + $0x8] sm:$0xff]
        %v177 = vld [vmem:[%s172 + $0x10] sm:$0xff]
        %v178 = vld [vmem:[%s172 + $0x18] sm:$0xff]
        %v179 = vld [vmem:[%s172 + $0x20] sm:$0xff]
        %v180 = vld [vmem:[%s172 + $0x28] sm:$0xff]
        %v181 = vld [vmem:[%s1] sm:$0xff]
        %v182 = vld [vmem:[%s1 + $0x8] sm:$0xff]
        %v183 = vld [vmem:[%s1 + $0x10] sm:$0xff]
        %v184 = vld [vmem:[%s1 + $0x18] sm:$0xff]
        %v185 = vld [vmem:[%s1 + $0x20] sm:$0xff]
        %v186 = vld [vmem:[%s1 + $0x28] sm:$0xff]
        %v187 = vld [vmem:[%s1 + $0x30] sm:$0xff]
        %v188 = vld [vmem:[%s1 + $0x38] sm:$0xff]
        %v189 = vld [vmem:[%s1 + $0x40] sm:$0xff]
        %v190 = vld [vmem:[%s1 + $0x48] sm:$0xff]
        %v191 = vld [vmem:[%s1 + $0x50] sm:$0xff]
        %v192 = vld [vmem:[%s1 + $0x58] sm:$0xff]
        %v193 = vld [vmem:[%s1 + $0x60] sm:$0xff]
        %v194 = vld [vmem:[%s1 + $0x68] sm:$0xff]
        %v195 = vld [vmem:[%s1 + $0x70] sm:$0xff]
        %v196 = vld [vmem:[%s1 + $0x78] sm:$0xff]
        %v197 = vld [vmem:[%s1 + $0x80] sm:$0xff]
        %v198 = vld [vmem:[%s1 + $0x88] sm:$0xff]
        %v199 = vld [vmem:[%s1 + $0x90] sm:$0xff]
        %v200 = vld [vmem:[%s1 + $0x98] sm:$0xff]
        %v201 = vld [vmem:[%s1 + $0xa0] sm:$0xff]
        %v202 = vld [vmem:[%s1 + $0xa8] sm:$0xff]
        %v203 = vld [vmem:[%s1 + $0xb0] sm:$0xff]
        %v204 = vld [vmem:[%s1 + $0xb8] sm:$0xff]
        %v205 = vld [vmem:[%s1 + $0xc0] sm:$0xff]
        %v206 = vld [vmem:[%s1 + $0xc8] sm:$0xff]
        %v207 = vld [vmem:[%s1 + $0xd0] sm:$0xff]
        %v208 = vld [vmem:[%s1 + $0xd8] sm:$0xff]
        %v209 = vld [vmem:[%s1 + $0xe0] sm:$0xff]
        %v210 = vld [vmem:[%s1 + $0xe8] sm:$0xff]
        %v211 = vld [vmem:[%s1 + $0xf0] sm:$0xff]
        %v212 = vld [vmem:[%s1 + $0xf8] sm:$0xff]
        %v213 = vld [vmem:[%s1 + $0x100] sm:$0xff]
        %v214 = vld [vmem:[%s1 + $0x108] sm:$0xff]
        %v215 = vld [vmem:[%s1 + $0x110] sm:$0xff]
        %v216 = vld [vmem:[%s1 + $0x118] sm:$0xff]
        %v217 = vld [vmem:[%s2] sm:$0x1]
        %v219 = vperm.slane %v217, 0
        %vm221 = vcmask 261120
        %v223 = vsel %vm221, %v177, 0
        %v226 = vsel %vm221, %v180, 0
        %228 = vmatpush.msra.mxu0 %v196
        %229 = vmatpush.msra.mxu0 %v195
        %230 = vmatpush.msra.mxu0 %v194
        %231 = vmatpush.msra.mxu0 %v193
        %232 = vmatpush.msra.mxu0 %v192
        %233 = vmatpush.msra.mxu0 %v191
        %234 = vmatpush.msra.mxu0 %v190
        %235 = vmatpush.msra.mxu0 %v189
        %236 = vmatpush.msra.mxu0 %v188
        %237 = vmatpush.msra.mxu0 %v187
        %238 = vmatpush.msra.mxu0 %v186
        %239 = vmatpush.msra.mxu0 %v185
        %240 = vmatpush.msra.mxu0 %v184
        %241 = vmatpush.msra.mxu0 %v183
        %242 = vmatpush.msra.mxu0 %v182
        %243 = vmatpush.msra.mxu0 %v181
        %244 = vmatmul.f32.gmra.mxu0 %v175
        %v245 = vpop.f32.mrf.mxu0
        %v246 = vadd.f32 %v219, %v245
        %247 = vmatmul.f32.gmra.mxu0 %v178
        %v248 = vpop.f32.mrf.mxu0
        %v249 = vadd.f32 %v219, %v248
        %250 = vdwg.mxu0
        %251 = vmatpush.msra.mxu0 %v212
        %252 = vmatpush.msra.mxu0 %v211
        %253 = vmatpush.msra.mxu0 %v210
        %254 = vmatpush.msra.mxu0 %v209
        %255 = vmatpush.msra.mxu0 %v208
        %256 = vmatpush.msra.mxu0 %v207
        %257 = vmatpush.msra.mxu0 %v206
        %258 = vmatpush.msra.mxu0 %v205
        %259 = vmatpush.msra.mxu0 %v204
        %260 = vmatpush.msra.mxu0 %v203
        %261 = vmatpush.msra.mxu0 %v202
        %262 = vmatpush.msra.mxu0 %v201
        %263 = vmatpush.msra.mxu0 %v200
        %264 = vmatpush.msra.mxu0 %v199
        %265 = vmatpush.msra.mxu0 %v198
        %266 = vmatpush.msra.mxu0 %v197
        %267 = vmatmul.f32.gmra.mxu0 %v176
        %v268 = vpop.f32.mrf.mxu0
        %v269 = vadd.f32 %v246, %v268
        %270 = vmatmul.f32.gmra.mxu0 %v179
        %v271 = vpop.f32.mrf.mxu0
        %v272 = vadd.f32 %v249, %v271
        %273 = vdwg.mxu0
        %274 = vmatpush.msra.mxu0 0.0
        %275 = vmatpush.msra.mxu0 0.0
        %276 = vmatpush.msra.mxu0 0.0
        %277 = vmatpush.msra.mxu0 0.0
        %278 = vmatpush.msra.mxu0 0.0
        %279 = vmatpush.msra.mxu0 0.0
        %280 = vmatpush.msra.mxu0 0.0
        %281 = vmatpush.msra.mxu0 0.0
        %282 = vmatpush.msra.mxu0 0.0
        %283 = vmatpush.msra.mxu0 0.0
        %284 = vmatpush.msra.mxu0 0.0
        %285 = vmatpush.msra.mxu0 0.0
        %286 = vmatpush.msra.mxu0 %v216
        %287 = vmatpush.msra.mxu0 %v215
        %288 = vmatpush.msra.mxu0 %v214
        %289 = vmatpush.msra.mxu0 %v213
        %290 = vmatmul.f32.gmra.mxu0 %v223
        %v291 = vpop.f32.mrf.mxu0
        %v292 = vadd.f32 %v269, %v291
        %293 = vmatmul.f32.gmra.mxu0 %v226
        %v294 = vpop.f32.mrf.mxu0
        %v295 = vadd.f32 %v272, %v294
        %296 = vdwg.mxu0
        %vm297 = vcmask 523264
        %298 = vst.msk [vmem:[%s166] sm:$0xff] %vm297, %v292
        %299 = vst.msk [vmem:[%s166 + $0x8] sm:$0xff] %vm297, %v295
        %s300 = sand.u32 %s93, 1
        %s301 = scalar_lea.sflag [#allocation3], %s300
        %s302 = sand.u32 %s93, 1
        %s303 = smul.addr %s302, 16
        %s304 = scalar_lea.vmem [#allocation2], %s303
        // Predicated region
        $region33: #{t2t_forward.5} parent=31 // pred_check
          %p305 = pneg %p103
        $region34: #{t2t_forward.5} parent=31 // pred_check_branch
          %307 = sbr.rel (%p305) target = $region36
        $region35: #{t2t_forward.5} parent=31 // pred_region
          %s308 = smul.u32 2, %s17
          %310 = vsyncadd %s301, 0
          %s311 = smul.addr %s308, 8
          %s312 = scalar_lea.hbm %s3, %s311
          %s313 = sshll.u32 %s304, 4
          %s314 = int_to_ptr.vmem [resolvable:$true] %s313
          %s315 = sshll.u32 %s312, 4
          %s316 = int_to_ptr.hbm [resolvable:$true] %s315
          %321 = dma.vmem_to_hbm [thread:$0]  %s314, 256, %s316, %s301, 128, 128, 8
        $region36: #{t2t_forward.5} parent=31 // pred_fallthru
          _
      $region32: #{t2t_forward.5} parent=5 // pred_fallthru
        _
      %p322 = scmp.le.s32.totalorder 2, %s12
      // Predicated region
      $region37: #{t2t_forward.5} parent=5 // pred_check
        %p323 = pneg %p322
      $region38: #{t2t_forward.5} parent=5 // pred_check_branch
        %325 = sbr.rel (%p323) target = $region40
      $region39: #{t2t_forward.5} parent=5 // pred_region
        %s326 = ssub.s32 %s12, 2
        // Predicated region
        $region41: #{t2t_forward.5} parent=39 // pred_check
          %p327 = pneg %p109
        $region42: #{t2t_forward.5} parent=39 // pred_check_branch
          %329 = sbr.rel (%p327) target = $region44
        $region43: #{t2t_forward.5} parent=39 // pred_region
          %s330 = sand.u32 %s94, 1
          %s331 = scalar_lea.sflag [#allocation3], %s330
          %s332 = sand.u32 %s94, 1
          %s333 = smul.addr %s332, 16
          %s334 = scalar_lea.vmem [#allocation2], %s333
          %336 = dma.done %s331, 256
        $region44: #{t2t_forward.5} parent=39 // pred_fallthru
          _
      $region40: #{t2t_forward.5} parent=5 // pred_fallthru
        _
    $region6: #{t2t_forward.5} parent=1 // loop_footer
      %s16 = sadd.s32 1, %s12
    $region7: #{t2t_forward.5} parent=1 // loop_footer_branch
      %11 = sbr.rel target = $region3
    $region8: #{t2t_forward.5} parent=1 // loop_exit
      _
    %337 = vsyncpa [#allocation3], 1
    %s338 = scalar_lea.sflag [#allocation3], 1
    %339 = vsyncpa %s338, 1

</llo_original>
